<compile_context>
chip_gen: v7x
topology: tpu7x:2x2x1
jax: 0.10.0
libtpu: 0.0.40
codegen_flags: <defaults>
</compile_context>

<pallas_src>
import functools

import jax
import jax.numpy as jnp
import numpy as np
from jax import lax
from jax.experimental import pallas as pl
from jax.experimental.pallas import tpu as pltpu

LN_EPS = 1e-5  # nn.LayerNorm default


def encoder_stack_kernel(x_ref,
                         wq_ref, bq_ref, wk_ref, bk_ref, wv_ref, bv_ref,
                         wo_ref, bo_ref, w1_ref, b1_ref, w2_ref, b2_ref,
                         ln1_w_ref, ln1_b_ref, ln2_w_ref, ln2_b_ref,
                         o_ref, act_ref, *, num_heads):
    """grid=(num_layers,); one grid step == one encoder layer (post-norm,
    ReLU, eval mode). The activation is carried across layers in act_ref."""
    layer = pl.program_id(0)
    n_layers = pl.num_programs(0)

    @pl.when(layer == 0)
    def _():
        act_ref[...] = x_ref[...]

    x = act_ref[...]                          # (B, S, E) float32
    B, S, E = x.shape
    H = num_heads
    Dh = E // H

    xb = x.astype(jnp.bfloat16)

    # ---- Multi-head self-attention (per-head weight slabs, no concat) ----
    attn = jnp.zeros((B, S, E), jnp.float32)
    for h in range(H):                        # static unroll, H is small
        # per-head projections: x @ Wq_h (+ bias); softmax scale pre-folded.
        qh = jnp.einsum('bse,ed->bsd', xb, wq_ref[h],
                        preferred_element_type=jnp.float32) + bq_ref[h]
        kh = jnp.einsum('bse,ed->bsd', xb, wk_ref[h],
                        preferred_element_type=jnp.float32) + bk_ref[h]
        vh = jnp.einsum('bse,ed->bsd', xb, wv_ref[h],
                        preferred_element_type=jnp.float32) + bv_ref[h]
        qh = qh.astype(jnp.bfloat16)
        kh = kh.astype(jnp.bfloat16)
        vh = vh.astype(jnp.bfloat16)

        s = jnp.einsum('bqd,bkd->bqk', qh, kh,
                       preferred_element_type=jnp.float32)        # (B,S,S) f32
        m = jnp.max(s, axis=-1, keepdims=True)
        p = jnp.exp(s - m)
        denom = jnp.sum(p, axis=-1, keepdims=True)
        p = p * pl.reciprocal(denom, approx=True)                 # EUP divide
        oh = jnp.einsum('bqk,bkd->bqd', p.astype(jnp.bfloat16), vh,
                        preferred_element_type=jnp.float32)       # (B,S,Dh)
        # output projection, per-head slab, accumulated (== concat @ Wo.T)
        attn = attn + jnp.einsum('bsd,de->bse', oh.astype(jnp.bfloat16),
                                 wo_ref[h],
                                 preferred_element_type=jnp.float32)
    attn = attn + bo_ref[...]
    # TODO(synk): dropout layers are identity here (eval-mode forward).

    # ---- residual + LayerNorm1 (post-norm, f32 statistics) ---------------
    y = x + attn
    mu = jnp.mean(y, axis=-1, keepdims=True)
    yc = y - mu
    var = jnp.mean(yc * yc, axis=-1, keepdims=True)
    y = yc * lax.rsqrt(var + LN_EPS) * ln1_w_ref[...] + ln1_b_ref[...]

    # ---- Feed-forward: Linear -> ReLU -> Linear (bf16 matmuls) -----------
    hid = jnp.einsum('bse,ef->bsf', y.astype(jnp.bfloat16), w1_ref[...],
                     preferred_element_type=jnp.float32) + b1_ref[...]
    hid = jnp.maximum(hid, 0.0)
    f = jnp.einsum('bsf,fe->bse', hid.astype(jnp.bfloat16), w2_ref[...],
                   preferred_element_type=jnp.float32) + b2_ref[...]

    # ---- residual + LayerNorm2 --------------------------------------------
    z = y + f
    mu2 = jnp.mean(z, axis=-1, keepdims=True)
    zc = z - mu2
    var2 = jnp.mean(zc * zc, axis=-1, keepdims=True)
    z = zc * lax.rsqrt(var2 + LN_EPS) * ln2_w_ref[...] + ln2_b_ref[...]

    act_ref[...] = z                          # carry to next layer

    @pl.when(layer == n_layers - 1)
    def _():
        o_ref[...] = z.astype(o_ref.dtype)


def prepare_stacked_params(layer_params, num_heads):
    """Convert per-layer PyTorch-layout params into layer-stacked,
    pre-transposed, per-head-split, bf16 weights for the fused kernel."""
    per_layer = []
    for (in_w, in_b, out_w, out_b, w1, b1, w2, b2,
         ln1_w, ln1_b, ln2_w, ln2_b) in layer_params:
        E = out_w.shape[0]
        H = num_heads
        Dh = E // H
        scale = 1.0 / float(np.sqrt(Dh))
        bf16 = jnp.bfloat16

        # in_proj packs [Wq; Wk; Wv] (each (E, E)); PyTorch Linear is x @ W.T,
        # so transpose to (E_in, E_out) and split the output dim per head.
        def split_heads(w_t):                 # (E_in, E_out) -> (H, E_in, Dh)
            return jnp.transpose(w_t.reshape(E, H, Dh), (1, 0, 2))

        wq = (split_heads(in_w[:E].T) * scale).astype(bf16)
        wk = split_heads(in_w[E:2 * E].T).astype(bf16)
        wv = split_heads(in_w[2 * E:].T).astype(bf16)
        bq = (in_b[0, :E].reshape(H, 1, Dh) * scale).astype(jnp.float32)
        bk = in_b[0, E:2 * E].reshape(H, 1, Dh).astype(jnp.float32)
        bv = in_b[0, 2 * E:].reshape(H, 1, Dh).astype(jnp.float32)
        # out_proj: concat(heads) @ Wo.T == sum_h head_h @ Wo.T[h*Dh:(h+1)*Dh]
        wo = out_w.T.reshape(H, Dh, E).astype(bf16)
        bo = out_b.reshape(1, E).astype(jnp.float32)

        per_layer.append((
            wq, bq, wk, bk, wv, bv, wo, bo,
            w1.T.astype(bf16), b1.reshape(1, -1).astype(jnp.float32),
            w2.T.astype(bf16), b2.reshape(1, -1).astype(jnp.float32),
            ln1_w.reshape(1, -1).astype(jnp.float32),
            ln1_b.reshape(1, -1).astype(jnp.float32),
            ln2_w.reshape(1, -1).astype(jnp.float32),
            ln2_b.reshape(1, -1).astype(jnp.float32)))
    # stack each param across the layer axis
    return tuple(jnp.stack(ps, axis=0) for ps in zip(*per_layer))


def transformer_encoder(x_sbe, layer_params, num_heads):
    """Full TransformerEncoder forward. x_sbe: (S, B, E), batch_first=False."""
    S, B, E = x_sbe.shape
    H = num_heads
    Dh = E // H
    FF = layer_params[0][4].shape[0]          # w1 is (FF, E)
    L = len(layer_params)

    stacked = prepare_stacked_params(layer_params, num_heads)
    x_bse = jnp.transpose(x_sbe, (1, 0, 2))   # (B, S, E)

    def wspec(*dims):
        nd = len(dims)
        return pl.BlockSpec((None,) + tuple(dims),
                            lambda l: (l,) + (0,) * nd)

    grid_spec = pltpu.PrefetchScalarGridSpec(
        num_scalar_prefetch=0,
        grid=(L,),
        in_specs=[
            pl.BlockSpec((B, S, E), lambda l: (0, 0, 0)),     # x (fetched once)
            wspec(H, E, Dh), wspec(H, 1, Dh),                 # wq, bq
            wspec(H, E, Dh), wspec(H, 1, Dh),                 # wk, bk
            wspec(H, E, Dh), wspec(H, 1, Dh),                 # wv, bv
            wspec(H, Dh, E), wspec(1, E),                     # wo, bo
            wspec(E, FF), wspec(1, FF),                       # w1, b1
            wspec(FF, E), wspec(1, E),                        # w2, b2
            wspec(1, E), wspec(1, E),                         # ln1 w, b
            wspec(1, E), wspec(1, E),                         # ln2 w, b
        ],
        out_specs=pl.BlockSpec((B, S, E), lambda l: (0, 0, 0)),
        scratch_shapes=[pltpu.VMEM((B, S, E), jnp.float32)],  # resident act
    )

    out_bse = pl.pallas_call(
        functools.partial(encoder_stack_kernel, num_heads=H),
        out_shape=jax.ShapeDtypeStruct((B, S, E), x_bse.dtype),
        grid_spec=grid_spec,
        compiler_params=pltpu.CompilerParams(
            dimension_semantics=("arbitrary",),   # layer axis carries state
            vmem_limit_bytes=32 * 1024 * 1024,
        ),
    )(x_bse, *stacked)
    return jnp.transpose(out_bse, (1, 0, 2))  # back to (S, B, E)


# ---------------------------------------------------------------------------
# Pure-JAX reference (same math, PyTorch layout, f32) for a sanity check.
# ---------------------------------------------------------------------------
def encoder_layer_ref(x, p, num_heads):
    (in_w, in_b, out_w, out_b, w1, b1, w2, b2,
     ln1_w, ln1_b, ln2_w, ln2_b) = p
    B, S, E = x.shape
    Dh = E // num_heads
    scale = 1.0 / np.sqrt(Dh)
    qkv = jnp.einsum('bse,fe->bsf', x, in_w) + in_b[0]
    q = qkv[:, :, :E].reshape(B, S, num_heads, Dh)
    k = qkv[:, :, E:2 * E].reshape(B, S, num_heads, Dh)
    v = qkv[:, :, 2 * E:].reshape(B, S, num_heads, Dh)
    s = jnp.einsum('bqhd,bkhd->bhqk', q, k) * scale
    pw = jax.nn.softmax(s, axis=-1)
    attn = jnp.einsum('bhqk,bkhd->bqhd', pw, v).reshape(B, S, E)
    attn = jnp.einsum('bse,fe->bsf', attn, out_w) + out_b[0]
    y = x + attn
    y = (y - y.mean(-1, keepdims=True)) * lax.rsqrt(
        y.var(-1, keepdims=True) + LN_EPS) * ln1_w[0] + ln1_b[0]
    h = jnp.maximum(jnp.einsum('bse,fe->bsf', y, w1) + b1[0], 0.0)
    f = jnp.einsum('bsf,ef->bse', h, w2) + b2[0]
    z = y + f
    z = (z - z.mean(-1, keepdims=True)) * lax.rsqrt(
        z.var(-1, keepdims=True) + LN_EPS) * ln2_w[0] + ln2_b[0]
    return z


def init_layer_params(key, embed_dim, ff_dim):
    E, FF = embed_dim, ff_dim
    ks = jax.random.split(key, 8)
    f32 = jnp.float32
    in_w = jax.random.normal(ks[0], (3 * E, E), f32) / np.sqrt(E)
    in_b = jax.random.normal(ks[1], (1, 3 * E), f32) * 0.02
    out_w = jax.random.normal(ks[2], (E, E), f32) / np.sqrt(E)
    out_b = jax.random.normal(ks[3], (1, E), f32) * 0.02
    w1 = jax.random.normal(ks[4], (FF, E), f32) / np.sqrt(E)
    b1 = jax.random.normal(ks[5], (1, FF), f32) * 0.02
    w2 = jax.random.normal(ks[6], (E, FF), f32) / np.sqrt(FF)
    b2 = jax.random.normal(ks[7], (1, E), f32) * 0.02
    ln1_w = jnp.ones((1, E), f32)
    ln1_b = jnp.zeros((1, E), f32)
    ln2_w = jnp.ones((1, E), f32)
    ln2_b = jnp.zeros((1, E), f32)
    return (in_w, in_b, out_w, out_b, w1, b1, w2, b2,
            ln1_w, ln1_b, ln2_w, ln2_b)


if __name__ == "__main__":
    # Small config consistent with nn.TransformerEncoderLayer defaults
    # (dim_feedforward=2048, ReLU, post-norm, batch_first=False, eval mode).
    EMBED_DIM = 32
    NUM_HEADS = 4
    NUM_LAYERS = 2
    FF_DIM = 2048
    SEQ, BATCH = 8, 2

    root = jax.random.PRNGKey(0)
    kx, kp = jax.random.split(root)
    # PyTorch-convention input: (S, B, E)
    x = jax.random.normal(kx, (SEQ, BATCH, EMBED_DIM), jnp.float32)

    layer_keys = jax.random.split(kp, NUM_LAYERS)
    params = [init_layer_params(k, EMBED_DIM, FF_DIM) for k in layer_keys]

    out = transformer_encoder(x, params, NUM_HEADS)
    out = jax.block_until_ready(out)
    assert out.shape == (SEQ, BATCH, EMBED_DIM)

    # Reference uses the same bf16 quantization of the weight matrices as the
    # kernel's matmuls (activations / softmax / LayerNorm stay f32), so the
    # check isolates kernel correctness from the intended bf16 approximation.
    def qz(w):
        return w.astype(jnp.bfloat16).astype(jnp.float32)

    xr = jnp.transpose(x, (1, 0, 2))
    for p in params:
        (in_w, in_b, out_w, out_b, w1, b1, w2, b2,
         ln1_w, ln1_b, ln2_w, ln2_b) = p
        pq = (qz(in_w), in_b, qz(out_w), out_b, qz(w1), b1, qz(w2), b2,
              ln1_w, ln1_b, ln2_w, ln2_b)
        xr = encoder_layer_ref(xr, pq, NUM_HEADS)
    ref = jnp.transpose(xr, (1, 0, 2))
    np.testing.assert_allclose(np.asarray(out), np.asarray(ref),
                               rtol=5e-2, atol=5e-2)

    print("KERNEL_OK")
</pallas_src>

<mosaic_0001>
module attributes {stable_mosaic.version = 11 : i64} {
  func.func @encoder_stack_kernel(%arg0: i32, %arg1: memref<2x8x32xf32, #tpu.memory_space<vmem>>, %arg2: memref<1x4x32x8xbf16, #tpu.memory_space<vmem>>, %arg3: memref<1x4x1x8xf32, #tpu.memory_space<vmem>>, %arg4: memref<1x4x32x8xbf16, #tpu.memory_space<vmem>>, %arg5: memref<1x4x1x8xf32, #tpu.memory_space<vmem>>, %arg6: memref<1x4x32x8xbf16, #tpu.memory_space<vmem>>, %arg7: memref<1x4x1x8xf32, #tpu.memory_space<vmem>>, %arg8: memref<1x4x8x32xbf16, #tpu.memory_space<vmem>>, %arg9: memref<1x1x32xf32, #tpu.memory_space<vmem>>, %arg10: memref<1x32x2048xbf16, #tpu.memory_space<vmem>>, %arg11: memref<1x1x2048xf32, #tpu.memory_space<vmem>>, %arg12: memref<1x2048x32xbf16, #tpu.memory_space<vmem>>, %arg13: memref<1x1x32xf32, #tpu.memory_space<vmem>>, %arg14: memref<1x1x32xf32, #tpu.memory_space<vmem>>, %arg15: memref<1x1x32xf32, #tpu.memory_space<vmem>>, %arg16: memref<1x1x32xf32, #tpu.memory_space<vmem>>, %arg17: memref<1x1x32xf32, #tpu.memory_space<vmem>>, %arg18: memref<2x8x32xf32, #tpu.memory_space<vmem>>, %arg19: memref<2x8x32xf32, #tpu.memory_space<vmem>>) attributes {dimension_semantics = [#tpu.dimension_semantics<arbitrary>], iteration_bounds = array<i64: 2>, scalar_prefetch = 0 : i64, scratch_operands = 1 : i64, tpu.core_type = #tpu.core_type<tc>, window_params = [{pipeline_mode = #tpu.pipeline_mode<synchronous>, transform_indices = @transform_0, window_bounds = array<i64: 2, 8, 32>}, {transform_indices = @transform_1, window_bounds = array<i64: 1, 4, 32, 8>}, {transform_indices = @transform_2, window_bounds = array<i64: 1, 4, 1, 8>}, {transform_indices = @transform_3, window_bounds = array<i64: 1, 4, 32, 8>}, {transform_indices = @transform_4, window_bounds = array<i64: 1, 4, 1, 8>}, {transform_indices = @transform_5, window_bounds = array<i64: 1, 4, 32, 8>}, {transform_indices = @transform_6, window_bounds = array<i64: 1, 4, 1, 8>}, {transform_indices = @transform_7, window_bounds = array<i64: 1, 4, 8, 32>}, {transform_indices = @transform_8, window_bounds = array<i64: 1, 1, 32>}, {transform_indices = @transform_9, window_bounds = array<i64: 1, 32, 2048>}, {transform_indices = @transform_10, window_bounds = array<i64: 1, 1, 2048>}, {transform_indices = @transform_11, window_bounds = array<i64: 1, 2048, 32>}, {transform_indices = @transform_12, window_bounds = array<i64: 1, 1, 32>}, {transform_indices = @transform_13, window_bounds = array<i64: 1, 1, 32>}, {transform_indices = @transform_14, window_bounds = array<i64: 1, 1, 32>}, {transform_indices = @transform_15, window_bounds = array<i64: 1, 1, 32>}, {transform_indices = @transform_16, window_bounds = array<i64: 1, 1, 32>}, {pipeline_mode = #tpu.pipeline_mode<synchronous>, transform_indices = @transform_17, window_bounds = array<i64: 2, 8, 32>}]} {
    %c0_i32 = arith.constant 0 : i32
    %0 = arith.cmpi eq, %arg0, %c0_i32 : i32
    %1 = arith.extui %0 : i1 to i32
    %c0_i32_0 = arith.constant 0 : i32
    %2 = arith.cmpi ne, %1, %c0_i32_0 : i32
    scf.if %2 {
      %c0_188 = arith.constant 0 : index
      %c0_189 = arith.constant 0 : index
      %c0_190 = arith.constant 0 : index
      %269 = vector.load %arg1[%c0_188, %c0_189, %c0_190] : memref<2x8x32xf32, #tpu.memory_space<vmem>>, vector<2x8x32xf32>
      %c0_191 = arith.constant 0 : index
      %c0_192 = arith.constant 0 : index
      %c0_193 = arith.constant 0 : index
      %270 = vector.load %arg19[%c0_191, %c0_192, %c0_193] : memref<2x8x32xf32, #tpu.memory_space<vmem>>, vector<2x8x32xf32>
      tpu.vector_store %arg19[%c0_191, %c0_192, %c0_193], %269 {strides = array<i32>} : memref<2x8x32xf32, #tpu.memory_space<vmem>>, vector<2x8x32xf32>,
    } else {
    }
    %c0 = arith.constant 0 : index
    %c0_1 = arith.constant 0 : index
    %c0_2 = arith.constant 0 : index
    %3 = vector.load %arg19[%c0, %c0_1, %c0_2] : memref<2x8x32xf32, #tpu.memory_space<vmem>>, vector<2x8x32xf32>
    %4 = arith.truncf %3 : vector<2x8x32xf32> to vector<2x8x32xbf16>
    %cst = arith.constant 0.000000e+00 : f32
    %5 = vector.broadcast %cst : f32 to vector<2x8x32xf32>
    %c0_3 = arith.constant 0 : index
    %c0_4 = arith.constant 0 : index
    %c0_5 = arith.constant 0 : index
    %c0_6 = arith.constant 0 : index
    %6 = vector.load %arg2[%c0_3, %c0_4, %c0_5, %c0_6] : memref<1x4x32x8xbf16, #tpu.memory_space<vmem>>, vector<1x1x32x8xbf16>
    %7 = vector.shape_cast %6 : vector<1x1x32x8xbf16> to vector<32x8xbf16>
    "tpu.trace_start"() <{level = 10 : i32, message = "bse,ed->bsd"}> : () -> ()
    %cst_7 = arith.constant dense<0.000000e+00> : vector<2x8x8xf32>
    %8 = tpu.matmul %4, %7, %cst_7 {dimension_numbers = #tpu.dot_dimension_numbers<[2], [0], [0, 1], [1], [0, 0, 0, 1, 1, 1], [], []>} : vector<2x8x32xbf16>, vector<32x8xbf16>, vector<2x8x8xf32> -> vector<2x8x8xf32>
    "tpu.trace_stop"() : () -> ()
    %c0_8 = arith.constant 0 : index
    %c0_9 = arith.constant 0 : index
    %c0_10 = arith.constant 0 : index
    %c0_11 = arith.constant 0 : index
    %9 = vector.load %arg3[%c0_8, %c0_9, %c0_10, %c0_11] : memref<1x4x1x8xf32, #tpu.memory_space<vmem>>, vector<1x1x1x8xf32>
    %10 = vector.shape_cast %9 : vector<1x1x1x8xf32> to vector<1x8xf32>
    %11 = vector.shape_cast %10 : vector<1x8xf32> to vector<1x1x8xf32>
    %12 = vector.broadcast %11 : vector<1x1x8xf32> to vector<2x8x8xf32>
    %13 = arith.addf %8, %12 : vector<2x8x8xf32>
    %c0_12 = arith.constant 0 : index
    %c0_13 = arith.constant 0 : index
    %c0_14 = arith.constant 0 : index
    %c0_15 = arith.constant 0 : index
    %14 = vector.load %arg4[%c0_12, %c0_13, %c0_14, %c0_15] : memref<1x4x32x8xbf16, #tpu.memory_space<vmem>>, vector<1x1x32x8xbf16>
    %15 = vector.shape_cast %14 : vector<1x1x32x8xbf16> to vector<32x8xbf16>
    "tpu.trace_start"() <{level = 10 : i32, message = "bse,ed->bsd"}> : () -> ()
    %cst_16 = arith.constant dense<0.000000e+00> : vector<2x8x8xf32>
    %16 = tpu.matmul %4, %15, %cst_16 {dimension_numbers = #tpu.dot_dimension_numbers<[2], [0], [0, 1], [1], [0, 0, 0, 1, 1, 1], [], []>} : vector<2x8x32xbf16>, vector<32x8xbf16>, vector<2x8x8xf32> -> vector<2x8x8xf32>
    "tpu.trace_stop"() : () -> ()
    %c0_17 = arith.constant 0 : index
    %c0_18 = arith.constant 0 : index
    %c0_19 = arith.constant 0 : index
    %c0_20 = arith.constant 0 : index
    %17 = vector.load %arg5[%c0_17, %c0_18, %c0_19, %c0_20] : memref<1x4x1x8xf32, #tpu.memory_space<vmem>>, vector<1x1x1x8xf32>
    %18 = vector.shape_cast %17 : vector<1x1x1x8xf32> to vector<1x8xf32>
    %19 = vector.shape_cast %18 : vector<1x8xf32> to vector<1x1x8xf32>
    %20 = vector.broadcast %19 : vector<1x1x8xf32> to vector<2x8x8xf32>
    %21 = arith.addf %16, %20 : vector<2x8x8xf32>
    %c0_21 = arith.constant 0 : index
    %c0_22 = arith.constant 0 : index
    %c0_23 = arith.constant 0 : index
    %c0_24 = arith.constant 0 : index
    %22 = vector.load %arg6[%c0_21, %c0_22, %c0_23, %c0_24] : memref<1x4x32x8xbf16, #tpu.memory_space<vmem>>, vector<1x1x32x8xbf16>
    %23 = vector.shape_cast %22 : vector<1x1x32x8xbf16> to vector<32x8xbf16>
    "tpu.trace_start"() <{level = 10 : i32, message = "bse,ed->bsd"}> : () -> ()
    %cst_25 = arith.constant dense<0.000000e+00> : vector<2x8x8xf32>
    %24 = tpu.matmul %4, %23, %cst_25 {dimension_numbers = #tpu.dot_dimension_numbers<[2], [0], [0, 1], [1], [0, 0, 0, 1, 1, 1], [], []>} : vector<2x8x32xbf16>, vector<32x8xbf16>, vector<2x8x8xf32> -> vector<2x8x8xf32>
    "tpu.trace_stop"() : () -> ()
    %c0_26 = arith.constant 0 : index
    %c0_27 = arith.constant 0 : index
    %c0_28 = arith.constant 0 : index
    %c0_29 = arith.constant 0 : index
    %25 = vector.load %arg7[%c0_26, %c0_27, %c0_28, %c0_29] : memref<1x4x1x8xf32, #tpu.memory_space<vmem>>, vector<1x1x1x8xf32>
    %26 = vector.shape_cast %25 : vector<1x1x1x8xf32> to vector<1x8xf32>
    %27 = vector.shape_cast %26 : vector<1x8xf32> to vector<1x1x8xf32>
    %28 = vector.broadcast %27 : vector<1x1x8xf32> to vector<2x8x8xf32>
    %29 = arith.addf %24, %28 : vector<2x8x8xf32>
    %30 = arith.truncf %13 : vector<2x8x8xf32> to vector<2x8x8xbf16>
    %31 = arith.truncf %21 : vector<2x8x8xf32> to vector<2x8x8xbf16>
    %32 = arith.truncf %29 : vector<2x8x8xf32> to vector<2x8x8xbf16>
    "tpu.trace_start"() <{level = 10 : i32, message = "bqd,bkd->bqk"}> : () -> ()
    %cst_30 = arith.constant dense<0.000000e+00> : vector<2x8x8xf32>
    %33 = tpu.matmul %30, %31, %cst_30 {dimension_numbers = #tpu.dot_dimension_numbers<[2], [2], [1], [1], [0, 0, 0, 1, 1, 1], [0], [0]>} : vector<2x8x8xbf16>, vector<2x8x8xbf16>, vector<2x8x8xf32> -> vector<2x8x8xf32>
    "tpu.trace_stop"() : () -> ()
    %cst_31 = arith.constant dense<0xFF800000> : vector<2x8xf32>
    %34 = vector.multi_reduction <maximumf>, %33, %cst_31 [2] : vector<2x8x8xf32> to vector<2x8xf32>
    %35 = vector.shape_cast %34 : vector<2x8xf32> to vector<2x8x1xf32>
    %36 = vector.broadcast %35 : vector<2x8x1xf32> to vector<2x8x8xf32>
    %37 = arith.subf %33, %36 : vector<2x8x8xf32>
    %38 = math.exp %37 : vector<2x8x8xf32>
    %cst_32 = arith.constant dense<0.000000e+00> : vector<2x8xf32>
    %39 = vector.multi_reduction <add>, %38, %cst_32 [2] : vector<2x8x8xf32> to vector<2x8xf32>
    %40 = vector.shape_cast %39 : vector<2x8xf32> to vector<2x8x1xf32>
    %41 = tpu.reciprocal %40 {approx = true} : vector<2x8x1xf32> -> vector<2x8x1xf32>
    %42 = vector.broadcast %41 : vector<2x8x1xf32> to vector<2x8x8xf32>
    %43 = arith.mulf %38, %42 : vector<2x8x8xf32>
    %44 = arith.truncf %43 : vector<2x8x8xf32> to vector<2x8x8xbf16>
    "tpu.trace_start"() <{level = 10 : i32, message = "bqk,bkd->bqd"}> : () -> ()
    %cst_33 = arith.constant dense<0.000000e+00> : vector<2x8x8xf32>
    %45 = tpu.matmul %44, %32, %cst_33 {dimension_numbers = #tpu.dot_dimension_numbers<[2], [1], [1], [2], [0, 0, 0, 1, 1, 2], [0], [0]>} : vector<2x8x8xbf16>, vector<2x8x8xbf16>, vector<2x8x8xf32> -> vector<2x8x8xf32>
    "tpu.trace_stop"() : () -> ()
    %46 = arith.truncf %45 : vector<2x8x8xf32> to vector<2x8x8xbf16>
    %c0_34 = arith.constant 0 : index
    %c0_35 = arith.constant 0 : index
    %c0_36 = arith.constant 0 : index
    %c0_37 = arith.constant 0 : index
    %47 = vector.load %arg8[%c0_34, %c0_35, %c0_36, %c0_37] : memref<1x4x8x32xbf16, #tpu.memory_space<vmem>>, vector<1x1x8x32xbf16>
    %48 = vector.shape_cast %47 : vector<1x1x8x32xbf16> to vector<8x32xbf16>
    "tpu.trace_start"() <{level = 10 : i32, message = "bsd,de->bse"}> : () -> ()
    %cst_38 = arith.constant dense<0.000000e+00> : vector<2x8x32xf32>
    %49 = tpu.matmul %46, %48, %cst_38 {dimension_numbers = #tpu.dot_dimension_numbers<[2], [0], [0, 1], [1], [0, 0, 0, 1, 1, 1], [], []>} : vector<2x8x8xbf16>, vector<8x32xbf16>, vector<2x8x32xf32> -> vector<2x8x32xf32>
    "tpu.trace_stop"() : () -> ()
    %50 = arith.addf %5, %49 : vector<2x8x32xf32>
    %c0_39 = arith.constant 0 : index
    %c1 = arith.constant 1 : index
    %c0_40 = arith.constant 0 : index
    %c0_41 = arith.constant 0 : index
    %51 = vector.load %arg2[%c0_39, %c1, %c0_40, %c0_41] : memref<1x4x32x8xbf16, #tpu.memory_space<vmem>>, vector<1x1x32x8xbf16>
    %52 = vector.shape_cast %51 : vector<1x1x32x8xbf16> to vector<32x8xbf16>
    "tpu.trace_start"() <{level = 10 : i32, message = "bse,ed->bsd"}> : () -> ()
    %cst_42 = arith.constant dense<0.000000e+00> : vector<2x8x8xf32>
    %53 = tpu.matmul %4, %52, %cst_42 {dimension_numbers = #tpu.dot_dimension_numbers<[2], [0], [0, 1], [1], [0, 0, 0, 1, 1, 1], [], []>} : vector<2x8x32xbf16>, vector<32x8xbf16>, vector<2x8x8xf32> -> vector<2x8x8xf32>
    "tpu.trace_stop"() : () -> ()
    %c0_43 = arith.constant 0 : index
    %c1_44 = arith.constant 1 : index
    %c0_45 = arith.constant 0 : index
    %c0_46 = arith.constant 0 : index
    %54 = vector.load %arg3[%c0_43, %c1_44, %c0_45, %c0_46] : memref<1x4x1x8xf32, #tpu.memory_space<vmem>>, vector<1x1x1x8xf32>
    %55 = vector.shape_cast %54 : vector<1x1x1x8xf32> to vector<1x8xf32>
    %56 = vector.shape_cast %55 : vector<1x8xf32> to vector<1x1x8xf32>
    %57 = vector.broadcast %56 : vector<1x1x8xf32> to vector<2x8x8xf32>
    %58 = arith.addf %53, %57 : vector<2x8x8xf32>
    %c0_47 = arith.constant 0 : index
    %c1_48 = arith.constant 1 : index
    %c0_49 = arith.constant 0 : index
    %c0_50 = arith.constant 0 : index
    %59 = vector.load %arg4[%c0_47, %c1_48, %c0_49, %c0_50] : memref<1x4x32x8xbf16, #tpu.memory_space<vmem>>, vector<1x1x32x8xbf16>
    %60 = vector.shape_cast %59 : vector<1x1x32x8xbf16> to vector<32x8xbf16>
    "tpu.trace_start"() <{level = 10 : i32, message = "bse,ed->bsd"}> : () -> ()
    %cst_51 = arith.constant dense<0.000000e+00> : vector<2x8x8xf32>
    %61 = tpu.matmul %4, %60, %cst_51 {dimension_numbers = #tpu.dot_dimension_numbers<[2], [0], [0, 1], [1], [0, 0, 0, 1, 1, 1], [], []>} : vector<2x8x32xbf16>, vector<32x8xbf16>, vector<2x8x8xf32> -> vector<2x8x8xf32>
    "tpu.trace_stop"() : () -> ()
    %c0_52 = arith.constant 0 : index
    %c1_53 = arith.constant 1 : index
    %c0_54 = arith.constant 0 : index
    %c0_55 = arith.constant 0 : index
    %62 = vector.load %arg5[%c0_52, %c1_53, %c0_54, %c0_55] : memref<1x4x1x8xf32, #tpu.memory_space<vmem>>, vector<1x1x1x8xf32>
    %63 = vector.shape_cast %62 : vector<1x1x1x8xf32> to vector<1x8xf32>
    %64 = vector.shape_cast %63 : vector<1x8xf32> to vector<1x1x8xf32>
    %65 = vector.broadcast %64 : vector<1x1x8xf32> to vector<2x8x8xf32>
    %66 = arith.addf %61, %65 : vector<2x8x8xf32>
    %c0_56 = arith.constant 0 : index
    %c1_57 = arith.constant 1 : index
    %c0_58 = arith.constant 0 : index
    %c0_59 = arith.constant 0 : index
    %67 = vector.load %arg6[%c0_56, %c1_57, %c0_58, %c0_59] : memref<1x4x32x8xbf16, #tpu.memory_space<vmem>>, vector<1x1x32x8xbf16>
    %68 = vector.shape_cast %67 : vector<1x1x32x8xbf16> to vector<32x8xbf16>
    "tpu.trace_start"() <{level = 10 : i32, message = "bse,ed->bsd"}> : () -> ()
    %cst_60 = arith.constant dense<0.000000e+00> : vector<2x8x8xf32>
    %69 = tpu.matmul %4, %68, %cst_60 {dimension_numbers = #tpu.dot_dimension_numbers<[2], [0], [0, 1], [1], [0, 0, 0, 1, 1, 1], [], []>} : vector<2x8x32xbf16>, vector<32x8xbf16>, vector<2x8x8xf32> -> vector<2x8x8xf32>
    "tpu.trace_stop"() : () -> ()
    %c0_61 = arith.constant 0 : index
    %c1_62 = arith.constant 1 : index
    %c0_63 = arith.constant 0 : index
    %c0_64 = arith.constant 0 : index
    %70 = vector.load %arg7[%c0_61, %c1_62, %c0_63, %c0_64] : memref<1x4x1x8xf32, #tpu.memory_space<vmem>>, vector<1x1x1x8xf32>
    %71 = vector.shape_cast %70 : vector<1x1x1x8xf32> to vector<1x8xf32>
    %72 = vector.shape_cast %71 : vector<1x8xf32> to vector<1x1x8xf32>
    %73 = vector.broadcast %72 : vector<1x1x8xf32> to vector<2x8x8xf32>
    %74 = arith.addf %69, %73 : vector<2x8x8xf32>
    %75 = arith.truncf %58 : vector<2x8x8xf32> to vector<2x8x8xbf16>
    %76 = arith.truncf %66 : vector<2x8x8xf32> to vector<2x8x8xbf16>
    %77 = arith.truncf %74 : vector<2x8x8xf32> to vector<2x8x8xbf16>
    "tpu.trace_start"() <{level = 10 : i32, message = "bqd,bkd->bqk"}> : () -> ()
    %cst_65 = arith.constant dense<0.000000e+00> : vector<2x8x8xf32>
    %78 = tpu.matmul %75, %76, %cst_65 {dimension_numbers = #tpu.dot_dimension_numbers<[2], [2], [1], [1], [0, 0, 0, 1, 1, 1], [0], [0]>} : vector<2x8x8xbf16>, vector<2x8x8xbf16>, vector<2x8x8xf32> -> vector<2x8x8xf32>
    "tpu.trace_stop"() : () -> ()
    %cst_66 = arith.constant dense<0xFF800000> : vector<2x8xf32>
    %79 = vector.multi_reduction <maximumf>, %78, %cst_66 [2] : vector<2x8x8xf32> to vector<2x8xf32>
    %80 = vector.shape_cast %79 : vector<2x8xf32> to vector<2x8x1xf32>
    %81 = vector.broadcast %80 : vector<2x8x1xf32> to vector<2x8x8xf32>
    %82 = arith.subf %78, %81 : vector<2x8x8xf32>
    %83 = math.exp %82 : vector<2x8x8xf32>
    %cst_67 = arith.constant dense<0.000000e+00> : vector<2x8xf32>
    %84 = vector.multi_reduction <add>, %83, %cst_67 [2] : vector<2x8x8xf32> to vector<2x8xf32>
    %85 = vector.shape_cast %84 : vector<2x8xf32> to vector<2x8x1xf32>
    %86 = tpu.reciprocal %85 {approx = true} : vector<2x8x1xf32> -> vector<2x8x1xf32>
    %87 = vector.broadcast %86 : vector<2x8x1xf32> to vector<2x8x8xf32>
    %88 = arith.mulf %83, %87 : vector<2x8x8xf32>
    %89 = arith.truncf %88 : vector<2x8x8xf32> to vector<2x8x8xbf16>
    "tpu.trace_start"() <{level = 10 : i32, message = "bqk,bkd->bqd"}> : () -> ()
    %cst_68 = arith.constant dense<0.000000e+00> : vector<2x8x8xf32>
    %90 = tpu.matmul %89, %77, %cst_68 {dimension_numbers = #tpu.dot_dimension_numbers<[2], [1], [1], [2], [0, 0, 0, 1, 1, 2], [0], [0]>} : vector<2x8x8xbf16>, vector<2x8x8xbf16>, vector<2x8x8xf32> -> vector<2x8x8xf32>
    "tpu.trace_stop"() : () -> ()
    %91 = arith.truncf %90 : vector<2x8x8xf32> to vector<2x8x8xbf16>
    %c0_69 = arith.constant 0 : index
    %c1_70 = arith.constant 1 : index
    %c0_71 = arith.constant 0 : index
    %c0_72 = arith.constant 0 : index
    %92 = vector.load %arg8[%c0_69, %c1_70, %c0_71, %c0_72] : memref<1x4x8x32xbf16, #tpu.memory_space<vmem>>, vector<1x1x8x32xbf16>
    %93 = vector.shape_cast %92 : vector<1x1x8x32xbf16> to vector<8x32xbf16>
    "tpu.trace_start"() <{level = 10 : i32, message = "bsd,de->bse"}> : () -> ()
    %cst_73 = arith.constant dense<0.000000e+00> : vector<2x8x32xf32>
    %94 = tpu.matmul %91, %93, %cst_73 {dimension_numbers = #tpu.dot_dimension_numbers<[2], [0], [0, 1], [1], [0, 0, 0, 1, 1, 1], [], []>} : vector<2x8x8xbf16>, vector<8x32xbf16>, vector<2x8x32xf32> -> vector<2x8x32xf32>
    "tpu.trace_stop"() : () -> ()
    %95 = arith.addf %50, %94 : vector<2x8x32xf32>
    %c0_74 = arith.constant 0 : index
    %c2 = arith.constant 2 : index
    %c0_75 = arith.constant 0 : index
    %c0_76 = arith.constant 0 : index
    %96 = vector.load %arg2[%c0_74, %c2, %c0_75, %c0_76] : memref<1x4x32x8xbf16, #tpu.memory_space<vmem>>, vector<1x1x32x8xbf16>
    %97 = vector.shape_cast %96 : vector<1x1x32x8xbf16> to vector<32x8xbf16>
    "tpu.trace_start"() <{level = 10 : i32, message = "bse,ed->bsd"}> : () -> ()
    %cst_77 = arith.constant dense<0.000000e+00> : vector<2x8x8xf32>
    %98 = tpu.matmul %4, %97, %cst_77 {dimension_numbers = #tpu.dot_dimension_numbers<[2], [0], [0, 1], [1], [0, 0, 0, 1, 1, 1], [], []>} : vector<2x8x32xbf16>, vector<32x8xbf16>, vector<2x8x8xf32> -> vector<2x8x8xf32>
    "tpu.trace_stop"() : () -> ()
    %c0_78 = arith.constant 0 : index
    %c2_79 = arith.constant 2 : index
    %c0_80 = arith.constant 0 : index
    %c0_81 = arith.constant 0 : index
    %99 = vector.load %arg3[%c0_78, %c2_79, %c0_80, %c0_81] : memref<1x4x1x8xf32, #tpu.memory_space<vmem>>, vector<1x1x1x8xf32>
    %100 = vector.shape_cast %99 : vector<1x1x1x8xf32> to vector<1x8xf32>
    %101 = vector.shape_cast %100 : vector<1x8xf32> to vector<1x1x8xf32>
    %102 = vector.broadcast %101 : vector<1x1x8xf32> to vector<2x8x8xf32>
    %103 = arith.addf %98, %102 : vector<2x8x8xf32>
    %c0_82 = arith.constant 0 : index
    %c2_83 = arith.constant 2 : index
    %c0_84 = arith.constant 0 : index
    %c0_85 = arith.constant 0 : index
    %104 = vector.load %arg4[%c0_82, %c2_83, %c0_84, %c0_85] : memref<1x4x32x8xbf16, #tpu.memory_space<vmem>>, vector<1x1x32x8xbf16>
    %105 = vector.shape_cast %104 : vector<1x1x32x8xbf16> to vector<32x8xbf16>
    "tpu.trace_start"() <{level = 10 : i32, message = "bse,ed->bsd"}> : () -> ()
    %cst_86 = arith.constant dense<0.000000e+00> : vector<2x8x8xf32>
    %106 = tpu.matmul %4, %105, %cst_86 {dimension_numbers = #tpu.dot_dimension_numbers<[2], [0], [0, 1], [1], [0, 0, 0, 1, 1, 1], [], []>} : vector<2x8x32xbf16>, vector<32x8xbf16>, vector<2x8x8xf32> -> vector<2x8x8xf32>
    "tpu.trace_stop"() : () -> ()
    %c0_87 = arith.constant 0 : index
    %c2_88 = arith.constant 2 : index
    %c0_89 = arith.constant 0 : index
    %c0_90 = arith.constant 0 : index
    %107 = vector.load %arg5[%c0_87, %c2_88, %c0_89, %c0_90] : memref<1x4x1x8xf32, #tpu.memory_space<vmem>>, vector<1x1x1x8xf32>
    %108 = vector.shape_cast %107 : vector<1x1x1x8xf32> to vector<1x8xf32>
    %109 = vector.shape_cast %108 : vector<1x8xf32> to vector<1x1x8xf32>
    %110 = vector.broadcast %109 : vector<1x1x8xf32> to vector<2x8x8xf32>
    %111 = arith.addf %106, %110 : vector<2x8x8xf32>
    %c0_91 = arith.constant 0 : index
    %c2_92 = arith.constant 2 : index
    %c0_93 = arith.constant 0 : index
    %c0_94 = arith.constant 0 : index
    %112 = vector.load %arg6[%c0_91, %c2_92, %c0_93, %c0_94] : memref<1x4x32x8xbf16, #tpu.memory_space<vmem>>, vector<1x1x32x8xbf16>
    %113 = vector.shape_cast %112 : vector<1x1x32x8xbf16> to vector<32x8xbf16>
    "tpu.trace_start"() <{level = 10 : i32, message = "bse,ed->bsd"}> : () -> ()
    %cst_95 = arith.constant dense<0.000000e+00> : vector<2x8x8xf32>
    %114 = tpu.matmul %4, %113, %cst_95 {dimension_numbers = #tpu.dot_dimension_numbers<[2], [0], [0, 1], [1], [0, 0, 0, 1, 1, 1], [], []>} : vector<2x8x32xbf16>, vector<32x8xbf16>, vector<2x8x8xf32> -> vector<2x8x8xf32>
    "tpu.trace_stop"() : () -> ()
    %c0_96 = arith.constant 0 : index
    %c2_97 = arith.constant 2 : index
    %c0_98 = arith.constant 0 : index
    %c0_99 = arith.constant 0 : index
    %115 = vector.load %arg7[%c0_96, %c2_97, %c0_98, %c0_99] : memref<1x4x1x8xf32, #tpu.memory_space<vmem>>, vector<1x1x1x8xf32>
    %116 = vector.shape_cast %115 : vector<1x1x1x8xf32> to vector<1x8xf32>
    %117 = vector.shape_cast %116 : vector<1x8xf32> to vector<1x1x8xf32>
    %118 = vector.broadcast %117 : vector<1x1x8xf32> to vector<2x8x8xf32>
    %119 = arith.addf %114, %118 : vector<2x8x8xf32>
    %120 = arith.truncf %103 : vector<2x8x8xf32> to vector<2x8x8xbf16>
    %121 = arith.truncf %111 : vector<2x8x8xf32> to vector<2x8x8xbf16>
    %122 = arith.truncf %119 : vector<2x8x8xf32> to vector<2x8x8xbf16>
    "tpu.trace_start"() <{level = 10 : i32, message = "bqd,bkd->bqk"}> : () -> ()
    %cst_100 = arith.constant dense<0.000000e+00> : vector<2x8x8xf32>
    %123 = tpu.matmul %120, %121, %cst_100 {dimension_numbers = #tpu.dot_dimension_numbers<[2], [2], [1], [1], [0, 0, 0, 1, 1, 1], [0], [0]>} : vector<2x8x8xbf16>, vector<2x8x8xbf16>, vector<2x8x8xf32> -> vector<2x8x8xf32>
    "tpu.trace_stop"() : () -> ()
    %cst_101 = arith.constant dense<0xFF800000> : vector<2x8xf32>
    %124 = vector.multi_reduction <maximumf>, %123, %cst_101 [2] : vector<2x8x8xf32> to vector<2x8xf32>
    %125 = vector.shape_cast %124 : vector<2x8xf32> to vector<2x8x1xf32>
    %126 = vector.broadcast %125 : vector<2x8x1xf32> to vector<2x8x8xf32>
    %127 = arith.subf %123, %126 : vector<2x8x8xf32>
    %128 = math.exp %127 : vector<2x8x8xf32>
    %cst_102 = arith.constant dense<0.000000e+00> : vector<2x8xf32>
    %129 = vector.multi_reduction <add>, %128, %cst_102 [2] : vector<2x8x8xf32> to vector<2x8xf32>
    %130 = vector.shape_cast %129 : vector<2x8xf32> to vector<2x8x1xf32>
    %131 = tpu.reciprocal %130 {approx = true} : vector<2x8x1xf32> -> vector<2x8x1xf32>
    %132 = vector.broadcast %131 : vector<2x8x1xf32> to vector<2x8x8xf32>
    %133 = arith.mulf %128, %132 : vector<2x8x8xf32>
    %134 = arith.truncf %133 : vector<2x8x8xf32> to vector<2x8x8xbf16>
    "tpu.trace_start"() <{level = 10 : i32, message = "bqk,bkd->bqd"}> : () -> ()
    %cst_103 = arith.constant dense<0.000000e+00> : vector<2x8x8xf32>
    %135 = tpu.matmul %134, %122, %cst_103 {dimension_numbers = #tpu.dot_dimension_numbers<[2], [1], [1], [2], [0, 0, 0, 1, 1, 2], [0], [0]>} : vector<2x8x8xbf16>, vector<2x8x8xbf16>, vector<2x8x8xf32> -> vector<2x8x8xf32>
    "tpu.trace_stop"() : () -> ()
    %136 = arith.truncf %135 : vector<2x8x8xf32> to vector<2x8x8xbf16>
    %c0_104 = arith.constant 0 : index
    %c2_105 = arith.constant 2 : index
    %c0_106 = arith.constant 0 : index
    %c0_107 = arith.constant 0 : index
    %137 = vector.load %arg8[%c0_104, %c2_105, %c0_106, %c0_107] : memref<1x4x8x32xbf16, #tpu.memory_space<vmem>>, vector<1x1x8x32xbf16>
    %138 = vector.shape_cast %137 : vector<1x1x8x32xbf16> to vector<8x32xbf16>
    "tpu.trace_start"() <{level = 10 : i32, message = "bsd,de->bse"}> : () -> ()
    %cst_108 = arith.constant dense<0.000000e+00> : vector<2x8x32xf32>
    %139 = tpu.matmul %136, %138, %cst_108 {dimension_numbers = #tpu.dot_dimension_numbers<[2], [0], [0, 1], [1], [0, 0, 0, 1, 1, 1], [], []>} : vector<2x8x8xbf16>, vector<8x32xbf16>, vector<2x8x32xf32> -> vector<2x8x32xf32>
    "tpu.trace_stop"() : () -> ()
    %140 = arith.addf %95, %139 : vector<2x8x32xf32>
    %c0_109 = arith.constant 0 : index
    %c3 = arith.constant 3 : index
    %c0_110 = arith.constant 0 : index
    %c0_111 = arith.constant 0 : index
    %141 = vector.load %arg2[%c0_109, %c3, %c0_110, %c0_111] : memref<1x4x32x8xbf16, #tpu.memory_space<vmem>>, vector<1x1x32x8xbf16>
    %142 = vector.shape_cast %141 : vector<1x1x32x8xbf16> to vector<32x8xbf16>
    "tpu.trace_start"() <{level = 10 : i32, message = "bse,ed->bsd"}> : () -> ()
    %cst_112 = arith.constant dense<0.000000e+00> : vector<2x8x8xf32>
    %143 = tpu.matmul %4, %142, %cst_112 {dimension_numbers = #tpu.dot_dimension_numbers<[2], [0], [0, 1], [1], [0, 0, 0, 1, 1, 1], [], []>} : vector<2x8x32xbf16>, vector<32x8xbf16>, vector<2x8x8xf32> -> vector<2x8x8xf32>
    "tpu.trace_stop"() : () -> ()
    %c0_113 = arith.constant 0 : index
    %c3_114 = arith.constant 3 : index
    %c0_115 = arith.constant 0 : index
    %c0_116 = arith.constant 0 : index
    %144 = vector.load %arg3[%c0_113, %c3_114, %c0_115, %c0_116] : memref<1x4x1x8xf32, #tpu.memory_space<vmem>>, vector<1x1x1x8xf32>
    %145 = vector.shape_cast %144 : vector<1x1x1x8xf32> to vector<1x8xf32>
    %146 = vector.shape_cast %145 : vector<1x8xf32> to vector<1x1x8xf32>
    %147 = vector.broadcast %146 : vector<1x1x8xf32> to vector<2x8x8xf32>
    %148 = arith.addf %143, %147 : vector<2x8x8xf32>
    %c0_117 = arith.constant 0 : index
    %c3_118 = arith.constant 3 : index
    %c0_119 = arith.constant 0 : index
    %c0_120 = arith.constant 0 : index
    %149 = vector.load %arg4[%c0_117, %c3_118, %c0_119, %c0_120] : memref<1x4x32x8xbf16, #tpu.memory_space<vmem>>, vector<1x1x32x8xbf16>
    %150 = vector.shape_cast %149 : vector<1x1x32x8xbf16> to vector<32x8xbf16>
    "tpu.trace_start"() <{level = 10 : i32, message = "bse,ed->bsd"}> : () -> ()
    %cst_121 = arith.constant dense<0.000000e+00> : vector<2x8x8xf32>
    %151 = tpu.matmul %4, %150, %cst_121 {dimension_numbers = #tpu.dot_dimension_numbers<[2], [0], [0, 1], [1], [0, 0, 0, 1, 1, 1], [], []>} : vector<2x8x32xbf16>, vector<32x8xbf16>, vector<2x8x8xf32> -> vector<2x8x8xf32>
    "tpu.trace_stop"() : () -> ()
    %c0_122 = arith.constant 0 : index
    %c3_123 = arith.constant 3 : index
    %c0_124 = arith.constant 0 : index
    %c0_125 = arith.constant 0 : index
    %152 = vector.load %arg5[%c0_122, %c3_123, %c0_124, %c0_125] : memref<1x4x1x8xf32, #tpu.memory_space<vmem>>, vector<1x1x1x8xf32>
    %153 = vector.shape_cast %152 : vector<1x1x1x8xf32> to vector<1x8xf32>
    %154 = vector.shape_cast %153 : vector<1x8xf32> to vector<1x1x8xf32>
    %155 = vector.broadcast %154 : vector<1x1x8xf32> to vector<2x8x8xf32>
    %156 = arith.addf %151, %155 : vector<2x8x8xf32>
    %c0_126 = arith.constant 0 : index
    %c3_127 = arith.constant 3 : index
    %c0_128 = arith.constant 0 : index
    %c0_129 = arith.constant 0 : index
    %157 = vector.load %arg6[%c0_126, %c3_127, %c0_128, %c0_129] : memref<1x4x32x8xbf16, #tpu.memory_space<vmem>>, vector<1x1x32x8xbf16>
    %158 = vector.shape_cast %157 : vector<1x1x32x8xbf16> to vector<32x8xbf16>
    "tpu.trace_start"() <{level = 10 : i32, message = "bse,ed->bsd"}> : () -> ()
    %cst_130 = arith.constant dense<0.000000e+00> : vector<2x8x8xf32>
    %159 = tpu.matmul %4, %158, %cst_130 {dimension_numbers = #tpu.dot_dimension_numbers<[2], [0], [0, 1], [1], [0, 0, 0, 1, 1, 1], [], []>} : vector<2x8x32xbf16>, vector<32x8xbf16>, vector<2x8x8xf32> -> vector<2x8x8xf32>
    "tpu.trace_stop"() : () -> ()
    %c0_131 = arith.constant 0 : index
    %c3_132 = arith.constant 3 : index
    %c0_133 = arith.constant 0 : index
    %c0_134 = arith.constant 0 : index
    %160 = vector.load %arg7[%c0_131, %c3_132, %c0_133, %c0_134] : memref<1x4x1x8xf32, #tpu.memory_space<vmem>>, vector<1x1x1x8xf32>
    %161 = vector.shape_cast %160 : vector<1x1x1x8xf32> to vector<1x8xf32>
    %162 = vector.shape_cast %161 : vector<1x8xf32> to vector<1x1x8xf32>
    %163 = vector.broadcast %162 : vector<1x1x8xf32> to vector<2x8x8xf32>
    %164 = arith.addf %159, %163 : vector<2x8x8xf32>
    %165 = arith.truncf %148 : vector<2x8x8xf32> to vector<2x8x8xbf16>
    %166 = arith.truncf %156 : vector<2x8x8xf32> to vector<2x8x8xbf16>
    %167 = arith.truncf %164 : vector<2x8x8xf32> to vector<2x8x8xbf16>
    "tpu.trace_start"() <{level = 10 : i32, message = "bqd,bkd->bqk"}> : () -> ()
    %cst_135 = arith.constant dense<0.000000e+00> : vector<2x8x8xf32>
    %168 = tpu.matmul %165, %166, %cst_135 {dimension_numbers = #tpu.dot_dimension_numbers<[2], [2], [1], [1], [0, 0, 0, 1, 1, 1], [0], [0]>} : vector<2x8x8xbf16>, vector<2x8x8xbf16>, vector<2x8x8xf32> -> vector<2x8x8xf32>
    "tpu.trace_stop"() : () -> ()
    %cst_136 = arith.constant dense<0xFF800000> : vector<2x8xf32>
    %169 = vector.multi_reduction <maximumf>, %168, %cst_136 [2] : vector<2x8x8xf32> to vector<2x8xf32>
    %170 = vector.shape_cast %169 : vector<2x8xf32> to vector<2x8x1xf32>
    %171 = vector.broadcast %170 : vector<2x8x1xf32> to vector<2x8x8xf32>
    %172 = arith.subf %168, %171 : vector<2x8x8xf32>
    %173 = math.exp %172 : vector<2x8x8xf32>
    %cst_137 = arith.constant dense<0.000000e+00> : vector<2x8xf32>
    %174 = vector.multi_reduction <add>, %173, %cst_137 [2] : vector<2x8x8xf32> to vector<2x8xf32>
    %175 = vector.shape_cast %174 : vector<2x8xf32> to vector<2x8x1xf32>
    %176 = tpu.reciprocal %175 {approx = true} : vector<2x8x1xf32> -> vector<2x8x1xf32>
    %177 = vector.broadcast %176 : vector<2x8x1xf32> to vector<2x8x8xf32>
    %178 = arith.mulf %173, %177 : vector<2x8x8xf32>
    %179 = arith.truncf %178 : vector<2x8x8xf32> to vector<2x8x8xbf16>
    "tpu.trace_start"() <{level = 10 : i32, message = "bqk,bkd->bqd"}> : () -> ()
    %cst_138 = arith.constant dense<0.000000e+00> : vector<2x8x8xf32>
    %180 = tpu.matmul %179, %167, %cst_138 {dimension_numbers = #tpu.dot_dimension_numbers<[2], [1], [1], [2], [0, 0, 0, 1, 1, 2], [0], [0]>} : vector<2x8x8xbf16>, vector<2x8x8xbf16>, vector<2x8x8xf32> -> vector<2x8x8xf32>
    "tpu.trace_stop"() : () -> ()
    %181 = arith.truncf %180 : vector<2x8x8xf32> to vector<2x8x8xbf16>
    %c0_139 = arith.constant 0 : index
    %c3_140 = arith.constant 3 : index
    %c0_141 = arith.constant 0 : index
    %c0_142 = arith.constant 0 : index
    %182 = vector.load %arg8[%c0_139, %c3_140, %c0_141, %c0_142] : memref<1x4x8x32xbf16, #tpu.memory_space<vmem>>, vector<1x1x8x32xbf16>
    %183 = vector.shape_cast %182 : vector<1x1x8x32xbf16> to vector<8x32xbf16>
    "tpu.trace_start"() <{level = 10 : i32, message = "bsd,de->bse"}> : () -> ()
    %cst_143 = arith.constant dense<0.000000e+00> : vector<2x8x32xf32>
    %184 = tpu.matmul %181, %183, %cst_143 {dimension_numbers = #tpu.dot_dimension_numbers<[2], [0], [0, 1], [1], [0, 0, 0, 1, 1, 1], [], []>} : vector<2x8x8xbf16>, vector<8x32xbf16>, vector<2x8x32xf32> -> vector<2x8x32xf32>
    "tpu.trace_stop"() : () -> ()
    %185 = arith.addf %140, %184 : vector<2x8x32xf32>
    %c0_144 = arith.constant 0 : index
    %c0_145 = arith.constant 0 : index
    %c0_146 = arith.constant 0 : index
    %186 = vector.load %arg9[%c0_144, %c0_145, %c0_146] : memref<1x1x32xf32, #tpu.memory_space<vmem>>, vector<1x1x32xf32>
    %187 = vector.shape_cast %186 : vector<1x1x32xf32> to vector<1x32xf32>
    %188 = vector.shape_cast %187 : vector<1x32xf32> to vector<1x1x32xf32>
    %189 = vector.broadcast %188 : vector<1x1x32xf32> to vector<2x8x32xf32>
    %190 = arith.addf %185, %189 : vector<2x8x32xf32>
    %191 = arith.addf %3, %190 : vector<2x8x32xf32>
    %cst_147 = arith.constant dense<0.000000e+00> : vector<2x8xf32>
    %192 = vector.multi_reduction <add>, %191, %cst_147 [2] : vector<2x8x32xf32> to vector<2x8xf32>
    %193 = vector.shape_cast %192 : vector<2x8xf32> to vector<2x8x1xf32>
    %cst_148 = arith.constant 3.200000e+01 : f32
    %194 = vector.broadcast %cst_148 : f32 to vector<2x8x1xf32>
    %195 = arith.divf %193, %194 : vector<2x8x1xf32>
    %196 = vector.broadcast %195 : vector<2x8x1xf32> to vector<2x8x32xf32>
    %197 = arith.subf %191, %196 : vector<2x8x32xf32>
    %198 = arith.mulf %197, %197 : vector<2x8x32xf32>
    %cst_149 = arith.constant dense<0.000000e+00> : vector<2x8xf32>
    %199 = vector.multi_reduction <add>, %198, %cst_149 [2] : vector<2x8x32xf32> to vector<2x8xf32>
    %200 = vector.shape_cast %199 : vector<2x8xf32> to vector<2x8x1xf32>
    %cst_150 = arith.constant 3.200000e+01 : f32
    %201 = vector.broadcast %cst_150 : f32 to vector<2x8x1xf32>
    %202 = arith.divf %200, %201 : vector<2x8x1xf32>
    %cst_151 = arith.constant 9.99999974E-6 : f32
    %203 = vector.broadcast %cst_151 : f32 to vector<2x8x1xf32>
    %204 = arith.addf %202, %203 : vector<2x8x1xf32>
    %205 = math.rsqrt %204 : vector<2x8x1xf32>
    %206 = vector.broadcast %205 : vector<2x8x1xf32> to vector<2x8x32xf32>
    %207 = arith.mulf %197, %206 : vector<2x8x32xf32>
    %c0_152 = arith.constant 0 : index
    %c0_153 = arith.constant 0 : index
    %c0_154 = arith.constant 0 : index
    %208 = vector.load %arg14[%c0_152, %c0_153, %c0_154] : memref<1x1x32xf32, #tpu.memory_space<vmem>>, vector<1x1x32xf32>
    %209 = vector.shape_cast %208 : vector<1x1x32xf32> to vector<1x32xf32>
    %210 = vector.shape_cast %209 : vector<1x32xf32> to vector<1x1x32xf32>
    %211 = vector.broadcast %210 : vector<1x1x32xf32> to vector<2x8x32xf32>
    %212 = arith.mulf %207, %211 : vector<2x8x32xf32>
    %c0_155 = arith.constant 0 : index
    %c0_156 = arith.constant 0 : index
    %c0_157 = arith.constant 0 : index
    %213 = vector.load %arg15[%c0_155, %c0_156, %c0_157] : memref<1x1x32xf32, #tpu.memory_space<vmem>>, vector<1x1x32xf32>
    %214 = vector.shape_cast %213 : vector<1x1x32xf32> to vector<1x32xf32>
    %215 = vector.shape_cast %214 : vector<1x32xf32> to vector<1x1x32xf32>
    %216 = vector.broadcast %215 : vector<1x1x32xf32> to vector<2x8x32xf32>
    %217 = arith.addf %212, %216 : vector<2x8x32xf32>
    %218 = arith.truncf %217 : vector<2x8x32xf32> to vector<2x8x32xbf16>
    %c0_158 = arith.constant 0 : index
    %c0_159 = arith.constant 0 : index
    %c0_160 = arith.constant 0 : index
    %219 = vector.load %arg10[%c0_158, %c0_159, %c0_160] : memref<1x32x2048xbf16, #tpu.memory_space<vmem>>, vector<1x32x2048xbf16>
    %220 = vector.shape_cast %219 : vector<1x32x2048xbf16> to vector<32x2048xbf16>
    "tpu.trace_start"() <{level = 10 : i32, message = "bse,ef->bsf"}> : () -> ()
    %cst_161 = arith.constant dense<0.000000e+00> : vector<2x8x2048xf32>
    %221 = tpu.matmul %218, %220, %cst_161 {dimension_numbers = #tpu.dot_dimension_numbers<[2], [0], [0, 1], [1], [0, 0, 0, 1, 1, 1], [], []>} : vector<2x8x32xbf16>, vector<32x2048xbf16>, vector<2x8x2048xf32> -> vector<2x8x2048xf32>
    "tpu.trace_stop"() : () -> ()
    %c0_162 = arith.constant 0 : index
    %c0_163 = arith.constant 0 : index
    %c0_164 = arith.constant 0 : index
    %222 = vector.load %arg11[%c0_162, %c0_163, %c0_164] : memref<1x1x2048xf32, #tpu.memory_space<vmem>>, vector<1x1x2048xf32>
    %223 = vector.shape_cast %222 : vector<1x1x2048xf32> to vector<1x2048xf32>
    %224 = vector.shape_cast %223 : vector<1x2048xf32> to vector<1x1x2048xf32>
    %225 = vector.broadcast %224 : vector<1x1x2048xf32> to vector<2x8x2048xf32>
    %226 = arith.addf %221, %225 : vector<2x8x2048xf32>
    %cst_165 = arith.constant 0.000000e+00 : f32
    %227 = vector.broadcast %cst_165 : f32 to vector<2x8x2048xf32>
    %228 = arith.maximumf %226, %227 : vector<2x8x2048xf32>
    %229 = arith.truncf %228 : vector<2x8x2048xf32> to vector<2x8x2048xbf16>
    %c0_166 = arith.constant 0 : index
    %c0_167 = arith.constant 0 : index
    %c0_168 = arith.constant 0 : index
    %230 = vector.load %arg12[%c0_166, %c0_167, %c0_168] : memref<1x2048x32xbf16, #tpu.memory_space<vmem>>, vector<1x2048x32xbf16>
    %231 = vector.shape_cast %230 : vector<1x2048x32xbf16> to vector<2048x32xbf16>
    "tpu.trace_start"() <{level = 10 : i32, message = "bsf,fe->bse"}> : () -> ()
    %cst_169 = arith.constant dense<0.000000e+00> : vector<2x8x32xf32>
    %232 = tpu.matmul %229, %231, %cst_169 {dimension_numbers = #tpu.dot_dimension_numbers<[2], [0], [0, 1], [1], [0, 0, 0, 1, 1, 1], [], []>} : vector<2x8x2048xbf16>, vector<2048x32xbf16>, vector<2x8x32xf32> -> vector<2x8x32xf32>
    "tpu.trace_stop"() : () -> ()
    %c0_170 = arith.constant 0 : index
    %c0_171 = arith.constant 0 : index
    %c0_172 = arith.constant 0 : index
    %233 = vector.load %arg13[%c0_170, %c0_171, %c0_172] : memref<1x1x32xf32, #tpu.memory_space<vmem>>, vector<1x1x32xf32>
    %234 = vector.shape_cast %233 : vector<1x1x32xf32> to vector<1x32xf32>
    %235 = vector.shape_cast %234 : vector<1x32xf32> to vector<1x1x32xf32>
    %236 = vector.broadcast %235 : vector<1x1x32xf32> to vector<2x8x32xf32>
    %237 = arith.addf %232, %236 : vector<2x8x32xf32>
    %238 = arith.addf %217, %237 : vector<2x8x32xf32>
    %cst_173 = arith.constant dense<0.000000e+00> : vector<2x8xf32>
    %239 = vector.multi_reduction <add>, %238, %cst_173 [2] : vector<2x8x32xf32> to vector<2x8xf32>
    %240 = vector.shape_cast %239 : vector<2x8xf32> to vector<2x8x1xf32>
    %cst_174 = arith.constant 3.200000e+01 : f32
    %241 = vector.broadcast %cst_174 : f32 to vector<2x8x1xf32>
    %242 = arith.divf %240, %241 : vector<2x8x1xf32>
    %243 = vector.broadcast %242 : vector<2x8x1xf32> to vector<2x8x32xf32>
    %244 = arith.subf %238, %243 : vector<2x8x32xf32>
    %245 = arith.mulf %244, %244 : vector<2x8x32xf32>
    %cst_175 = arith.constant dense<0.000000e+00> : vector<2x8xf32>
    %246 = vector.multi_reduction <add>, %245, %cst_175 [2] : vector<2x8x32xf32> to vector<2x8xf32>
    %247 = vector.shape_cast %246 : vector<2x8xf32> to vector<2x8x1xf32>
    %cst_176 = arith.constant 3.200000e+01 : f32
    %248 = vector.broadcast %cst_176 : f32 to vector<2x8x1xf32>
    %249 = arith.divf %247, %248 : vector<2x8x1xf32>
    %cst_177 = arith.constant 9.99999974E-6 : f32
    %250 = vector.broadcast %cst_177 : f32 to vector<2x8x1xf32>
    %251 = arith.addf %249, %250 : vector<2x8x1xf32>
    %252 = math.rsqrt %251 : vector<2x8x1xf32>
    %253 = vector.broadcast %252 : vector<2x8x1xf32> to vector<2x8x32xf32>
    %254 = arith.mulf %244, %253 : vector<2x8x32xf32>
    %c0_178 = arith.constant 0 : index
    %c0_179 = arith.constant 0 : index
    %c0_180 = arith.constant 0 : index
    %255 = vector.load %arg16[%c0_178, %c0_179, %c0_180] : memref<1x1x32xf32, #tpu.memory_space<vmem>>, vector<1x1x32xf32>
    %256 = vector.shape_cast %255 : vector<1x1x32xf32> to vector<1x32xf32>
    %257 = vector.shape_cast %256 : vector<1x32xf32> to vector<1x1x32xf32>
    %258 = vector.broadcast %257 : vector<1x1x32xf32> to vector<2x8x32xf32>
    %259 = arith.mulf %254, %258 : vector<2x8x32xf32>
    %c0_181 = arith.constant 0 : index
    %c0_182 = arith.constant 0 : index
    %c0_183 = arith.constant 0 : index
    %260 = vector.load %arg17[%c0_181, %c0_182, %c0_183] : memref<1x1x32xf32, #tpu.memory_space<vmem>>, vector<1x1x32xf32>
    %261 = vector.shape_cast %260 : vector<1x1x32xf32> to vector<1x32xf32>
    %262 = vector.shape_cast %261 : vector<1x32xf32> to vector<1x1x32xf32>
    %263 = vector.broadcast %262 : vector<1x1x32xf32> to vector<2x8x32xf32>
    %264 = arith.addf %259, %263 : vector<2x8x32xf32>
    %c0_184 = arith.constant 0 : index
    %c0_185 = arith.constant 0 : index
    %c0_186 = arith.constant 0 : index
    %265 = vector.load %arg19[%c0_184, %c0_185, %c0_186] : memref<2x8x32xf32, #tpu.memory_space<vmem>>, vector<2x8x32xf32>
    tpu.vector_store %arg19[%c0_184, %c0_185, %c0_186], %264 {strides = array<i32>} : memref<2x8x32xf32, #tpu.memory_space<vmem>>, vector<2x8x32xf32>,
    %c1_i32 = arith.constant 1 : i32
    %266 = arith.cmpi eq, %arg0, %c1_i32 : i32
    %267 = arith.extui %266 : i1 to i32
    %c0_i32_187 = arith.constant 0 : i32
    %268 = arith.cmpi ne, %267, %c0_i32_187 : i32
    scf.if %268 {
      %c0_188 = arith.constant 0 : index
      %c0_189 = arith.constant 0 : index
      %c0_190 = arith.constant 0 : index
      %269 = vector.load %arg18[%c0_188, %c0_189, %c0_190] : memref<2x8x32xf32, #tpu.memory_space<vmem>>, vector<2x8x32xf32>
      tpu.vector_store %arg18[%c0_188, %c0_189, %c0_190], %264 {strides = array<i32>} : memref<2x8x32xf32, #tpu.memory_space<vmem>>, vector<2x8x32xf32>,
    } else {
    }
    return
  }
  func.func @transform_0(%arg0: i32) -> (i32, i32, i32) {
    %c0_i32 = arith.constant 0 : i32
    %c0_i32_0 = arith.constant 0 : i32
    %c0_i32_1 = arith.constant 0 : i32
    %c0_i32_2 = arith.constant 0 : i32
    return %c0_i32, %c0_i32_0, %c0_i32_1 : i32, i32, i32
  }
  func.func @transform_1(%arg0: i32) -> (i32, i32, i32, i32) {
    %c0_i32 = arith.constant 0 : i32
    %c0_i32_0 = arith.constant 0 : i32
    %c0_i32_1 = arith.constant 0 : i32
    %c0_i32_2 = arith.constant 0 : i32
    return %arg0, %c0_i32, %c0_i32_0, %c0_i32_1 : i32, i32, i32, i32
  }
  func.func @transform_2(%arg0: i32) -> (i32, i32, i32, i32) {
    %c0_i32 = arith.constant 0 : i32
    %c0_i32_0 = arith.constant 0 : i32
    %c0_i32_1 = arith.constant 0 : i32
    %c0_i32_2 = arith.constant 0 : i32
    return %arg0, %c0_i32, %c0_i32_0, %c0_i32_1 : i32, i32, i32, i32
  }
  func.func @transform_3(%arg0: i32) -> (i32, i32, i32, i32) {
    %c0_i32 = arith.constant 0 : i32
    %c0_i32_0 = arith.constant 0 : i32
    %c0_i32_1 = arith.constant 0 : i32
    %c0_i32_2 = arith.constant 0 : i32
    return %arg0, %c0_i32, %c0_i32_0, %c0_i32_1 : i32, i32, i32, i32
  }
  func.func @transform_4(%arg0: i32) -> (i32, i32, i32, i32) {
    %c0_i32 = arith.constant 0 : i32
    %c0_i32_0 = arith.constant 0 : i32
    %c0_i32_1 = arith.constant 0 : i32
    %c0_i32_2 = arith.constant 0 : i32
    return %arg0, %c0_i32, %c0_i32_0, %c0_i32_1 : i32, i32, i32, i32
  }
  func.func @transform_5(%arg0: i32) -> (i32, i32, i32, i32) {
    %c0_i32 = arith.constant 0 : i32
    %c0_i32_0 = arith.constant 0 : i32
    %c0_i32_1 = arith.constant 0 : i32
    %c0_i32_2 = arith.constant 0 : i32
    return %arg0, %c0_i32, %c0_i32_0, %c0_i32_1 : i32, i32, i32, i32
  }
  func.func @transform_6(%arg0: i32) -> (i32, i32, i32, i32) {
    %c0_i32 = arith.constant 0 : i32
    %c0_i32_0 = arith.constant 0 : i32
    %c0_i32_1 = arith.constant 0 : i32
    %c0_i32_2 = arith.constant 0 : i32
    return %arg0, %c0_i32, %c0_i32_0, %c0_i32_1 : i32, i32, i32, i32
  }
  func.func @transform_7(%arg0: i32) -> (i32, i32, i32, i32) {
    %c0_i32 = arith.constant 0 : i32
    %c0_i32_0 = arith.constant 0 : i32
    %c0_i32_1 = arith.constant 0 : i32
    %c0_i32_2 = arith.constant 0 : i32
    return %arg0, %c0_i32, %c0_i32_0, %c0_i32_1 : i32, i32, i32, i32
  }
  func.func @transform_8(%arg0: i32) -> (i32, i32, i32) {
    %c0_i32 = arith.constant 0 : i32
    %c0_i32_0 = arith.constant 0 : i32
    %c0_i32_1 = arith.constant 0 : i32
    return %arg0, %c0_i32, %c0_i32_0 : i32, i32, i32
  }
  func.func @transform_9(%arg0: i32) -> (i32, i32, i32) {
    %c0_i32 = arith.constant 0 : i32
    %c0_i32_0 = arith.constant 0 : i32
    %c0_i32_1 = arith.constant 0 : i32
    return %arg0, %c0_i32, %c0_i32_0 : i32, i32, i32
  }
  func.func @transform_10(%arg0: i32) -> (i32, i32, i32) {
    %c0_i32 = arith.constant 0 : i32
    %c0_i32_0 = arith.constant 0 : i32
    %c0_i32_1 = arith.constant 0 : i32
    return %arg0, %c0_i32, %c0_i32_0 : i32, i32, i32
  }
  func.func @transform_11(%arg0: i32) -> (i32, i32, i32) {
    %c0_i32 = arith.constant 0 : i32
    %c0_i32_0 = arith.constant 0 : i32
    %c0_i32_1 = arith.constant 0 : i32
    return %arg0, %c0_i32, %c0_i32_0 : i32, i32, i32
  }
  func.func @transform_12(%arg0: i32) -> (i32, i32, i32) {
    %c0_i32 = arith.constant 0 : i32
    %c0_i32_0 = arith.constant 0 : i32
    %c0_i32_1 = arith.constant 0 : i32
    return %arg0, %c0_i32, %c0_i32_0 : i32, i32, i32
  }
  func.func @transform_13(%arg0: i32) -> (i32, i32, i32) {
    %c0_i32 = arith.constant 0 : i32
    %c0_i32_0 = arith.constant 0 : i32
    %c0_i32_1 = arith.constant 0 : i32
    return %arg0, %c0_i32, %c0_i32_0 : i32, i32, i32
  }
  func.func @transform_14(%arg0: i32) -> (i32, i32, i32) {
    %c0_i32 = arith.constant 0 : i32
    %c0_i32_0 = arith.constant 0 : i32
    %c0_i32_1 = arith.constant 0 : i32
    return %arg0, %c0_i32, %c0_i32_0 : i32, i32, i32
  }
  func.func @transform_15(%arg0: i32) -> (i32, i32, i32) {
    %c0_i32 = arith.constant 0 : i32
    %c0_i32_0 = arith.constant 0 : i32
    %c0_i32_1 = arith.constant 0 : i32
    return %arg0, %c0_i32, %c0_i32_0 : i32, i32, i32
  }
  func.func @transform_16(%arg0: i32) -> (i32, i32, i32) {
    %c0_i32 = arith.constant 0 : i32
    %c0_i32_0 = arith.constant 0 : i32
    %c0_i32_1 = arith.constant 0 : i32
    return %arg0, %c0_i32, %c0_i32_0 : i32, i32, i32
  }
  func.func @transform_17(%arg0: i32) -> (i32, i32, i32) {
    %c0_i32 = arith.constant 0 : i32
    %c0_i32_0 = arith.constant 0 : i32
    %c0_i32_1 = arith.constant 0 : i32
    %c0_i32_2 = arith.constant 0 : i32
    return %c0_i32, %c0_i32_0, %c0_i32_1 : i32, i32, i32
  }
}

</mosaic_0001>

<llo_original>
// kernel: tpu_custom_call.1
$region0: #{tpu_custom_call.1}
  #allocation0 [shape = 'u32[]', space=smem, size = 0x4, offset = 0x4, fixed_abs, tag = 'smem constant byte address 0x4 - core index']
  #allocation1 [shape = 'u32[144,128]{1,0:T(1,128)}', space=vmem, size = 0x12000, scoped, tag = 'internal scratch']
  #allocation2 [shape = 'f32[2,8,32]{2,1,0:T(8,128)}', space=vmem, size = 0x2000, scoped, tag = 'scratch operand']
  %s0 = inlined_call_operand.vmem [shape: f32[2,8,32], index: 0, kind: input, shape index: {}]
  %s1 = inlined_call_operand.vmem [shape: bf16[2,4,32,8], index: 1, kind: input, shape index: {}]
  %s2 = inlined_call_operand.vmem [shape: f32[2,4,1,8], index: 2, kind: input, shape index: {}]
  %s3 = inlined_call_operand.vmem [shape: bf16[2,4,32,8], index: 3, kind: input, shape index: {}]
  %s4 = inlined_call_operand.vmem [shape: f32[2,4,1,8], index: 4, kind: input, shape index: {}]
  %s5 = inlined_call_operand.vmem [shape: bf16[2,4,32,8], index: 5, kind: input, shape index: {}]
  %s6 = inlined_call_operand.vmem [shape: f32[2,4,1,8], index: 6, kind: input, shape index: {}]
  %s7 = inlined_call_operand.vmem [shape: bf16[2,4,8,32], index: 7, kind: input, shape index: {}]
  %s8 = inlined_call_operand.vmem [shape: f32[2,1,32], index: 8, kind: input, shape index: {}]
  %s9 = inlined_call_operand.vmem [shape: bf16[2,32,2048], index: 9, kind: input, shape index: {}]
  %s10 = inlined_call_operand.vmem [shape: f32[2,1,2048], index: 10, kind: input, shape index: {}]
  %s11 = inlined_call_operand.vmem [shape: bf16[2,2048,32], index: 11, kind: input, shape index: {}]
  %s12 = inlined_call_operand.vmem [shape: f32[2,1,32], index: 12, kind: input, shape index: {}]
  %s13 = inlined_call_operand.vmem [shape: f32[2,1,32], index: 13, kind: input, shape index: {}]
  %s14 = inlined_call_operand.vmem [shape: f32[2,1,32], index: 14, kind: input, shape index: {}]
  %s15 = inlined_call_operand.vmem [shape: f32[2,1,32], index: 15, kind: input, shape index: {}]
  %s16 = inlined_call_operand.vmem [shape: f32[2,1,32], index: 16, kind: input, shape index: {}]
  %s17 = inlined_call_operand.hbm [shape: f32[2,8,32], index: 17, kind: output, shape index: {}]
  %s18 = sld [smem:[#allocation0]]
  $region109: #{tpu_custom_call.1} parent=0
    _
  %s20 = ssub.s32 1, %s18
  %s21 = scalar_select 0, %s20, %s18
  $region1: #{tpu_custom_call.1} parent=0
    #allocation3 [shape = 'u8[8192]{0}', space=vmem, size = 0x2000, scoped, tag = 'output window, operand 0, single buffered']
    #allocation4 [shape = 's32[2]{0}', space=sflag, size = 0x8, scoped, tag = 'scoped memory for tpu_custom_call.1']
    %22 = vsyncpa [#allocation4], 0
    loop: start=0, step=1, limit=4
    $region2: #{tpu_custom_call.1} parent=1 // loop_pre_header
      _
    $region3: #{tpu_custom_call.1} parent=1 // loop_header
      %s24 = sphi 0, %s28
      %p25 = scmp.ge.s32.totalorder %s24, 4
      %s32 = sphi 0, %s32
      %s34 = sphi 0, %s32
      %s35 = sphi 0, %s34
      %s49 = sphi 0, %s35
      %s55 = sphi 0, %s57
      %s58 = sphi 0, %s55
      %s59 = sphi 0, %s58
      %s75 = sphi 0, %s59
      %s81 = sphi 0, %s83
      %s84 = sphi 0, %s81
      %s85 = sphi 0, %s84
      %s101 = sphi 0, %s85
      %s107 = sphi 0, %s109
      %s110 = sphi 0, %s107
      %s111 = sphi 0, %s110
      %s127 = sphi 0, %s111
      %s133 = sphi 0, %s135
      %s136 = sphi 0, %s133
      %s137 = sphi 0, %s136
      %s153 = sphi 0, %s137
      %s159 = sphi 0, %s161
      %s162 = sphi 0, %s159
      %s163 = sphi 0, %s162
      %s179 = sphi 0, %s163
      %s185 = sphi 0, %s187
      %s188 = sphi 0, %s185
      %s189 = sphi 0, %s188
      %s205 = sphi 0, %s189
      %s211 = sphi 0, %s213
      %s214 = sphi 0, %s211
      %s215 = sphi 0, %s214
      %s231 = sphi 0, %s215
      %s237 = sphi 0, %s239
      %s240 = sphi 0, %s237
      %s241 = sphi 0, %s240
      %s257 = sphi 0, %s241
      %s263 = sphi 0, %s265
      %s266 = sphi 0, %s263
      %s267 = sphi 0, %s266
      %s283 = sphi 0, %s267
      %s289 = sphi 0, %s291
      %s292 = sphi 0, %s289
      %s293 = sphi 0, %s292
      %s309 = sphi 0, %s293
      %s315 = sphi 0, %s317
      %s318 = sphi 0, %s315
      %s319 = sphi 0, %s318
      %s335 = sphi 0, %s319
      %s341 = sphi 0, %s343
      %s344 = sphi 0, %s341
      %s345 = sphi 0, %s344
      %s361 = sphi 0, %s345
      %s367 = sphi 0, %s369
      %s370 = sphi 0, %s367
      %s371 = sphi 0, %s370
      %s387 = sphi 0, %s371
      %s393 = sphi 0, %s395
      %s396 = sphi 0, %s393
      %s397 = sphi 0, %s396
      %s413 = sphi 0, %s397
      %s419 = sphi 0, %s421
      %s422 = sphi 0, %s419
      %s423 = sphi 0, %s422
      %s439 = sphi 0, %s423
      %s445 = sphi 0, %s447
      %s448 = sphi 0, %s445
      %s449 = sphi 0, %s448
      %s465 = sphi 0, %s449
      %s469 = sphi 0, %s469
      %s471 = sphi 0, %s469
      %s472 = sphi 0, %s471
      %s486 = sphi 0, %s472
    $region4: #{tpu_custom_call.1} parent=1 // loop_header_branch
      %27 = sbr.rel (%p25) target = $region8
    $region5: #{tpu_custom_call.1} parent=1 // loop_body
      %s29 = ssub.s32 %s24, 1
      %s30 = ssub.s32 %s24, 2
      %s31 = sadd.s32 %s24, 1
      %s33 = sadd.s32 %s32, 1
      %p36 = scmp.eq.s32.totalorder %s24, 1
      %p37 = scmp.ne.s32.totalorder %s32, %s34
      %p38 = scmp.eq.s32.totalorder %s24, 0
      %p39 = por %p37, %p38
      %p40 = scmp.ne.s32.totalorder %s32, %s34
      %p41 = scmp.eq.s32.totalorder %s29, 1
      %p42 = por %p40, %p41
      %p43 = scmp.ne.s32.totalorder %s34, %s35
      %p44 = scmp.eq.s32.totalorder %s29, 0
      %p45 = por %p43, %p44
      %p46 = scmp.ne.s32.totalorder %s34, %s35
      %p47 = scmp.eq.s32.totalorder %s30, 1
      %p48 = por %p46, %p47
      %p50 = scmp.ne.s32.totalorder %s35, %s49
      %p51 = scmp.eq.s32.totalorder %s30, 0
      %p52 = por %p50, %p51
      %s53 = ssub.s32 %s24, %s31
      %p54 = scmp.eq.s32.totalorder %s53, 0
      %s56 = sadd.s32 %s55, 1
      %s57 = scalar_select %p54, %s55, %s56
      %p60 = pneg %p54
      %p61 = scmp.eq.s32.totalorder %s24, 1
      %p62 = por %p60, %p61
      %p63 = scmp.ne.s32.totalorder %s55, %s58
      %p64 = scmp.eq.s32.totalorder %s24, 0
      %p65 = por %p63, %p64
      %p66 = scmp.ne.s32.totalorder %s55, %s58
      %p67 = scmp.eq.s32.totalorder %s29, 1
      %p68 = por %p66, %p67
      %p69 = scmp.ne.s32.totalorder %s58, %s59
      %p70 = scmp.eq.s32.totalorder %s29, 0
      %p71 = por %p69, %p70
      %p72 = scmp.ne.s32.totalorder %s58, %s59
      %p73 = scmp.eq.s32.totalorder %s30, 1
      %p74 = por %p72, %p73
      %p76 = scmp.ne.s32.totalorder %s59, %s75
      %p77 = scmp.eq.s32.totalorder %s30, 0
      %p78 = por %p76, %p77
      %s79 = ssub.s32 %s24, %s31
      %p80 = scmp.eq.s32.totalorder %s79, 0
      %s82 = sadd.s32 %s81, 1
      %s83 = scalar_select %p80, %s81, %s82
      %p86 = pneg %p80
      %p87 = scmp.eq.s32.totalorder %s24, 1
      %p88 = por %p86, %p87
      %p89 = scmp.ne.s32.totalorder %s81, %s84
      %p90 = scmp.eq.s32.totalorder %s24, 0
      %p91 = por %p89, %p90
      %p92 = scmp.ne.s32.totalorder %s81, %s84
      %p93 = scmp.eq.s32.totalorder %s29, 1
      %p94 = por %p92, %p93
      %p95 = scmp.ne.s32.totalorder %s84, %s85
      %p96 = scmp.eq.s32.totalorder %s29, 0
      %p97 = por %p95, %p96
      %p98 = scmp.ne.s32.totalorder %s84, %s85
      %p99 = scmp.eq.s32.totalorder %s30, 1
      %p100 = por %p98, %p99
      %p102 = scmp.ne.s32.totalorder %s85, %s101
      %p103 = scmp.eq.s32.totalorder %s30, 0
      %p104 = por %p102, %p103
      %s105 = ssub.s32 %s24, %s31
      %p106 = scmp.eq.s32.totalorder %s105, 0
      %s108 = sadd.s32 %s107, 1
      %s109 = scalar_select %p106, %s107, %s108
      %p112 = pneg %p106
      %p113 = scmp.eq.s32.totalorder %s24, 1
      %p114 = por %p112, %p113
      %p115 = scmp.ne.s32.totalorder %s107, %s110
      %p116 = scmp.eq.s32.totalorder %s24, 0
      %p117 = por %p115, %p116
      %p118 = scmp.ne.s32.totalorder %s107, %s110
      %p119 = scmp.eq.s32.totalorder %s29, 1
      %p120 = por %p118, %p119
      %p121 = scmp.ne.s32.totalorder %s110, %s111
      %p122 = scmp.eq.s32.totalorder %s29, 0
      %p123 = por %p121, %p122
      %p124 = scmp.ne.s32.totalorder %s110, %s111
      %p125 = scmp.eq.s32.totalorder %s30, 1
      %p126 = por %p124, %p125
      %p128 = scmp.ne.s32.totalorder %s111, %s127
      %p129 = scmp.eq.s32.totalorder %s30, 0
      %p130 = por %p128, %p129
      %s131 = ssub.s32 %s24, %s31
      %p132 = scmp.eq.s32.totalorder %s131, 0
      %s134 = sadd.s32 %s133, 1
      %s135 = scalar_select %p132, %s133, %s134
      %p138 = pneg %p132
      %p139 = scmp.eq.s32.totalorder %s24, 1
      %p140 = por %p138, %p139
      %p141 = scmp.ne.s32.totalorder %s133, %s136
      %p142 = scmp.eq.s32.totalorder %s24, 0
      %p143 = por %p141, %p142
      %p144 = scmp.ne.s32.totalorder %s133, %s136
      %p145 = scmp.eq.s32.totalorder %s29, 1
      %p146 = por %p144, %p145
      %p147 = scmp.ne.s32.totalorder %s136, %s137
      %p148 = scmp.eq.s32.totalorder %s29, 0
      %p149 = por %p147, %p148
      %p150 = scmp.ne.s32.totalorder %s136, %s137
      %p151 = scmp.eq.s32.totalorder %s30, 1
      %p152 = por %p150, %p151
      %p154 = scmp.ne.s32.totalorder %s137, %s153
      %p155 = scmp.eq.s32.totalorder %s30, 0
      %p156 = por %p154, %p155
      %s157 = ssub.s32 %s24, %s31
      %p158 = scmp.eq.s32.totalorder %s157, 0
      %s160 = sadd.s32 %s159, 1
      %s161 = scalar_select %p158, %s159, %s160
      %p164 = pneg %p158
      %p165 = scmp.eq.s32.totalorder %s24, 1
      %p166 = por %p164, %p165
      %p167 = scmp.ne.s32.totalorder %s159, %s162
      %p168 = scmp.eq.s32.totalorder %s24, 0
      %p169 = por %p167, %p168
      %p170 = scmp.ne.s32.totalorder %s159, %s162
      %p171 = scmp.eq.s32.totalorder %s29, 1
      %p172 = por %p170, %p171
      %p173 = scmp.ne.s32.totalorder %s162, %s163
      %p174 = scmp.eq.s32.totalorder %s29, 0
      %p175 = por %p173, %p174
      %p176 = scmp.ne.s32.totalorder %s162, %s163
      %p177 = scmp.eq.s32.totalorder %s30, 1
      %p178 = por %p176, %p177
      %p180 = scmp.ne.s32.totalorder %s163, %s179
      %p181 = scmp.eq.s32.totalorder %s30, 0
      %p182 = por %p180, %p181
      %s183 = ssub.s32 %s24, %s31
      %p184 = scmp.eq.s32.totalorder %s183, 0
      %s186 = sadd.s32 %s185, 1
      %s187 = scalar_select %p184, %s185, %s186
      %p190 = pneg %p184
      %p191 = scmp.eq.s32.totalorder %s24, 1
      %p192 = por %p190, %p191
      %p193 = scmp.ne.s32.totalorder %s185, %s188
      %p194 = scmp.eq.s32.totalorder %s24, 0
      %p195 = por %p193, %p194
      %p196 = scmp.ne.s32.totalorder %s185, %s188
      %p197 = scmp.eq.s32.totalorder %s29, 1
      %p198 = por %p196, %p197
      %p199 = scmp.ne.s32.totalorder %s188, %s189
      %p200 = scmp.eq.s32.totalorder %s29, 0
      %p201 = por %p199, %p200
      %p202 = scmp.ne.s32.totalorder %s188, %s189
      %p203 = scmp.eq.s32.totalorder %s30, 1
      %p204 = por %p202, %p203
      %p206 = scmp.ne.s32.totalorder %s189, %s205
      %p207 = scmp.eq.s32.totalorder %s30, 0
      %p208 = por %p206, %p207
      %s209 = ssub.s32 %s24, %s31
      %p210 = scmp.eq.s32.totalorder %s209, 0
      %s212 = sadd.s32 %s211, 1
      %s213 = scalar_select %p210, %s211, %s212
      %p216 = pneg %p210
      %p217 = scmp.eq.s32.totalorder %s24, 1
      %p218 = por %p216, %p217
      %p219 = scmp.ne.s32.totalorder %s211, %s214
      %p220 = scmp.eq.s32.totalorder %s24, 0
      %p221 = por %p219, %p220
      %p222 = scmp.ne.s32.totalorder %s211, %s214
      %p223 = scmp.eq.s32.totalorder %s29, 1
      %p224 = por %p222, %p223
      %p225 = scmp.ne.s32.totalorder %s214, %s215
      %p226 = scmp.eq.s32.totalorder %s29, 0
      %p227 = por %p225, %p226
      %p228 = scmp.ne.s32.totalorder %s214, %s215
      %p229 = scmp.eq.s32.totalorder %s30, 1
      %p230 = por %p228, %p229
      %p232 = scmp.ne.s32.totalorder %s215, %s231
      %p233 = scmp.eq.s32.totalorder %s30, 0
      %p234 = por %p232, %p233
      %s235 = ssub.s32 %s24, %s31
      %p236 = scmp.eq.s32.totalorder %s235, 0
      %s238 = sadd.s32 %s237, 1
      %s239 = scalar_select %p236, %s237, %s238
      %p242 = pneg %p236
      %p243 = scmp.eq.s32.totalorder %s24, 1
      %p244 = por %p242, %p243
      %p245 = scmp.ne.s32.totalorder %s237, %s240
      %p246 = scmp.eq.s32.totalorder %s24, 0
      %p247 = por %p245, %p246
      %p248 = scmp.ne.s32.totalorder %s237, %s240
      %p249 = scmp.eq.s32.totalorder %s29, 1
      %p250 = por %p248, %p249
      %p251 = scmp.ne.s32.totalorder %s240, %s241
      %p252 = scmp.eq.s32.totalorder %s29, 0
      %p253 = por %p251, %p252
      %p254 = scmp.ne.s32.totalorder %s240, %s241
      %p255 = scmp.eq.s32.totalorder %s30, 1
      %p256 = por %p254, %p255
      %p258 = scmp.ne.s32.totalorder %s241, %s257
      %p259 = scmp.eq.s32.totalorder %s30, 0
      %p260 = por %p258, %p259
      %s261 = ssub.s32 %s24, %s31
      %p262 = scmp.eq.s32.totalorder %s261, 0
      %s264 = sadd.s32 %s263, 1
      %s265 = scalar_select %p262, %s263, %s264
      %p268 = pneg %p262
      %p269 = scmp.eq.s32.totalorder %s24, 1
      %p270 = por %p268, %p269
      %p271 = scmp.ne.s32.totalorder %s263, %s266
      %p272 = scmp.eq.s32.totalorder %s24, 0
      %p273 = por %p271, %p272
      %p274 = scmp.ne.s32.totalorder %s263, %s266
      %p275 = scmp.eq.s32.totalorder %s29, 1
      %p276 = por %p274, %p275
      %p277 = scmp.ne.s32.totalorder %s266, %s267
      %p278 = scmp.eq.s32.totalorder %s29, 0
      %p279 = por %p277, %p278
      %p280 = scmp.ne.s32.totalorder %s266, %s267
      %p281 = scmp.eq.s32.totalorder %s30, 1
      %p282 = por %p280, %p281
      %p284 = scmp.ne.s32.totalorder %s267, %s283
      %p285 = scmp.eq.s32.totalorder %s30, 0
      %p286 = por %p284, %p285
      %s287 = ssub.s32 %s24, %s31
      %p288 = scmp.eq.s32.totalorder %s287, 0
      %s290 = sadd.s32 %s289, 1
      %s291 = scalar_select %p288, %s289, %s290
      %p294 = pneg %p288
      %p295 = scmp.eq.s32.totalorder %s24, 1
      %p296 = por %p294, %p295
      %p297 = scmp.ne.s32.totalorder %s289, %s292
      %p298 = scmp.eq.s32.totalorder %s24, 0
      %p299 = por %p297, %p298
      %p300 = scmp.ne.s32.totalorder %s289, %s292
      %p301 = scmp.eq.s32.totalorder %s29, 1
      %p302 = por %p300, %p301
      %p303 = scmp.ne.s32.totalorder %s292, %s293
      %p304 = scmp.eq.s32.totalorder %s29, 0
      %p305 = por %p303, %p304
      %p306 = scmp.ne.s32.totalorder %s292, %s293
      %p307 = scmp.eq.s32.totalorder %s30, 1
      %p308 = por %p306, %p307
      %p310 = scmp.ne.s32.totalorder %s293, %s309
      %p311 = scmp.eq.s32.totalorder %s30, 0
      %p312 = por %p310, %p311
      %s313 = ssub.s32 %s24, %s31
      %p314 = scmp.eq.s32.totalorder %s313, 0
      %s316 = sadd.s32 %s315, 1
      %s317 = scalar_select %p314, %s315, %s316
      %p320 = pneg %p314
      %p321 = scmp.eq.s32.totalorder %s24, 1
      %p322 = por %p320, %p321
      %p323 = scmp.ne.s32.totalorder %s315, %s318
      %p324 = scmp.eq.s32.totalorder %s24, 0
      %p325 = por %p323, %p324
      %p326 = scmp.ne.s32.totalorder %s315, %s318
      %p327 = scmp.eq.s32.totalorder %s29, 1
      %p328 = por %p326, %p327
      %p329 = scmp.ne.s32.totalorder %s318, %s319
      %p330 = scmp.eq.s32.totalorder %s29, 0
      %p331 = por %p329, %p330
      %p332 = scmp.ne.s32.totalorder %s318, %s319
      %p333 = scmp.eq.s32.totalorder %s30, 1
      %p334 = por %p332, %p333
      %p336 = scmp.ne.s32.totalorder %s319, %s335
      %p337 = scmp.eq.s32.totalorder %s30, 0
      %p338 = por %p336, %p337
      %s339 = ssub.s32 %s24, %s31
      %p340 = scmp.eq.s32.totalorder %s339, 0
      %s342 = sadd.s32 %s341, 1
      %s343 = scalar_select %p340, %s341, %s342
      %p346 = pneg %p340
      %p347 = scmp.eq.s32.totalorder %s24, 1
      %p348 = por %p346, %p347
      %p349 = scmp.ne.s32.totalorder %s341, %s344
      %p350 = scmp.eq.s32.totalorder %s24, 0
      %p351 = por %p349, %p350
      %p352 = scmp.ne.s32.totalorder %s341, %s344
      %p353 = scmp.eq.s32.totalorder %s29, 1
      %p354 = por %p352, %p353
      %p355 = scmp.ne.s32.totalorder %s344, %s345
      %p356 = scmp.eq.s32.totalorder %s29, 0
      %p357 = por %p355, %p356
      %p358 = scmp.ne.s32.totalorder %s344, %s345
      %p359 = scmp.eq.s32.totalorder %s30, 1
      %p360 = por %p358, %p359
      %p362 = scmp.ne.s32.totalorder %s345, %s361
      %p363 = scmp.eq.s32.totalorder %s30, 0
      %p364 = por %p362, %p363
      %s365 = ssub.s32 %s24, %s31
      %p366 = scmp.eq.s32.totalorder %s365, 0
      %s368 = sadd.s32 %s367, 1
      %s369 = scalar_select %p366, %s367, %s368
      %p372 = pneg %p366
      %p373 = scmp.eq.s32.totalorder %s24, 1
      %p374 = por %p372, %p373
      %p375 = scmp.ne.s32.totalorder %s367, %s370
      %p376 = scmp.eq.s32.totalorder %s24, 0
      %p377 = por %p375, %p376
      %p378 = scmp.ne.s32.totalorder %s367, %s370
      %p379 = scmp.eq.s32.totalorder %s29, 1
      %p380 = por %p378, %p379
      %p381 = scmp.ne.s32.totalorder %s370, %s371
      %p382 = scmp.eq.s32.totalorder %s29, 0
      %p383 = por %p381, %p382
      %p384 = scmp.ne.s32.totalorder %s370, %s371
      %p385 = scmp.eq.s32.totalorder %s30, 1
      %p386 = por %p384, %p385
      %p388 = scmp.ne.s32.totalorder %s371, %s387
      %p389 = scmp.eq.s32.totalorder %s30, 0
      %p390 = por %p388, %p389
      %s391 = ssub.s32 %s24, %s31
      %p392 = scmp.eq.s32.totalorder %s391, 0
      %s394 = sadd.s32 %s393, 1
      %s395 = scalar_select %p392, %s393, %s394
      %p398 = pneg %p392
      %p399 = scmp.eq.s32.totalorder %s24, 1
      %p400 = por %p398, %p399
      %p401 = scmp.ne.s32.totalorder %s393, %s396
      %p402 = scmp.eq.s32.totalorder %s24, 0
      %p403 = por %p401, %p402
      %p404 = scmp.ne.s32.totalorder %s393, %s396
      %p405 = scmp.eq.s32.totalorder %s29, 1
      %p406 = por %p404, %p405
      %p407 = scmp.ne.s32.totalorder %s396, %s397
      %p408 = scmp.eq.s32.totalorder %s29, 0
      %p409 = por %p407, %p408
      %p410 = scmp.ne.s32.totalorder %s396, %s397
      %p411 = scmp.eq.s32.totalorder %s30, 1
      %p412 = por %p410, %p411
      %p414 = scmp.ne.s32.totalorder %s397, %s413
      %p415 = scmp.eq.s32.totalorder %s30, 0
      %p416 = por %p414, %p415
      %s417 = ssub.s32 %s24, %s31
      %p418 = scmp.eq.s32.totalorder %s417, 0
      %s420 = sadd.s32 %s419, 1
      %s421 = scalar_select %p418, %s419, %s420
      %p424 = pneg %p418
      %p425 = scmp.eq.s32.totalorder %s24, 1
      %p426 = por %p424, %p425
      %p427 = scmp.ne.s32.totalorder %s419, %s422
      %p428 = scmp.eq.s32.totalorder %s24, 0
      %p429 = por %p427, %p428
      %p430 = scmp.ne.s32.totalorder %s419, %s422
      %p431 = scmp.eq.s32.totalorder %s29, 1
      %p432 = por %p430, %p431
      %p433 = scmp.ne.s32.totalorder %s422, %s423
      %p434 = scmp.eq.s32.totalorder %s29, 0
      %p435 = por %p433, %p434
      %p436 = scmp.ne.s32.totalorder %s422, %s423
      %p437 = scmp.eq.s32.totalorder %s30, 1
      %p438 = por %p436, %p437
      %p440 = scmp.ne.s32.totalorder %s423, %s439
      %p441 = scmp.eq.s32.totalorder %s30, 0
      %p442 = por %p440, %p441
      %s443 = ssub.s32 %s24, %s31
      %p444 = scmp.eq.s32.totalorder %s443, 0
      %s446 = sadd.s32 %s445, 1
      %s447 = scalar_select %p444, %s445, %s446
      %p450 = pneg %p444
      %p451 = scmp.eq.s32.totalorder %s24, 1
      %p452 = por %p450, %p451
      %p453 = scmp.ne.s32.totalorder %s445, %s448
      %p454 = scmp.eq.s32.totalorder %s24, 0
      %p455 = por %p453, %p454
      %p456 = scmp.ne.s32.totalorder %s445, %s448
      %p457 = scmp.eq.s32.totalorder %s29, 1
      %p458 = por %p456, %p457
      %p459 = scmp.ne.s32.totalorder %s448, %s449
      %p460 = scmp.eq.s32.totalorder %s29, 0
      %p461 = por %p459, %p460
      %p462 = scmp.ne.s32.totalorder %s448, %s449
      %p463 = scmp.eq.s32.totalorder %s30, 1
      %p464 = por %p462, %p463
      %p466 = scmp.ne.s32.totalorder %s449, %s465
      %p467 = scmp.eq.s32.totalorder %s30, 0
      %p468 = por %p466, %p467
      %s470 = sadd.s32 %s469, 1
      %p473 = scmp.eq.s32.totalorder %s24, 1
      %p474 = scmp.ne.s32.totalorder %s469, %s471
      %p475 = scmp.eq.s32.totalorder %s24, 0
      %p476 = por %p474, %p475
      %p477 = scmp.ne.s32.totalorder %s469, %s471
      %p478 = scmp.eq.s32.totalorder %s29, 1
      %p479 = por %p477, %p478
      %p480 = scmp.ne.s32.totalorder %s471, %s472
      %p481 = scmp.eq.s32.totalorder %s29, 0
      %p482 = por %p480, %p481
      %p483 = scmp.ne.s32.totalorder %s471, %s472
      %p484 = scmp.eq.s32.totalorder %s30, 1
      %p485 = por %p483, %p484
      %p487 = scmp.ne.s32.totalorder %s472, %s486
      %p488 = scmp.eq.s32.totalorder %s30, 0
      %p489 = por %p487, %p488
      %p490 = scmp.le.s32.totalorder 1, %s24
      %p491 = scmp.lt.s32.totalorder %s24, 3
      %p492 = pnand %p490, %p491
      %p493 = pneg %p492
      // Predicated region
      $region9: #{tpu_custom_call.1} parent=5 // pred_check
        _
      $region10: #{tpu_custom_call.1} parent=5 // pred_check_branch
        %495 = sbr.rel (%p492) target = $region12
      $region11: #{tpu_custom_call.1} parent=5 // pred_region
        %s496 = ssub.s32 %s24, 1
        // Predicated region
        $region13: #{tpu_custom_call.1} parent=11 // pred_check
          %p497 = pneg %p45
        $region14: #{tpu_custom_call.1} parent=11 // pred_check_branch
          %499 = sbr.rel (%p497) target = $region16
        $region15: #{tpu_custom_call.1} parent=11 // pred_region
          _
        $region16: #{tpu_custom_call.1} parent=11 // pred_fallthru
          _
      $region12: #{tpu_custom_call.1} parent=5 // pred_fallthru
        _
      %p500 = scmp.lt.s32.totalorder %s24, 2
      // Predicated region
      $region17: #{tpu_custom_call.1} parent=5 // pred_check
        %p501 = pneg %p500
      $region18: #{tpu_custom_call.1} parent=5 // pred_check_branch
        %503 = sbr.rel (%p501) target = $region20
      $region19: #{tpu_custom_call.1} parent=5 // pred_region
        // Predicated region
        $region21: #{tpu_custom_call.1} parent=19 // pred_check
          %p504 = pneg %p65
        $region22: #{tpu_custom_call.1} parent=19 // pred_check_branch
          %506 = sbr.rel (%p504) target = $region24
        $region23: #{tpu_custom_call.1} parent=19 // pred_region
          %p507 = scmp.lt.s32.totalorder %s24, 1
          %s508 = scalar_select %p507, %s24, 1
          %s509 = smul.addr %s508, 16
          %s510 = smul.addr %s509, 4
          %s511 = scalar_lea.vmem %s1, %s510
        $region24: #{tpu_custom_call.1} parent=19 // pred_fallthru
          _
        // Predicated region
        $region25: #{tpu_custom_call.1} parent=19 // pred_check
          %p512 = pneg %p91
        $region26: #{tpu_custom_call.1} parent=19 // pred_check_branch
          %514 = sbr.rel (%p512) target = $region28
        $region27: #{tpu_custom_call.1} parent=19 // pred_region
          %p515 = scmp.lt.s32.totalorder %s24, 1
          %s516 = scalar_select %p515, %s24, 1
          %s517 = smul.addr %s516, 4
          %s518 = scalar_lea.vmem %s2, %s517
        $region28: #{tpu_custom_call.1} parent=19 // pred_fallthru
          _
        // Predicated region
        $region29: #{tpu_custom_call.1} parent=19 // pred_check
          %p519 = pneg %p117
        $region30: #{tpu_custom_call.1} parent=19 // pred_check_branch
          %521 = sbr.rel (%p519) target = $region32
        $region31: #{tpu_custom_call.1} parent=19 // pred_region
          %p522 = scmp.lt.s32.totalorder %s24, 1
          %s523 = scalar_select %p522, %s24, 1
          %s524 = smul.addr %s523, 16
          %s525 = smul.addr %s524, 4
          %s526 = scalar_lea.vmem %s3, %s525
        $region32: #{tpu_custom_call.1} parent=19 // pred_fallthru
          _
        // Predicated region
        $region33: #{tpu_custom_call.1} parent=19 // pred_check
          %p527 = pneg %p143
        $region34: #{tpu_custom_call.1} parent=19 // pred_check_branch
          %529 = sbr.rel (%p527) target = $region36
        $region35: #{tpu_custom_call.1} parent=19 // pred_region
          %p530 = scmp.lt.s32.totalorder %s24, 1
          %s531 = scalar_select %p530, %s24, 1
          %s532 = smul.addr %s531, 4
          %s533 = scalar_lea.vmem %s4, %s532
        $region36: #{tpu_custom_call.1} parent=19 // pred_fallthru
          _
        // Predicated region
        $region37: #{tpu_custom_call.1} parent=19 // pred_check
          %p534 = pneg %p169
        $region38: #{tpu_custom_call.1} parent=19 // pred_check_branch
          %536 = sbr.rel (%p534) target = $region40
        $region39: #{tpu_custom_call.1} parent=19 // pred_region
          %p537 = scmp.lt.s32.totalorder %s24, 1
          %s538 = scalar_select %p537, %s24, 1
          %s539 = smul.addr %s538, 16
          %s540 = smul.addr %s539, 4
          %s541 = scalar_lea.vmem %s5, %s540
        $region40: #{tpu_custom_call.1} parent=19 // pred_fallthru
          _
        // Predicated region
        $region41: #{tpu_custom_call.1} parent=19 // pred_check
          %p542 = pneg %p195
        $region42: #{tpu_custom_call.1} parent=19 // pred_check_branch
          %544 = sbr.rel (%p542) target = $region44
        $region43: #{tpu_custom_call.1} parent=19 // pred_region
          %p545 = scmp.lt.s32.totalorder %s24, 1
          %s546 = scalar_select %p545, %s24, 1
          %s547 = smul.addr %s546, 4
          %s548 = scalar_lea.vmem %s6, %s547
        $region44: #{tpu_custom_call.1} parent=19 // pred_fallthru
          _
        // Predicated region
        $region45: #{tpu_custom_call.1} parent=19 // pred_check
          %p549 = pneg %p221
        $region46: #{tpu_custom_call.1} parent=19 // pred_check_branch
          %551 = sbr.rel (%p549) target = $region48
        $region47: #{tpu_custom_call.1} parent=19 // pred_region
          %p552 = scmp.lt.s32.totalorder %s24, 1
          %s553 = scalar_select %p552, %s24, 1
          %s554 = smul.addr %s553, 4
          %s555 = smul.addr %s554, 4
          %s556 = scalar_lea.vmem %s7, %s555
        $region48: #{tpu_custom_call.1} parent=19 // pred_fallthru
          _
        // Predicated region
        $region49: #{tpu_custom_call.1} parent=19 // pred_check
          %p557 = pneg %p247
        $region50: #{tpu_custom_call.1} parent=19 // pred_check_branch
          %559 = sbr.rel (%p557) target = $region52
        $region51: #{tpu_custom_call.1} parent=19 // pred_region
          %p560 = scmp.lt.s32.totalorder %s24, 1
          %s561 = scalar_select %p560, %s24, 1
          %s562 = scalar_lea.vmem %s8, %s561
        $region52: #{tpu_custom_call.1} parent=19 // pred_fallthru
          _
        // Predicated region
        $region53: #{tpu_custom_call.1} parent=19 // pred_check
          %p563 = pneg %p273
        $region54: #{tpu_custom_call.1} parent=19 // pred_check_branch
          %565 = sbr.rel (%p563) target = $region56
        $region55: #{tpu_custom_call.1} parent=19 // pred_region
          %p566 = scmp.lt.s32.totalorder %s24, 1
          %s567 = scalar_select %p566, %s24, 1
          %s568 = smul.addr %s567, 64
          %s569 = smul.addr %s568, 4
          %s570 = scalar_lea.vmem %s9, %s569
        $region56: #{tpu_custom_call.1} parent=19 // pred_fallthru
          _
        // Predicated region
        $region57: #{tpu_custom_call.1} parent=19 // pred_check
          %p571 = pneg %p299
        $region58: #{tpu_custom_call.1} parent=19 // pred_check_branch
          %573 = sbr.rel (%p571) target = $region60
        $region59: #{tpu_custom_call.1} parent=19 // pred_region
          %p574 = scmp.lt.s32.totalorder %s24, 1
          %s575 = scalar_select %p574, %s24, 1
          %s576 = smul.addr %s575, 16
          %s577 = scalar_lea.vmem %s10, %s576
        $region60: #{tpu_custom_call.1} parent=19 // pred_fallthru
          _
        // Predicated region
        $region61: #{tpu_custom_call.1} parent=19 // pred_check
          %p578 = pneg %p325
        $region62: #{tpu_custom_call.1} parent=19 // pred_check_branch
          %580 = sbr.rel (%p578) target = $region64
        $region63: #{tpu_custom_call.1} parent=19 // pred_region
          %p581 = scmp.lt.s32.totalorder %s24, 1
          %s582 = scalar_select %p581, %s24, 1
          %s583 = smul.addr %s582, 256
          %s584 = smul.addr %s583, 4
          %s585 = scalar_lea.vmem %s11, %s584
        $region64: #{tpu_custom_call.1} parent=19 // pred_fallthru
          _
        // Predicated region
        $region65: #{tpu_custom_call.1} parent=19 // pred_check
          %p586 = pneg %p351
        $region66: #{tpu_custom_call.1} parent=19 // pred_check_branch
          %588 = sbr.rel (%p586) target = $region68
        $region67: #{tpu_custom_call.1} parent=19 // pred_region
          %p589 = scmp.lt.s32.totalorder %s24, 1
          %s590 = scalar_select %p589, %s24, 1
          %s591 = scalar_lea.vmem %s12, %s590
        $region68: #{tpu_custom_call.1} parent=19 // pred_fallthru
          _
        // Predicated region
        $region69: #{tpu_custom_call.1} parent=19 // pred_check
          %p592 = pneg %p377
        $region70: #{tpu_custom_call.1} parent=19 // pred_check_branch
          %594 = sbr.rel (%p592) target = $region72
        $region71: #{tpu_custom_call.1} parent=19 // pred_region
          %p595 = scmp.lt.s32.totalorder %s24, 1
          %s596 = scalar_select %p595, %s24, 1
          %s597 = scalar_lea.vmem %s13, %s596
        $region72: #{tpu_custom_call.1} parent=19 // pred_fallthru
          _
        // Predicated region
        $region73: #{tpu_custom_call.1} parent=19 // pred_check
          %p598 = pneg %p403
        $region74: #{tpu_custom_call.1} parent=19 // pred_check_branch
          %600 = sbr.rel (%p598) target = $region76
        $region75: #{tpu_custom_call.1} parent=19 // pred_region
          %p601 = scmp.lt.s32.totalorder %s24, 1
          %s602 = scalar_select %p601, %s24, 1
          %s603 = scalar_lea.vmem %s14, %s602
        $region76: #{tpu_custom_call.1} parent=19 // pred_fallthru
          _
        // Predicated region
        $region77: #{tpu_custom_call.1} parent=19 // pred_check
          %p604 = pneg %p429
        $region78: #{tpu_custom_call.1} parent=19 // pred_check_branch
          %606 = sbr.rel (%p604) target = $region80
        $region79: #{tpu_custom_call.1} parent=19 // pred_region
          %p607 = scmp.lt.s32.totalorder %s24, 1
          %s608 = scalar_select %p607, %s24, 1
          %s609 = scalar_lea.vmem %s15, %s608
        $region80: #{tpu_custom_call.1} parent=19 // pred_fallthru
          _
        // Predicated region
        $region81: #{tpu_custom_call.1} parent=19 // pred_check
          %p610 = pneg %p455
        $region82: #{tpu_custom_call.1} parent=19 // pred_check_branch
          %612 = sbr.rel (%p610) target = $region84
        $region83: #{tpu_custom_call.1} parent=19 // pred_region
          %p613 = scmp.lt.s32.totalorder %s24, 1
          %s614 = scalar_select %p613, %s24, 1
          %s615 = scalar_lea.vmem %s16, %s614
        $region84: #{tpu_custom_call.1} parent=19 // pred_fallthru
          _
      $region20: #{tpu_custom_call.1} parent=5 // pred_fallthru
        _
      %p616 = scmp.le.s32.totalorder 1, %s24
      %p617 = scmp.lt.s32.totalorder %s24, 3
      %p618 = pnand %p616, %p617
      %p619 = pneg %p618
      // Predicated region
      $region85: #{tpu_custom_call.1} parent=5 // pred_check
        _
      $region86: #{tpu_custom_call.1} parent=5 // pred_check_branch
        %621 = sbr.rel (%p618) target = $region88
      $region87: #{tpu_custom_call.1} parent=5 // pred_region
        %s622 = ssub.s32 %s24, 1
        %p623 = pneg %p45
        %p624 = pneg %p42
        %p625 = scmp.lt.s32.totalorder %s29, 1
        %s626 = scalar_select %p625, %s29, 1
        %s627 = smul.addr %s626, 16
        %s628 = smul.addr %s627, 4
        %s629 = scalar_lea.vmem %s1, %s628
        %p630 = pneg %p71
        %p631 = pneg %p68
        %p632 = scmp.lt.s32.totalorder %s29, 1
        %s633 = scalar_select %p632, %s29, 1
        %s634 = smul.addr %s633, 4
        %s635 = scalar_lea.vmem %s2, %s634
        %p636 = pneg %p97
        %p637 = pneg %p94
        %p638 = scmp.lt.s32.totalorder %s29, 1
        %s639 = scalar_select %p638, %s29, 1
        %s640 = smul.addr %s639, 16
        %s641 = smul.addr %s640, 4
        %s642 = scalar_lea.vmem %s3, %s641
        %p643 = pneg %p123
        %p644 = pneg %p120
        %p645 = scmp.lt.s32.totalorder %s29, 1
        %s646 = scalar_select %p645, %s29, 1
        %s647 = smul.addr %s646, 4
        %s648 = scalar_lea.vmem %s4, %s647
        %p649 = pneg %p149
        %p650 = pneg %p146
        %p651 = scmp.lt.s32.totalorder %s29, 1
        %s652 = scalar_select %p651, %s29, 1
        %s653 = smul.addr %s652, 16
        %s654 = smul.addr %s653, 4
        %s655 = scalar_lea.vmem %s5, %s654
        %p656 = pneg %p175
        %p657 = pneg %p172
        %p658 = scmp.lt.s32.totalorder %s29, 1
        %s659 = scalar_select %p658, %s29, 1
        %s660 = smul.addr %s659, 4
        %s661 = scalar_lea.vmem %s6, %s660
        %p662 = pneg %p201
        %p663 = pneg %p198
        %p664 = scmp.lt.s32.totalorder %s29, 1
        %s665 = scalar_select %p664, %s29, 1
        %s666 = smul.addr %s665, 4
        %s667 = smul.addr %s666, 4
        %s668 = scalar_lea.vmem %s7, %s667
        %p669 = pneg %p227
        %p670 = pneg %p224
        %p671 = scmp.lt.s32.totalorder %s29, 1
        %s672 = scalar_select %p671, %s29, 1
        %s673 = scalar_lea.vmem %s8, %s672
        %p674 = pneg %p253
        %p675 = pneg %p250
        %p676 = scmp.lt.s32.totalorder %s29, 1
        %s677 = scalar_select %p676, %s29, 1
        %s678 = smul.addr %s677, 64
        %s679 = smul.addr %s678, 4
        %s680 = scalar_lea.vmem %s9, %s679
        %p681 = pneg %p279
        %p682 = pneg %p276
        %p683 = scmp.lt.s32.totalorder %s29, 1
        %s684 = scalar_select %p683, %s29, 1
        %s685 = smul.addr %s684, 16
        %s686 = scalar_lea.vmem %s10, %s685
        %p687 = pneg %p305
        %p688 = pneg %p302
        %p689 = scmp.lt.s32.totalorder %s29, 1
        %s690 = scalar_select %p689, %s29, 1
        %s691 = smul.addr %s690, 256
        %s692 = smul.addr %s691, 4
        %s693 = scalar_lea.vmem %s11, %s692
        %p694 = pneg %p331
        %p695 = pneg %p328
        %p696 = scmp.lt.s32.totalorder %s29, 1
        %s697 = scalar_select %p696, %s29, 1
        %s698 = scalar_lea.vmem %s12, %s697
        %p699 = pneg %p357
        %p700 = pneg %p354
        %p701 = scmp.lt.s32.totalorder %s29, 1
        %s702 = scalar_select %p701, %s29, 1
        %s703 = scalar_lea.vmem %s13, %s702
        %p704 = pneg %p383
        %p705 = pneg %p380
        %p706 = scmp.lt.s32.totalorder %s29, 1
        %s707 = scalar_select %p706, %s29, 1
        %s708 = scalar_lea.vmem %s14, %s707
        %p709 = pneg %p409
        %p710 = pneg %p406
        %p711 = scmp.lt.s32.totalorder %s29, 1
        %s712 = scalar_select %p711, %s29, 1
        %s713 = scalar_lea.vmem %s15, %s712
        %p714 = pneg %p435
        %p715 = pneg %p432
        %p716 = scmp.lt.s32.totalorder %s29, 1
        %s717 = scalar_select %p716, %s29, 1
        %s718 = scalar_lea.vmem %s16, %s717
        %p719 = pneg %p461
        %p720 = pneg %p458
        %p721 = pneg %p482
        %p722 = pneg %p479
        %p723 = scmp.lt.s32.totalorder %s29, 1
        %s724 = scalar_select %p723, %s29, 1
        %s725 = smul.addr %s724, 16
        %s726 = smul.addr %s725, 4
        %s727 = scalar_lea.vmem %s1, %s726
        %p728 = scmp.lt.s32.totalorder %s29, 1
        %s729 = scalar_select %p728, %s29, 1
        %s730 = smul.addr %s729, 4
        %s731 = scalar_lea.vmem %s2, %s730
        %p732 = scmp.lt.s32.totalorder %s29, 1
        %s733 = scalar_select %p732, %s29, 1
        %s734 = smul.addr %s733, 16
        %s735 = smul.addr %s734, 4
        %s736 = scalar_lea.vmem %s3, %s735
        %p737 = scmp.lt.s32.totalorder %s29, 1
        %s738 = scalar_select %p737, %s29, 1
        %s739 = smul.addr %s738, 4
        %s740 = scalar_lea.vmem %s4, %s739
        %p741 = scmp.lt.s32.totalorder %s29, 1
        %s742 = scalar_select %p741, %s29, 1
        %s743 = smul.addr %s742, 16
        %s744 = smul.addr %s743, 4
        %s745 = scalar_lea.vmem %s5, %s744
        %p746 = scmp.lt.s32.totalorder %s29, 1
        %s747 = scalar_select %p746, %s29, 1
        %s748 = smul.addr %s747, 4
        %s749 = scalar_lea.vmem %s6, %s748
        %p750 = scmp.lt.s32.totalorder %s29, 1
        %s751 = scalar_select %p750, %s29, 1
        %s752 = smul.addr %s751, 4
        %s753 = smul.addr %s752, 4
        %s754 = scalar_lea.vmem %s7, %s753
        %p755 = scmp.lt.s32.totalorder %s29, 1
        %s756 = scalar_select %p755, %s29, 1
        %s757 = scalar_lea.vmem %s8, %s756
        %p758 = scmp.lt.s32.totalorder %s29, 1
        %s759 = scalar_select %p758, %s29, 1
        %s760 = smul.addr %s759, 64
        %s761 = smul.addr %s760, 4
        %s762 = scalar_lea.vmem %s9, %s761
        %p763 = scmp.lt.s32.totalorder %s29, 1
        %s764 = scalar_select %p763, %s29, 1
        %s765 = smul.addr %s764, 16
        %s766 = scalar_lea.vmem %s10, %s765
        %p767 = scmp.lt.s32.totalorder %s29, 1
        %s768 = scalar_select %p767, %s29, 1
        %s769 = smul.addr %s768, 256
        %s770 = smul.addr %s769, 4
        %s771 = scalar_lea.vmem %s11, %s770
        %p772 = scmp.lt.s32.totalorder %s29, 1
        %s773 = scalar_select %p772, %s29, 1
        %s774 = scalar_lea.vmem %s12, %s773
        %p775 = scmp.lt.s32.totalorder %s29, 1
        %s776 = scalar_select %p775, %s29, 1
        %s777 = scalar_lea.vmem %s13, %s776
        %p778 = scmp.lt.s32.totalorder %s29, 1
        %s779 = scalar_select %p778, %s29, 1
        %s780 = scalar_lea.vmem %s14, %s779
        %p781 = scmp.lt.s32.totalorder %s29, 1
        %s782 = scalar_select %p781, %s29, 1
        %s783 = scalar_lea.vmem %s15, %s782
        %p784 = scmp.lt.s32.totalorder %s29, 1
        %s785 = scalar_select %p784, %s29, 1
        %s786 = scalar_lea.vmem %s16, %s785
        %p788 = scmp.eq.s32.totalorder %s29, 0
        // Predicated region
        $region89: #{tpu_custom_call.1} parent=87 // pred_check
          %p789 = pneg %p788
        $region90: #{tpu_custom_call.1} parent=87 // pred_check_branch
          %791 = sbr.rel (%p789) target = $region92
        $region91: #{tpu_custom_call.1} parent=87 // pred_region
          %v792 = vld [vmem:[%s0] sm:$0xff]
          %v793 = vld [vmem:[%s0 + $0x8] sm:$0xff]
          %vm794 = vcmask 261120
          %795 = vst.msk [vmem:[#allocation2] sm:$0xff] %vm794, %v792
          %796 = vst.msk [vmem:[#allocation2 + $0x8] sm:$0xff] %vm794, %v793
        $region92: #{tpu_custom_call.1} parent=87 // pred_fallthru
          _
        %v797 = vld [vmem:[#allocation2] sm:$0xff]
        %v798 = vld [vmem:[#allocation2 + $0x8] sm:$0xff]
        %v799 = vpack.c.bf16 %v797, %v797
        %v800 = vpack.c.bf16 %v798, %v798
        %v801 = vld [vmem:[%s727] sm:$0xf]
        %v802 = vld [vmem:[%s727 + $0x4] sm:$0xf]
        %v803 = vld [vmem:[%s727 + $0x8] sm:$0xf]
        %v804 = vld [vmem:[%s727 + $0xc] sm:$0xf]
        %v805 = vld [vmem:[%s731] sm:$0x1]
        %v807 = vlaneseq
        %v808 = vshrl.u32 %v807, 7
        %v809 = vsub.s32 0, %v808
        %v810 = vrot.slane %v805, %v809
        %v814 = vunpack.c.l.b16 %v799
        %v815 = vunpack.c.l.b16 %v800
        %v816 = vpack.c.b16 %v815, %v814
        %v821 = vunpack.c.l.b16 %v801
        %v822 = vunpack.c.l.b16 %v802
        %v823 = vunpack.c.l.b16 %v803
        %v824 = vunpack.c.l.b16 %v804
        %v825 = vpack.c.b16 %v822, %v821
        %v826 = vpack.c.b16 %v824, %v823
        %vm829 = vcmask 261120
        %v831 = vsel %vm829, %v816, 0
        %833 = vmatprep.subr.bf16.mxu0 0
        %834 = vmatpush1.bf16.msra.mxu0 %v825
        %835 = vmatprep.subr.bf16.mxu0 0
        %836 = vmatpush1.bf16.msra.mxu0 %v826
        %837 = vmatprep.subr.bf16.mxu0 0
        %838 = vmatpush1.bf16.msra.mxu0 0
        %839 = vmatprep.subr.bf16.mxu0 0
        %840 = vmatpush1.bf16.msra.mxu0 0
        %841 = vmatprep.subr.bf16.mxu0 0
        %842 = vmatpush1.bf16.msra.mxu0 0
        %843 = vmatprep.subr.bf16.mxu0 0
        %844 = vmatpush1.bf16.msra.mxu0 0
        %845 = vmatprep.subr.bf16.mxu0 0
        %846 = vmatpush1.bf16.msra.mxu0 0
        %847 = vmatprep.subr.bf16.mxu0 0
        %848 = vmatpush1.bf16.msra.mxu0 0
        %849 = vmatprep.subr.bf16.mxu0 0
        %850 = vmatpush1.bf16.msra.mxu0 0
        %851 = vmatprep.subr.bf16.mxu0 0
        %852 = vmatpush1.bf16.msra.mxu0 0
        %853 = vmatprep.subr.bf16.mxu0 0
        %854 = vmatpush1.bf16.msra.mxu0 0
        %855 = vmatprep.subr.bf16.mxu0 0
        %856 = vmatpush1.bf16.msra.mxu0 0
        %857 = vmatprep.subr.bf16.mxu0 0
        %858 = vmatpush1.bf16.msra.mxu0 0
        %859 = vmatprep.subr.bf16.mxu0 0
        %860 = vmatpush1.bf16.msra.mxu0 0
        %861 = vmatprep.subr.bf16.mxu0 0
        %862 = vmatpush1.bf16.msra.mxu0 0
        %863 = vmatprep.subr.bf16.mxu0 0
        %864 = vmatpush1.bf16.msra.mxu0 0
        %865 = vmatprep.mubr.bf16.mxu0 0
        %866 = vmatmul.mubr.bf16.gmra.mrb[0].mxu0 %v831
        %v867 = vpop.f32.mrb[0].mxu0
        %v868 = vadd.f32 %v810, %v867
        %v869 = vpop.f32.mrb[0].mxu0
        %v870 = vpop.f32.mrb[0].mxu0
        %v871 = vadd.f32 %v810, %v870
        %v872 = vpop.f32.mrb[0].mxu0
        %873 = vdwg.mxu0
        %v874 = vld [vmem:[%s736] sm:$0xf]
        %v875 = vld [vmem:[%s736 + $0x4] sm:$0xf]
        %v876 = vld [vmem:[%s736 + $0x8] sm:$0xf]
        %v877 = vld [vmem:[%s736 + $0xc] sm:$0xf]
        %v878 = vld [vmem:[%s740] sm:$0x1]
        %v880 = vlaneseq
        %v881 = vshrl.u32 %v880, 7
        %v882 = vsub.s32 0, %v881
        %v883 = vrot.slane %v878, %v882
        %v889 = vunpack.c.l.b16 %v874
        %v890 = vunpack.c.l.b16 %v875
        %v891 = vunpack.c.l.b16 %v876
        %v892 = vunpack.c.l.b16 %v877
        %v893 = vpack.c.b16 %v890, %v889
        %v894 = vpack.c.b16 %v892, %v891
        %897 = vmatprep.subr.bf16.mxu0 0
        %898 = vmatpush1.bf16.msra.mxu0 %v893
        %899 = vmatprep.subr.bf16.mxu0 0
        %900 = vmatpush1.bf16.msra.mxu0 %v894
        %901 = vmatprep.subr.bf16.mxu0 0
        %902 = vmatpush1.bf16.msra.mxu0 0
        %903 = vmatprep.subr.bf16.mxu0 0
        %904 = vmatpush1.bf16.msra.mxu0 0
        %905 = vmatprep.subr.bf16.mxu0 0
        %906 = vmatpush1.bf16.msra.mxu0 0
        %907 = vmatprep.subr.bf16.mxu0 0
        %908 = vmatpush1.bf16.msra.mxu0 0
        %909 = vmatprep.subr.bf16.mxu0 0
        %910 = vmatpush1.bf16.msra.mxu0 0
        %911 = vmatprep.subr.bf16.mxu0 0
        %912 = vmatpush1.bf16.msra.mxu0 0
        %913 = vmatprep.subr.bf16.mxu0 0
        %914 = vmatpush1.bf16.msra.mxu0 0
        %915 = vmatprep.subr.bf16.mxu0 0
        %916 = vmatpush1.bf16.msra.mxu0 0
        %917 = vmatprep.subr.bf16.mxu0 0
        %918 = vmatpush1.bf16.msra.mxu0 0
        %919 = vmatprep.subr.bf16.mxu0 0
        %920 = vmatpush1.bf16.msra.mxu0 0
        %921 = vmatprep.subr.bf16.mxu0 0
        %922 = vmatpush1.bf16.msra.mxu0 0
        %923 = vmatprep.subr.bf16.mxu0 0
        %924 = vmatpush1.bf16.msra.mxu0 0
        %925 = vmatprep.subr.bf16.mxu0 0
        %926 = vmatpush1.bf16.msra.mxu0 0
        %927 = vmatprep.subr.bf16.mxu0 0
        %928 = vmatpush1.bf16.msra.mxu0 0
        %929 = vmatprep.mubr.bf16.mxu0 0
        %930 = vmatmul.mubr.bf16.gmra.mrb[0].mxu0 %v831
        %v931 = vpop.f32.mrb[0].mxu0
        %v932 = vadd.f32 %v883, %v931
        %v933 = vpop.f32.mrb[0].mxu0
        %v934 = vpop.f32.mrb[0].mxu0
        %v935 = vadd.f32 %v883, %v934
        %v936 = vpop.f32.mrb[0].mxu0
        %937 = vdwg.mxu0
        %v938 = vld [vmem:[%s745] sm:$0xf]
        %v939 = vld [vmem:[%s745 + $0x4] sm:$0xf]
        %v940 = vld [vmem:[%s745 + $0x8] sm:$0xf]
        %v941 = vld [vmem:[%s745 + $0xc] sm:$0xf]
        %v942 = vld [vmem:[%s749] sm:$0x1]
        %v944 = vlaneseq
        %v945 = vshrl.u32 %v944, 7
        %v946 = vsub.s32 0, %v945
        %v947 = vrot.slane %v942, %v946
        %v953 = vunpack.c.l.b16 %v938
        %v954 = vunpack.c.l.b16 %v939
        %v955 = vunpack.c.l.b16 %v940
        %v956 = vunpack.c.l.b16 %v941
        %v957 = vpack.c.b16 %v954, %v953
        %v958 = vpack.c.b16 %v956, %v955
        %961 = vmatprep.subr.bf16.mxu0 0
        %962 = vmatpush1.bf16.msra.mxu0 %v957
        %963 = vmatprep.subr.bf16.mxu0 0
        %964 = vmatpush1.bf16.msra.mxu0 %v958
        %965 = vmatprep.subr.bf16.mxu0 0
        %966 = vmatpush1.bf16.msra.mxu0 0
        %967 = vmatprep.subr.bf16.mxu0 0
        %968 = vmatpush1.bf16.msra.mxu0 0
        %969 = vmatprep.subr.bf16.mxu0 0
        %970 = vmatpush1.bf16.msra.mxu0 0
        %971 = vmatprep.subr.bf16.mxu0 0
        %972 = vmatpush1.bf16.msra.mxu0 0
        %973 = vmatprep.subr.bf16.mxu0 0
        %974 = vmatpush1.bf16.msra.mxu0 0
        %975 = vmatprep.subr.bf16.mxu0 0
        %976 = vmatpush1.bf16.msra.mxu0 0
        %977 = vmatprep.subr.bf16.mxu0 0
        %978 = vmatpush1.bf16.msra.mxu0 0
        %979 = vmatprep.subr.bf16.mxu0 0
        %980 = vmatpush1.bf16.msra.mxu0 0
        %981 = vmatprep.subr.bf16.mxu0 0
        %982 = vmatpush1.bf16.msra.mxu0 0
        %983 = vmatprep.subr.bf16.mxu0 0
        %984 = vmatpush1.bf16.msra.mxu0 0
        %985 = vmatprep.subr.bf16.mxu0 0
        %986 = vmatpush1.bf16.msra.mxu0 0
        %987 = vmatprep.subr.bf16.mxu0 0
        %988 = vmatpush1.bf16.msra.mxu0 0
        %989 = vmatprep.subr.bf16.mxu0 0
        %990 = vmatpush1.bf16.msra.mxu0 0
        %991 = vmatprep.subr.bf16.mxu0 0
        %992 = vmatpush1.bf16.msra.mxu0 0
        %993 = vmatprep.mubr.bf16.mxu0 0
        %994 = vmatmul.mubr.bf16.gmra.mrb[0].mxu0 %v831
        %v995 = vpop.f32.mrb[0].mxu0
        %v996 = vadd.f32 %v947, %v995
        %v997 = vpop.f32.mrb[0].mxu0
        %v998 = vpop.f32.mrb[0].mxu0
        %v999 = vadd.f32 %v947, %v998
        %v1000 = vpop.f32.mrb[0].mxu0
        %1001 = vdwg.mxu0
        %v1002 = vpack.c.bf16 %v868, %v868
        %v1003 = vpack.c.bf16 %v871, %v871
        %v1004 = vpack.c.bf16 %v932, %v932
        %v1005 = vpack.c.bf16 %v935, %v935
        %v1006 = vpack.c.bf16 %v996, %v996
        %v1007 = vpack.c.bf16 %v999, %v999
        %vm1008 = vcmask 64512
        %v1010 = vsel %vm1008, %v1002, 0
        %v1013 = vsel %vm1008, %v1004, 0
        %1015 = vmatprep.subr.bf16.mxu0 0
        %1016 = vmatpush1.bf16.xpose.msra.mxu0 %v1013
        %1017 = vmatprep.subr.bf16.mxu0 0
        %1018 = vmatpush1.bf16.xpose.msra.mxu0 0
        %1019 = vmatprep.subr.bf16.mxu0 0
        %1020 = vmatpush1.bf16.xpose.msra.mxu0 0
        %1021 = vmatprep.subr.bf16.mxu0 0
        %1022 = vmatpush1.bf16.xpose.msra.mxu0 0
        %1023 = vmatprep.subr.bf16.mxu0 0
        %1024 = vmatpush1.bf16.xpose.msra.mxu0 0
        %1025 = vmatprep.subr.bf16.mxu0 0
        %1026 = vmatpush1.bf16.xpose.msra.mxu0 0
        %1027 = vmatprep.subr.bf16.mxu0 0
        %1028 = vmatpush1.bf16.xpose.msra.mxu0 0
        %1029 = vmatprep.subr.bf16.mxu0 0
        %1030 = vmatpush1.bf16.xpose.msra.mxu0 0
        %1031 = vmatprep.subr.bf16.mxu0 0
        %1032 = vmatpush1.bf16.xpose.msra.mxu0 0
        %1033 = vmatprep.subr.bf16.mxu0 0
        %1034 = vmatpush1.bf16.xpose.msra.mxu0 0
        %1035 = vmatprep.subr.bf16.mxu0 0
        %1036 = vmatpush1.bf16.xpose.msra.mxu0 0
        %1037 = vmatprep.subr.bf16.mxu0 0
        %1038 = vmatpush1.bf16.xpose.msra.mxu0 0
        %1039 = vmatprep.subr.bf16.mxu0 0
        %1040 = vmatpush1.bf16.xpose.msra.mxu0 0
        %1041 = vmatprep.subr.bf16.mxu0 0
        %1042 = vmatpush1.bf16.xpose.msra.mxu0 0
        %1043 = vmatprep.subr.bf16.mxu0 0
        %1044 = vmatpush1.bf16.xpose.msra.mxu0 0
        %1045 = vmatprep.subr.bf16.mxu0 0
        %1046 = vmatpush1.bf16.xpose.msra.mxu0 0
        %1047 = vmatprep.mubr.bf16.mxu0 0
        %1048 = vmatmul.mubr.bf16.gmra.mrb[0].mxu0 %v1010
        %v1049 = vpop.f32.mrb[0].mxu0
        %v1050 = vadd.f32 0.0, %v1049
        %v1051 = vpop.f32.mrb[0].mxu0
        %v1052 = vpop.f32.mrb[0].mxu0
        %v1053 = vpop.f32.mrb[0].mxu0
        %1054 = vdwg.mxu0
        %v1056 = vsel %vm1008, %v1003, 0
        %v1059 = vsel %vm1008, %v1005, 0
        %1061 = vmatprep.subr.bf16.mxu0 0
        %1062 = vmatpush1.bf16.xpose.msra.mxu0 %v1059
        %1063 = vmatprep.subr.bf16.mxu0 0
        %1064 = vmatpush1.bf16.xpose.msra.mxu0 0
        %1065 = vmatprep.subr.bf16.mxu0 0
        %1066 = vmatpush1.bf16.xpose.msra.mxu0 0
        %1067 = vmatprep.subr.bf16.mxu0 0
        %1068 = vmatpush1.bf16.xpose.msra.mxu0 0
        %1069 = vmatprep.subr.bf16.mxu0 0
        %1070 = vmatpush1.bf16.xpose.msra.mxu0 0
        %1071 = vmatprep.subr.bf16.mxu0 0
        %1072 = vmatpush1.bf16.xpose.msra.mxu0 0
        %1073 = vmatprep.subr.bf16.mxu0 0
        %1074 = vmatpush1.bf16.xpose.msra.mxu0 0
        %1075 = vmatprep.subr.bf16.mxu0 0
        %1076 = vmatpush1.bf16.xpose.msra.mxu0 0
        %1077 = vmatprep.subr.bf16.mxu0 0
        %1078 = vmatpush1.bf16.xpose.msra.mxu0 0
        %1079 = vmatprep.subr.bf16.mxu0 0
        %1080 = vmatpush1.bf16.xpose.msra.mxu0 0
        %1081 = vmatprep.subr.bf16.mxu0 0
        %1082 = vmatpush1.bf16.xpose.msra.mxu0 0
        %1083 = vmatprep.subr.bf16.mxu0 0
        %1084 = vmatpush1.bf16.xpose.msra.mxu0 0
        %1085 = vmatprep.subr.bf16.mxu0 0
        %1086 = vmatpush1.bf16.xpose.msra.mxu0 0
        %1087 = vmatprep.subr.bf16.mxu0 0
        %1088 = vmatpush1.bf16.xpose.msra.mxu0 0
        %1089 = vmatprep.subr.bf16.mxu0 0
        %1090 = vmatpush1.bf16.xpose.msra.mxu0 0
        %1091 = vmatprep.subr.bf16.mxu0 0
        %1092 = vmatpush1.bf16.xpose.msra.mxu0 0
        %1093 = vmatprep.mubr.bf16.mxu0 0
        %1094 = vmatmul.mubr.bf16.gmra.mrb[0].mxu0 %v1056
        %v1095 = vpop.f32.mrb[0].mxu0
        %v1096 = vadd.f32 0.0, %v1095
        %v1097 = vpop.f32.mrb[0].mxu0
        %v1098 = vpop.f32.mrb[0].mxu0
        %v1099 = vpop.f32.mrb[0].mxu0
        %1100 = vdwg.mxu0
        %v1101 = vsel %vm1008, %v1050, -inf
        %1102 = vmax.xlane.f32.xlu0 %v1101
        %v1103 = vpop.xlane.xlu0 %1102
        %v1104 = vsel %vm1008, %v1096, -inf
        %1105 = vmax.xlane.f32.xlu0 %v1104
        %v1106 = vpop.xlane.xlu0 %1105
        %v1107 = vsub.f32 %v1050, %v1103
        %v1108 = vsub.f32 %v1096, %v1106
        %v1109 = vmul.f32 %v1107, 1.442695
        %v1110 = vpow.pop %v1109
        %v1111 = vmul.f32 %v1108, 1.442695
        %v1112 = vpow.pop %v1111
        %v1113 = vsel %vm1008, %v1110, 0.0
        %1114 = vadd.xlane.f32.xlu0 %v1113
        %v1115 = vpop.xlane.xlu0 %1114
        %v1116 = vsel %vm1008, %v1112, 0.0
        %1117 = vadd.xlane.f32.xlu0 %v1116
        %v1118 = vpop.xlane.xlu0 %1117
        %v1119 = vrcp.pop %v1115
        %v1120 = vrcp.pop %v1118
        %v1121 = vmul.f32 %v1110, %v1119
        %v1122 = vmul.f32 %v1112, %v1120
        %v1123 = vpack.c.bf16 %v1121, %v1121
        %v1124 = vpack.c.bf16 %v1122, %v1122
        %v1126 = vsel %vm1008, %v1123, 0
        %vm1128 = vcmask 1043456
        %v1130 = vsel %vm1128, %v1006, 0
        %1132 = vmatprep.subr.bf16.mxu0 0
        %1133 = vmatpush1.bf16.msra.mxu0 %v1130
        %1134 = vmatprep.subr.bf16.mxu0 0
        %1135 = vmatpush1.bf16.msra.mxu0 0
        %1136 = vmatprep.subr.bf16.mxu0 0
        %1137 = vmatpush1.bf16.msra.mxu0 0
        %1138 = vmatprep.subr.bf16.mxu0 0
        %1139 = vmatpush1.bf16.msra.mxu0 0
        %1140 = vmatprep.subr.bf16.mxu0 0
        %1141 = vmatpush1.bf16.msra.mxu0 0
        %1142 = vmatprep.subr.bf16.mxu0 0
        %1143 = vmatpush1.bf16.msra.mxu0 0
        %1144 = vmatprep.subr.bf16.mxu0 0
        %1145 = vmatpush1.bf16.msra.mxu0 0
        %1146 = vmatprep.subr.bf16.mxu0 0
        %1147 = vmatpush1.bf16.msra.mxu0 0
        %1148 = vmatprep.subr.bf16.mxu0 0
        %1149 = vmatpush1.bf16.msra.mxu0 0
        %1150 = vmatprep.subr.bf16.mxu0 0
        %1151 = vmatpush1.bf16.msra.mxu0 0
        %1152 = vmatprep.subr.bf16.mxu0 0
        %1153 = vmatpush1.bf16.msra.mxu0 0
        %1154 = vmatprep.subr.bf16.mxu0 0
        %1155 = vmatpush1.bf16.msra.mxu0 0
        %1156 = vmatprep.subr.bf16.mxu0 0
        %1157 = vmatpush1.bf16.msra.mxu0 0
        %1158 = vmatprep.subr.bf16.mxu0 0
        %1159 = vmatpush1.bf16.msra.mxu0 0
        %1160 = vmatprep.subr.bf16.mxu0 0
        %1161 = vmatpush1.bf16.msra.mxu0 0
        %1162 = vmatprep.subr.bf16.mxu0 0
        %1163 = vmatpush1.bf16.msra.mxu0 0
        %1164 = vmatprep.mubr.bf16.mxu0 0
        %1165 = vmatmul.mubr.bf16.gmra.mrb[0].mxu0 %v1126
        %v1166 = vpop.f32.mrb[0].mxu0
        %v1167 = vadd.f32 0.0, %v1166
        %v1168 = vpop.f32.mrb[0].mxu0
        %v1169 = vpop.f32.mrb[0].mxu0
        %v1170 = vpop.f32.mrb[0].mxu0
        %1171 = vdwg.mxu0
        %v1173 = vsel %vm1008, %v1124, 0
        %v1176 = vsel %vm1128, %v1007, 0
        %1178 = vmatprep.subr.bf16.mxu0 0
        %1179 = vmatpush1.bf16.msra.mxu0 %v1176
        %1180 = vmatprep.subr.bf16.mxu0 0
        %1181 = vmatpush1.bf16.msra.mxu0 0
        %1182 = vmatprep.subr.bf16.mxu0 0
        %1183 = vmatpush1.bf16.msra.mxu0 0
        %1184 = vmatprep.subr.bf16.mxu0 0
        %1185 = vmatpush1.bf16.msra.mxu0 0
        %1186 = vmatprep.subr.bf16.mxu0 0
        %1187 = vmatpush1.bf16.msra.mxu0 0
        %1188 = vmatprep.subr.bf16.mxu0 0
        %1189 = vmatpush1.bf16.msra.mxu0 0
        %1190 = vmatprep.subr.bf16.mxu0 0
        %1191 = vmatpush1.bf16.msra.mxu0 0
        %1192 = vmatprep.subr.bf16.mxu0 0
        %1193 = vmatpush1.bf16.msra.mxu0 0
        %1194 = vmatprep.subr.bf16.mxu0 0
        %1195 = vmatpush1.bf16.msra.mxu0 0
        %1196 = vmatprep.subr.bf16.mxu0 0
        %1197 = vmatpush1.bf16.msra.mxu0 0
        %1198 = vmatprep.subr.bf16.mxu0 0
        %1199 = vmatpush1.bf16.msra.mxu0 0
        %1200 = vmatprep.subr.bf16.mxu0 0
        %1201 = vmatpush1.bf16.msra.mxu0 0
        %1202 = vmatprep.subr.bf16.mxu0 0
        %1203 = vmatpush1.bf16.msra.mxu0 0
        %1204 = vmatprep.subr.bf16.mxu0 0
        %1205 = vmatpush1.bf16.msra.mxu0 0
        %1206 = vmatprep.subr.bf16.mxu0 0
        %1207 = vmatpush1.bf16.msra.mxu0 0
        %1208 = vmatprep.subr.bf16.mxu0 0
        %1209 = vmatpush1.bf16.msra.mxu0 0
        %1210 = vmatprep.mubr.bf16.mxu0 0
        %1211 = vmatmul.mubr.bf16.gmra.mrb[0].mxu0 %v1173
        %v1212 = vpop.f32.mrb[0].mxu0
        %v1213 = vadd.f32 0.0, %v1212
        %v1214 = vpop.f32.mrb[0].mxu0
        %v1215 = vpop.f32.mrb[0].mxu0
        %v1216 = vpop.f32.mrb[0].mxu0
        %1217 = vdwg.mxu0
        %v1218 = vpack.c.bf16 %v1167, %v1167
        %v1219 = vpack.c.bf16 %v1213, %v1213
        %v1220 = vld [vmem:[%s754] sm:$0xf]
        %s1221 = scalar_lea.vmem %s727, 16
        %v1222 = vld [vmem:[%s1221] sm:$0xf]
        %v1223 = vld [vmem:[%s1221 + $0x4] sm:$0xf]
        %v1224 = vld [vmem:[%s1221 + $0x8] sm:$0xf]
        %v1225 = vld [vmem:[%s1221 + $0xc] sm:$0xf]
        %s1226 = scalar_lea.vmem %s731, 1
        %v1227 = vld [vmem:[%s1226] sm:$0x1]
        %v1229 = vlaneseq
        %v1230 = vshrl.u32 %v1229, 7
        %v1231 = vsub.s32 0, %v1230
        %v1232 = vrot.slane %v1227, %v1231
        %v1238 = vunpack.c.l.b16 %v1222
        %v1239 = vunpack.c.l.b16 %v1223
        %v1240 = vunpack.c.l.b16 %v1224
        %v1241 = vunpack.c.l.b16 %v1225
        %v1242 = vpack.c.b16 %v1239, %v1238
        %v1243 = vpack.c.b16 %v1241, %v1240
        %1246 = vmatprep.subr.bf16.mxu0 0
        %1247 = vmatpush1.bf16.msra.mxu0 %v1242
        %1248 = vmatprep.subr.bf16.mxu0 0
        %1249 = vmatpush1.bf16.msra.mxu0 %v1243
        %1250 = vmatprep.subr.bf16.mxu0 0
        %1251 = vmatpush1.bf16.msra.mxu0 0
        %1252 = vmatprep.subr.bf16.mxu0 0
        %1253 = vmatpush1.bf16.msra.mxu0 0
        %1254 = vmatprep.subr.bf16.mxu0 0
        %1255 = vmatpush1.bf16.msra.mxu0 0
        %1256 = vmatprep.subr.bf16.mxu0 0
        %1257 = vmatpush1.bf16.msra.mxu0 0
        %1258 = vmatprep.subr.bf16.mxu0 0
        %1259 = vmatpush1.bf16.msra.mxu0 0
        %1260 = vmatprep.subr.bf16.mxu0 0
        %1261 = vmatpush1.bf16.msra.mxu0 0
        %1262 = vmatprep.subr.bf16.mxu0 0
        %1263 = vmatpush1.bf16.msra.mxu0 0
        %1264 = vmatprep.subr.bf16.mxu0 0
        %1265 = vmatpush1.bf16.msra.mxu0 0
        %1266 = vmatprep.subr.bf16.mxu0 0
        %1267 = vmatpush1.bf16.msra.mxu0 0
        %1268 = vmatprep.subr.bf16.mxu0 0
        %1269 = vmatpush1.bf16.msra.mxu0 0
        %1270 = vmatprep.subr.bf16.mxu0 0
        %1271 = vmatpush1.bf16.msra.mxu0 0
        %1272 = vmatprep.subr.bf16.mxu0 0
        %1273 = vmatpush1.bf16.msra.mxu0 0
        %1274 = vmatprep.subr.bf16.mxu0 0
        %1275 = vmatpush1.bf16.msra.mxu0 0
        %1276 = vmatprep.subr.bf16.mxu0 0
        %1277 = vmatpush1.bf16.msra.mxu0 0
        %1278 = vmatprep.mubr.bf16.mxu0 0
        %1279 = vmatmul.mubr.bf16.gmra.mrb[0].mxu0 %v831
        %v1280 = vpop.f32.mrb[0].mxu0
        %v1281 = vadd.f32 %v1232, %v1280
        %v1282 = vpop.f32.mrb[0].mxu0
        %v1283 = vpop.f32.mrb[0].mxu0
        %v1284 = vadd.f32 %v1232, %v1283
        %v1285 = vpop.f32.mrb[0].mxu0
        %1286 = vdwg.mxu0
        %s1287 = scalar_lea.vmem %s736, 16
        %v1288 = vld [vmem:[%s1287] sm:$0xf]
        %v1289 = vld [vmem:[%s1287 + $0x4] sm:$0xf]
        %v1290 = vld [vmem:[%s1287 + $0x8] sm:$0xf]
        %v1291 = vld [vmem:[%s1287 + $0xc] sm:$0xf]
        %s1292 = scalar_lea.vmem %s740, 1
        %v1293 = vld [vmem:[%s1292] sm:$0x1]
        %v1295 = vlaneseq
        %v1296 = vshrl.u32 %v1295, 7
        %v1297 = vsub.s32 0, %v1296
        %v1298 = vrot.slane %v1293, %v1297
        %v1304 = vunpack.c.l.b16 %v1288
        %v1305 = vunpack.c.l.b16 %v1289
        %v1306 = vunpack.c.l.b16 %v1290
        %v1307 = vunpack.c.l.b16 %v1291
        %v1308 = vpack.c.b16 %v1305, %v1304
        %v1309 = vpack.c.b16 %v1307, %v1306
        %1312 = vmatprep.subr.bf16.mxu0 0
        %1313 = vmatpush1.bf16.msra.mxu0 %v1308
        %1314 = vmatprep.subr.bf16.mxu0 0
        %1315 = vmatpush1.bf16.msra.mxu0 %v1309
        %1316 = vmatprep.subr.bf16.mxu0 0
        %1317 = vmatpush1.bf16.msra.mxu0 0
        %1318 = vmatprep.subr.bf16.mxu0 0
        %1319 = vmatpush1.bf16.msra.mxu0 0
        %1320 = vmatprep.subr.bf16.mxu0 0
        %1321 = vmatpush1.bf16.msra.mxu0 0
        %1322 = vmatprep.subr.bf16.mxu0 0
        %1323 = vmatpush1.bf16.msra.mxu0 0
        %1324 = vmatprep.subr.bf16.mxu0 0
        %1325 = vmatpush1.bf16.msra.mxu0 0
        %1326 = vmatprep.subr.bf16.mxu0 0
        %1327 = vmatpush1.bf16.msra.mxu0 0
        %1328 = vmatprep.subr.bf16.mxu0 0
        %1329 = vmatpush1.bf16.msra.mxu0 0
        %1330 = vmatprep.subr.bf16.mxu0 0
        %1331 = vmatpush1.bf16.msra.mxu0 0
        %1332 = vmatprep.subr.bf16.mxu0 0
        %1333 = vmatpush1.bf16.msra.mxu0 0
        %1334 = vmatprep.subr.bf16.mxu0 0
        %1335 = vmatpush1.bf16.msra.mxu0 0
        %1336 = vmatprep.subr.bf16.mxu0 0
        %1337 = vmatpush1.bf16.msra.mxu0 0
        %1338 = vmatprep.subr.bf16.mxu0 0
        %1339 = vmatpush1.bf16.msra.mxu0 0
        %1340 = vmatprep.subr.bf16.mxu0 0
        %1341 = vmatpush1.bf16.msra.mxu0 0
        %1342 = vmatprep.subr.bf16.mxu0 0
        %1343 = vmatpush1.bf16.msra.mxu0 0
        %1344 = vmatprep.mubr.bf16.mxu0 0
        %1345 = vmatmul.mubr.bf16.gmra.mrb[0].mxu0 %v831
        %v1346 = vpop.f32.mrb[0].mxu0
        %v1347 = vadd.f32 %v1298, %v1346
        %v1348 = vpop.f32.mrb[0].mxu0
        %v1349 = vpop.f32.mrb[0].mxu0
        %v1350 = vadd.f32 %v1298, %v1349
        %v1351 = vpop.f32.mrb[0].mxu0
        %1352 = vdwg.mxu0
        %s1353 = scalar_lea.vmem %s745, 16
        %v1354 = vld [vmem:[%s1353] sm:$0xf]
        %v1355 = vld [vmem:[%s1353 + $0x4] sm:$0xf]
        %v1356 = vld [vmem:[%s1353 + $0x8] sm:$0xf]
        %v1357 = vld [vmem:[%s1353 + $0xc] sm:$0xf]
        %s1358 = scalar_lea.vmem %s749, 1
        %v1359 = vld [vmem:[%s1358] sm:$0x1]
        %v1361 = vlaneseq
        %v1362 = vshrl.u32 %v1361, 7
        %v1363 = vsub.s32 0, %v1362
        %v1364 = vrot.slane %v1359, %v1363
        %v1370 = vunpack.c.l.b16 %v1354
        %v1371 = vunpack.c.l.b16 %v1355
        %v1372 = vunpack.c.l.b16 %v1356
        %v1373 = vunpack.c.l.b16 %v1357
        %v1374 = vpack.c.b16 %v1371, %v1370
        %v1375 = vpack.c.b16 %v1373, %v1372
        %1378 = vmatprep.subr.bf16.mxu0 0
        %1379 = vmatpush1.bf16.msra.mxu0 %v1374
        %1380 = vmatprep.subr.bf16.mxu0 0
        %1381 = vmatpush1.bf16.msra.mxu0 %v1375
        %1382 = vmatprep.subr.bf16.mxu0 0
        %1383 = vmatpush1.bf16.msra.mxu0 0
        %1384 = vmatprep.subr.bf16.mxu0 0
        %1385 = vmatpush1.bf16.msra.mxu0 0
        %1386 = vmatprep.subr.bf16.mxu0 0
        %1387 = vmatpush1.bf16.msra.mxu0 0
        %1388 = vmatprep.subr.bf16.mxu0 0
        %1389 = vmatpush1.bf16.msra.mxu0 0
        %1390 = vmatprep.subr.bf16.mxu0 0
        %1391 = vmatpush1.bf16.msra.mxu0 0
        %1392 = vmatprep.subr.bf16.mxu0 0
        %1393 = vmatpush1.bf16.msra.mxu0 0
        %1394 = vmatprep.subr.bf16.mxu0 0
        %1395 = vmatpush1.bf16.msra.mxu0 0
        %1396 = vmatprep.subr.bf16.mxu0 0
        %1397 = vmatpush1.bf16.msra.mxu0 0
        %1398 = vmatprep.subr.bf16.mxu0 0
        %1399 = vmatpush1.bf16.msra.mxu0 0
        %1400 = vmatprep.subr.bf16.mxu0 0
        %1401 = vmatpush1.bf16.msra.mxu0 0
        %1402 = vmatprep.subr.bf16.mxu0 0
        %1403 = vmatpush1.bf16.msra.mxu0 0
        %1404 = vmatprep.subr.bf16.mxu0 0
        %1405 = vmatpush1.bf16.msra.mxu0 0
        %1406 = vmatprep.subr.bf16.mxu0 0
        %1407 = vmatpush1.bf16.msra.mxu0 0
        %1408 = vmatprep.subr.bf16.mxu0 0
        %1409 = vmatpush1.bf16.msra.mxu0 0
        %1410 = vmatprep.mubr.bf16.mxu0 0
        %1411 = vmatmul.mubr.bf16.gmra.mrb[0].mxu0 %v831
        %v1412 = vpop.f32.mrb[0].mxu0
        %v1413 = vadd.f32 %v1364, %v1412
        %v1414 = vpop.f32.mrb[0].mxu0
        %v1415 = vpop.f32.mrb[0].mxu0
        %v1416 = vadd.f32 %v1364, %v1415
        %v1417 = vpop.f32.mrb[0].mxu0
        %1418 = vdwg.mxu0
        %v1419 = vpack.c.bf16 %v1281, %v1281
        %v1420 = vpack.c.bf16 %v1284, %v1284
        %v1421 = vpack.c.bf16 %v1347, %v1347
        %v1422 = vpack.c.bf16 %v1350, %v1350
        %v1423 = vpack.c.bf16 %v1413, %v1413
        %v1424 = vpack.c.bf16 %v1416, %v1416
        %v1426 = vsel %vm1008, %v1419, 0
        %v1429 = vsel %vm1008, %v1421, 0
        %1431 = vmatprep.subr.bf16.mxu0 0
        %1432 = vmatpush1.bf16.xpose.msra.mxu0 %v1429
        %1433 = vmatprep.subr.bf16.mxu0 0
        %1434 = vmatpush1.bf16.xpose.msra.mxu0 0
        %1435 = vmatprep.subr.bf16.mxu0 0
        %1436 = vmatpush1.bf16.xpose.msra.mxu0 0
        %1437 = vmatprep.subr.bf16.mxu0 0
        %1438 = vmatpush1.bf16.xpose.msra.mxu0 0
        %1439 = vmatprep.subr.bf16.mxu0 0
        %1440 = vmatpush1.bf16.xpose.msra.mxu0 0
        %1441 = vmatprep.subr.bf16.mxu0 0
        %1442 = vmatpush1.bf16.xpose.msra.mxu0 0
        %1443 = vmatprep.subr.bf16.mxu0 0
        %1444 = vmatpush1.bf16.xpose.msra.mxu0 0
        %1445 = vmatprep.subr.bf16.mxu0 0
        %1446 = vmatpush1.bf16.xpose.msra.mxu0 0
        %1447 = vmatprep.subr.bf16.mxu0 0
        %1448 = vmatpush1.bf16.xpose.msra.mxu0 0
        %1449 = vmatprep.subr.bf16.mxu0 0
        %1450 = vmatpush1.bf16.xpose.msra.mxu0 0
        %1451 = vmatprep.subr.bf16.mxu0 0
        %1452 = vmatpush1.bf16.xpose.msra.mxu0 0
        %1453 = vmatprep.subr.bf16.mxu0 0
        %1454 = vmatpush1.bf16.xpose.msra.mxu0 0
        %1455 = vmatprep.subr.bf16.mxu0 0
        %1456 = vmatpush1.bf16.xpose.msra.mxu0 0
        %1457 = vmatprep.subr.bf16.mxu0 0
        %1458 = vmatpush1.bf16.xpose.msra.mxu0 0
        %1459 = vmatprep.subr.bf16.mxu0 0
        %1460 = vmatpush1.bf16.xpose.msra.mxu0 0
        %1461 = vmatprep.subr.bf16.mxu0 0
        %1462 = vmatpush1.bf16.xpose.msra.mxu0 0
        %1463 = vmatprep.mubr.bf16.mxu0 0
        %1464 = vmatmul.mubr.bf16.gmra.mrb[0].mxu0 %v1426
        %v1465 = vpop.f32.mrb[0].mxu0
        %v1466 = vadd.f32 0.0, %v1465
        %v1467 = vpop.f32.mrb[0].mxu0
        %v1468 = vpop.f32.mrb[0].mxu0
        %v1469 = vpop.f32.mrb[0].mxu0
        %1470 = vdwg.mxu0
        %v1472 = vsel %vm1008, %v1420, 0
        %v1475 = vsel %vm1008, %v1422, 0
        %1477 = vmatprep.subr.bf16.mxu0 0
        %1478 = vmatpush1.bf16.xpose.msra.mxu0 %v1475
        %1479 = vmatprep.subr.bf16.mxu0 0
        %1480 = vmatpush1.bf16.xpose.msra.mxu0 0
        %1481 = vmatprep.subr.bf16.mxu0 0
        %1482 = vmatpush1.bf16.xpose.msra.mxu0 0
        %1483 = vmatprep.subr.bf16.mxu0 0
        %1484 = vmatpush1.bf16.xpose.msra.mxu0 0
        %1485 = vmatprep.subr.bf16.mxu0 0
        %1486 = vmatpush1.bf16.xpose.msra.mxu0 0
        %1487 = vmatprep.subr.bf16.mxu0 0
        %1488 = vmatpush1.bf16.xpose.msra.mxu0 0
        %1489 = vmatprep.subr.bf16.mxu0 0
        %1490 = vmatpush1.bf16.xpose.msra.mxu0 0
        %1491 = vmatprep.subr.bf16.mxu0 0
        %1492 = vmatpush1.bf16.xpose.msra.mxu0 0
        %1493 = vmatprep.subr.bf16.mxu0 0
        %1494 = vmatpush1.bf16.xpose.msra.mxu0 0
        %1495 = vmatprep.subr.bf16.mxu0 0
        %1496 = vmatpush1.bf16.xpose.msra.mxu0 0
        %1497 = vmatprep.subr.bf16.mxu0 0
        %1498 = vmatpush1.bf16.xpose.msra.mxu0 0
        %1499 = vmatprep.subr.bf16.mxu0 0
        %1500 = vmatpush1.bf16.xpose.msra.mxu0 0
        %1501 = vmatprep.subr.bf16.mxu0 0
        %1502 = vmatpush1.bf16.xpose.msra.mxu0 0
        %1503 = vmatprep.subr.bf16.mxu0 0
        %1504 = vmatpush1.bf16.xpose.msra.mxu0 0
        %1505 = vmatprep.subr.bf16.mxu0 0
        %1506 = vmatpush1.bf16.xpose.msra.mxu0 0
        %1507 = vmatprep.subr.bf16.mxu0 0
        %1508 = vmatpush1.bf16.xpose.msra.mxu0 0
        %1509 = vmatprep.mubr.bf16.mxu0 0
        %1510 = vmatmul.mubr.bf16.gmra.mrb[0].mxu0 %v1472
        %v1511 = vpop.f32.mrb[0].mxu0
        %v1512 = vadd.f32 0.0, %v1511
        %v1513 = vpop.f32.mrb[0].mxu0
        %v1514 = vpop.f32.mrb[0].mxu0
        %v1515 = vpop.f32.mrb[0].mxu0
        %1516 = vdwg.mxu0
        %v1517 = vsel %vm1008, %v1466, -inf
        %1518 = vmax.xlane.f32.xlu0 %v1517
        %v1519 = vpop.xlane.xlu0 %1518
        %v1520 = vsel %vm1008, %v1512, -inf
        %1521 = vmax.xlane.f32.xlu0 %v1520
        %v1522 = vpop.xlane.xlu0 %1521
        %v1523 = vsub.f32 %v1466, %v1519
        %v1524 = vsub.f32 %v1512, %v1522
        %v1525 = vmul.f32 %v1523, 1.442695
        %v1526 = vpow.pop %v1525
        %v1527 = vmul.f32 %v1524, 1.442695
        %v1528 = vpow.pop %v1527
        %v1529 = vsel %vm1008, %v1526, 0.0
        %1530 = vadd.xlane.f32.xlu0 %v1529
        %v1531 = vpop.xlane.xlu0 %1530
        %v1532 = vsel %vm1008, %v1528, 0.0
        %1533 = vadd.xlane.f32.xlu0 %v1532
        %v1534 = vpop.xlane.xlu0 %1533
        %v1535 = vrcp.pop %v1531
        %v1536 = vrcp.pop %v1534
        %v1537 = vmul.f32 %v1526, %v1535
        %v1538 = vmul.f32 %v1528, %v1536
        %v1539 = vpack.c.bf16 %v1537, %v1537
        %v1540 = vpack.c.bf16 %v1538, %v1538
        %v1542 = vsel %vm1008, %v1539, 0
        %v1545 = vsel %vm1128, %v1423, 0
        %1547 = vmatprep.subr.bf16.mxu0 0
        %1548 = vmatpush1.bf16.msra.mxu0 %v1545
        %1549 = vmatprep.subr.bf16.mxu0 0
        %1550 = vmatpush1.bf16.msra.mxu0 0
        %1551 = vmatprep.subr.bf16.mxu0 0
        %1552 = vmatpush1.bf16.msra.mxu0 0
        %1553 = vmatprep.subr.bf16.mxu0 0
        %1554 = vmatpush1.bf16.msra.mxu0 0
        %1555 = vmatprep.subr.bf16.mxu0 0
        %1556 = vmatpush1.bf16.msra.mxu0 0
        %1557 = vmatprep.subr.bf16.mxu0 0
        %1558 = vmatpush1.bf16.msra.mxu0 0
        %1559 = vmatprep.subr.bf16.mxu0 0
        %1560 = vmatpush1.bf16.msra.mxu0 0
        %1561 = vmatprep.subr.bf16.mxu0 0
        %1562 = vmatpush1.bf16.msra.mxu0 0
        %1563 = vmatprep.subr.bf16.mxu0 0
        %1564 = vmatpush1.bf16.msra.mxu0 0
        %1565 = vmatprep.subr.bf16.mxu0 0
        %1566 = vmatpush1.bf16.msra.mxu0 0
        %1567 = vmatprep.subr.bf16.mxu0 0
        %1568 = vmatpush1.bf16.msra.mxu0 0
        %1569 = vmatprep.subr.bf16.mxu0 0
        %1570 = vmatpush1.bf16.msra.mxu0 0
        %1571 = vmatprep.subr.bf16.mxu0 0
        %1572 = vmatpush1.bf16.msra.mxu0 0
        %1573 = vmatprep.subr.bf16.mxu0 0
        %1574 = vmatpush1.bf16.msra.mxu0 0
        %1575 = vmatprep.subr.bf16.mxu0 0
        %1576 = vmatpush1.bf16.msra.mxu0 0
        %1577 = vmatprep.subr.bf16.mxu0 0
        %1578 = vmatpush1.bf16.msra.mxu0 0
        %1579 = vmatprep.mubr.bf16.mxu0 0
        %1580 = vmatmul.mubr.bf16.gmra.mrb[0].mxu0 %v1542
        %v1581 = vpop.f32.mrb[0].mxu0
        %v1582 = vadd.f32 0.0, %v1581
        %v1583 = vpop.f32.mrb[0].mxu0
        %v1584 = vpop.f32.mrb[0].mxu0
        %v1585 = vpop.f32.mrb[0].mxu0
        %1586 = vdwg.mxu0
        %v1588 = vsel %vm1008, %v1540, 0
        %v1591 = vsel %vm1128, %v1424, 0
        %1593 = vmatprep.subr.bf16.mxu0 0
        %1594 = vmatpush1.bf16.msra.mxu0 %v1591
        %1595 = vmatprep.subr.bf16.mxu0 0
        %1596 = vmatpush1.bf16.msra.mxu0 0
        %1597 = vmatprep.subr.bf16.mxu0 0
        %1598 = vmatpush1.bf16.msra.mxu0 0
        %1599 = vmatprep.subr.bf16.mxu0 0
        %1600 = vmatpush1.bf16.msra.mxu0 0
        %1601 = vmatprep.subr.bf16.mxu0 0
        %1602 = vmatpush1.bf16.msra.mxu0 0
        %1603 = vmatprep.subr.bf16.mxu0 0
        %1604 = vmatpush1.bf16.msra.mxu0 0
        %1605 = vmatprep.subr.bf16.mxu0 0
        %1606 = vmatpush1.bf16.msra.mxu0 0
        %1607 = vmatprep.subr.bf16.mxu0 0
        %1608 = vmatpush1.bf16.msra.mxu0 0
        %1609 = vmatprep.subr.bf16.mxu0 0
        %1610 = vmatpush1.bf16.msra.mxu0 0
        %1611 = vmatprep.subr.bf16.mxu0 0
        %1612 = vmatpush1.bf16.msra.mxu0 0
        %1613 = vmatprep.subr.bf16.mxu0 0
        %1614 = vmatpush1.bf16.msra.mxu0 0
        %1615 = vmatprep.subr.bf16.mxu0 0
        %1616 = vmatpush1.bf16.msra.mxu0 0
        %1617 = vmatprep.subr.bf16.mxu0 0
        %1618 = vmatpush1.bf16.msra.mxu0 0
        %1619 = vmatprep.subr.bf16.mxu0 0
        %1620 = vmatpush1.bf16.msra.mxu0 0
        %1621 = vmatprep.subr.bf16.mxu0 0
        %1622 = vmatpush1.bf16.msra.mxu0 0
        %1623 = vmatprep.subr.bf16.mxu0 0
        %1624 = vmatpush1.bf16.msra.mxu0 0
        %1625 = vmatprep.mubr.bf16.mxu0 0
        %1626 = vmatmul.mubr.bf16.gmra.mrb[0].mxu0 %v1588
        %v1627 = vpop.f32.mrb[0].mxu0
        %v1628 = vadd.f32 0.0, %v1627
        %v1629 = vpop.f32.mrb[0].mxu0
        %v1630 = vpop.f32.mrb[0].mxu0
        %v1631 = vpop.f32.mrb[0].mxu0
        %1632 = vdwg.mxu0
        %v1633 = vpack.c.bf16 %v1582, %v1582
        %v1634 = vpack.c.bf16 %v1628, %v1628
        %s1635 = scalar_lea.vmem %s754, 4
        %v1636 = vld [vmem:[%s1635] sm:$0xf]
        %v1639 = vunpack.c.l.b16 %v1633
        %v1640 = vunpack.c.l.b16 %v1634
        %v1641 = vpack.c.b16 %v1640, %v1639
        %v1643 = vsel %vm1008, %v1641, 0
        %v1646 = vsel %vm1128, %v1636, 0
        %1648 = vmatprep.subr.bf16.mxu0 0
        %1649 = vmatpush1.bf16.msra.mxu0 %v1646
        %1650 = vmatprep.subr.bf16.mxu0 0
        %1651 = vmatpush1.bf16.msra.mxu0 0
        %1652 = vmatprep.subr.bf16.mxu0 0
        %1653 = vmatpush1.bf16.msra.mxu0 0
        %1654 = vmatprep.subr.bf16.mxu0 0
        %1655 = vmatpush1.bf16.msra.mxu0 0
        %1656 = vmatprep.subr.bf16.mxu0 0
        %1657 = vmatpush1.bf16.msra.mxu0 0
        %1658 = vmatprep.subr.bf16.mxu0 0
        %1659 = vmatpush1.bf16.msra.mxu0 0
        %1660 = vmatprep.subr.bf16.mxu0 0
        %1661 = vmatpush1.bf16.msra.mxu0 0
        %1662 = vmatprep.subr.bf16.mxu0 0
        %1663 = vmatpush1.bf16.msra.mxu0 0
        %1664 = vmatprep.subr.bf16.mxu0 0
        %1665 = vmatpush1.bf16.msra.mxu0 0
        %1666 = vmatprep.subr.bf16.mxu0 0
        %1667 = vmatpush1.bf16.msra.mxu0 0
        %1668 = vmatprep.subr.bf16.mxu0 0
        %1669 = vmatpush1.bf16.msra.mxu0 0
        %1670 = vmatprep.subr.bf16.mxu0 0
        %1671 = vmatpush1.bf16.msra.mxu0 0
        %1672 = vmatprep.subr.bf16.mxu0 0
        %1673 = vmatpush1.bf16.msra.mxu0 0
        %1674 = vmatprep.subr.bf16.mxu0 0
        %1675 = vmatpush1.bf16.msra.mxu0 0
        %1676 = vmatprep.subr.bf16.mxu0 0
        %1677 = vmatpush1.bf16.msra.mxu0 0
        %1678 = vmatprep.subr.bf16.mxu0 0
        %1679 = vmatpush1.bf16.msra.mxu0 0
        %1680 = vmatprep.mubr.bf16.mxu0 0
        %1681 = vmatmul.mubr.bf16.gmra.mrb[0].mxu0 %v1643
        %v1682 = vpop.f32.mrb[0].mxu0
        %v1683 = vadd.f32 0.0, %v1682
        %v1684 = vpop.f32.mrb[0].mxu0
        %v1685 = vpop.f32.mrb[0].mxu0
        %v1686 = vadd.f32 0.0, %v1685
        %v1687 = vpop.f32.mrb[0].mxu0
        %1688 = vdwg.mxu0
        %v1691 = vunpack.c.l.b16 %v1218
        %v1692 = vunpack.c.l.b16 %v1219
        %v1693 = vpack.c.b16 %v1692, %v1691
        %v1695 = vsel %vm1008, %v1693, 0
        %v1698 = vsel %vm1128, %v1220, 0
        %1700 = vmatprep.subr.bf16.mxu0 0
        %1701 = vmatpush1.bf16.msra.mxu0 %v1698
        %1702 = vmatprep.subr.bf16.mxu0 0
        %1703 = vmatpush1.bf16.msra.mxu0 0
        %1704 = vmatprep.subr.bf16.mxu0 0
        %1705 = vmatpush1.bf16.msra.mxu0 0
        %1706 = vmatprep.subr.bf16.mxu0 0
        %1707 = vmatpush1.bf16.msra.mxu0 0
        %1708 = vmatprep.subr.bf16.mxu0 0
        %1709 = vmatpush1.bf16.msra.mxu0 0
        %1710 = vmatprep.subr.bf16.mxu0 0
        %1711 = vmatpush1.bf16.msra.mxu0 0
        %1712 = vmatprep.subr.bf16.mxu0 0
        %1713 = vmatpush1.bf16.msra.mxu0 0
        %1714 = vmatprep.subr.bf16.mxu0 0
        %1715 = vmatpush1.bf16.msra.mxu0 0
        %1716 = vmatprep.subr.bf16.mxu0 0
        %1717 = vmatpush1.bf16.msra.mxu0 0
        %1718 = vmatprep.subr.bf16.mxu0 0
        %1719 = vmatpush1.bf16.msra.mxu0 0
        %1720 = vmatprep.subr.bf16.mxu0 0
        %1721 = vmatpush1.bf16.msra.mxu0 0
        %1722 = vmatprep.subr.bf16.mxu0 0
        %1723 = vmatpush1.bf16.msra.mxu0 0
        %1724 = vmatprep.subr.bf16.mxu0 0
        %1725 = vmatpush1.bf16.msra.mxu0 0
        %1726 = vmatprep.subr.bf16.mxu0 0
        %1727 = vmatpush1.bf16.msra.mxu0 0
        %1728 = vmatprep.subr.bf16.mxu0 0
        %1729 = vmatpush1.bf16.msra.mxu0 0
        %1730 = vmatprep.subr.bf16.mxu0 0
        %1731 = vmatpush1.bf16.msra.mxu0 0
        %1732 = vmatprep.mubr.bf16.mxu0 0
        %1733 = vmatmul.mubr.bf16.gmra.mrb[0].mxu0 %v1695
        %v1734 = vpop.f32.mrb[0].mxu0
        %v1735 = vadd.f32 %v1683, %v1734
        %v1736 = vpop.f32.mrb[0].mxu0
        %v1737 = vpop.f32.mrb[0].mxu0
        %v1738 = vadd.f32 %v1686, %v1737
        %v1739 = vpop.f32.mrb[0].mxu0
        %1740 = vdwg.mxu0
        %s1741 = scalar_lea.vmem %s727, 32
        %v1742 = vld [vmem:[%s1741] sm:$0xf]
        %v1743 = vld [vmem:[%s1741 + $0x4] sm:$0xf]
        %v1744 = vld [vmem:[%s1741 + $0x8] sm:$0xf]
        %v1745 = vld [vmem:[%s1741 + $0xc] sm:$0xf]
        %s1746 = scalar_lea.vmem %s731, 2
        %v1747 = vld [vmem:[%s1746] sm:$0x1]
        %v1749 = vlaneseq
        %v1750 = vshrl.u32 %v1749, 7
        %v1751 = vsub.s32 0, %v1750
        %v1752 = vrot.slane %v1747, %v1751
        %v1758 = vunpack.c.l.b16 %v1742
        %v1759 = vunpack.c.l.b16 %v1743
        %v1760 = vunpack.c.l.b16 %v1744
        %v1761 = vunpack.c.l.b16 %v1745
        %v1762 = vpack.c.b16 %v1759, %v1758
        %v1763 = vpack.c.b16 %v1761, %v1760
        %1766 = vmatprep.subr.bf16.mxu0 0
        %1767 = vmatpush1.bf16.msra.mxu0 %v1762
        %1768 = vmatprep.subr.bf16.mxu0 0
        %1769 = vmatpush1.bf16.msra.mxu0 %v1763
        %1770 = vmatprep.subr.bf16.mxu0 0
        %1771 = vmatpush1.bf16.msra.mxu0 0
        %1772 = vmatprep.subr.bf16.mxu0 0
        %1773 = vmatpush1.bf16.msra.mxu0 0
        %1774 = vmatprep.subr.bf16.mxu0 0
        %1775 = vmatpush1.bf16.msra.mxu0 0
        %1776 = vmatprep.subr.bf16.mxu0 0
        %1777 = vmatpush1.bf16.msra.mxu0 0
        %1778 = vmatprep.subr.bf16.mxu0 0
        %1779 = vmatpush1.bf16.msra.mxu0 0
        %1780 = vmatprep.subr.bf16.mxu0 0
        %1781 = vmatpush1.bf16.msra.mxu0 0
        %1782 = vmatprep.subr.bf16.mxu0 0
        %1783 = vmatpush1.bf16.msra.mxu0 0
        %1784 = vmatprep.subr.bf16.mxu0 0
        %1785 = vmatpush1.bf16.msra.mxu0 0
        %1786 = vmatprep.subr.bf16.mxu0 0
        %1787 = vmatpush1.bf16.msra.mxu0 0
        %1788 = vmatprep.subr.bf16.mxu0 0
        %1789 = vmatpush1.bf16.msra.mxu0 0
        %1790 = vmatprep.subr.bf16.mxu0 0
        %1791 = vmatpush1.bf16.msra.mxu0 0
        %1792 = vmatprep.subr.bf16.mxu0 0
        %1793 = vmatpush1.bf16.msra.mxu0 0
        %1794 = vmatprep.subr.bf16.mxu0 0
        %1795 = vmatpush1.bf16.msra.mxu0 0
        %1796 = vmatprep.subr.bf16.mxu0 0
        %1797 = vmatpush1.bf16.msra.mxu0 0
        %1798 = vmatprep.mubr.bf16.mxu0 0
        %1799 = vmatmul.mubr.bf16.gmra.mrb[0].mxu0 %v831
        %v1800 = vpop.f32.mrb[0].mxu0
        %v1801 = vadd.f32 %v1752, %v1800
        %v1802 = vpop.f32.mrb[0].mxu0
        %v1803 = vpop.f32.mrb[0].mxu0
        %v1804 = vadd.f32 %v1752, %v1803
        %v1805 = vpop.f32.mrb[0].mxu0
        %1806 = vdwg.mxu0
        %s1807 = scalar_lea.vmem %s736, 32
        %v1808 = vld [vmem:[%s1807] sm:$0xf]
        %v1809 = vld [vmem:[%s1807 + $0x4] sm:$0xf]
        %v1810 = vld [vmem:[%s1807 + $0x8] sm:$0xf]
        %v1811 = vld [vmem:[%s1807 + $0xc] sm:$0xf]
        %s1812 = scalar_lea.vmem %s740, 2
        %v1813 = vld [vmem:[%s1812] sm:$0x1]
        %v1815 = vlaneseq
        %v1816 = vshrl.u32 %v1815, 7
        %v1817 = vsub.s32 0, %v1816
        %v1818 = vrot.slane %v1813, %v1817
        %v1824 = vunpack.c.l.b16 %v1808
        %v1825 = vunpack.c.l.b16 %v1809
        %v1826 = vunpack.c.l.b16 %v1810
        %v1827 = vunpack.c.l.b16 %v1811
        %v1828 = vpack.c.b16 %v1825, %v1824
        %v1829 = vpack.c.b16 %v1827, %v1826
        %1832 = vmatprep.subr.bf16.mxu0 0
        %1833 = vmatpush1.bf16.msra.mxu0 %v1828
        %1834 = vmatprep.subr.bf16.mxu0 0
        %1835 = vmatpush1.bf16.msra.mxu0 %v1829
        %1836 = vmatprep.subr.bf16.mxu0 0
        %1837 = vmatpush1.bf16.msra.mxu0 0
        %1838 = vmatprep.subr.bf16.mxu0 0
        %1839 = vmatpush1.bf16.msra.mxu0 0
        %1840 = vmatprep.subr.bf16.mxu0 0
        %1841 = vmatpush1.bf16.msra.mxu0 0
        %1842 = vmatprep.subr.bf16.mxu0 0
        %1843 = vmatpush1.bf16.msra.mxu0 0
        %1844 = vmatprep.subr.bf16.mxu0 0
        %1845 = vmatpush1.bf16.msra.mxu0 0
        %1846 = vmatprep.subr.bf16.mxu0 0
        %1847 = vmatpush1.bf16.msra.mxu0 0
        %1848 = vmatprep.subr.bf16.mxu0 0
        %1849 = vmatpush1.bf16.msra.mxu0 0
        %1850 = vmatprep.subr.bf16.mxu0 0
        %1851 = vmatpush1.bf16.msra.mxu0 0
        %1852 = vmatprep.subr.bf16.mxu0 0
        %1853 = vmatpush1.bf16.msra.mxu0 0
        %1854 = vmatprep.subr.bf16.mxu0 0
        %1855 = vmatpush1.bf16.msra.mxu0 0
        %1856 = vmatprep.subr.bf16.mxu0 0
        %1857 = vmatpush1.bf16.msra.mxu0 0
        %1858 = vmatprep.subr.bf16.mxu0 0
        %1859 = vmatpush1.bf16.msra.mxu0 0
        %1860 = vmatprep.subr.bf16.mxu0 0
        %1861 = vmatpush1.bf16.msra.mxu0 0
        %1862 = vmatprep.subr.bf16.mxu0 0
        %1863 = vmatpush1.bf16.msra.mxu0 0
        %1864 = vmatprep.mubr.bf16.mxu0 0
        %1865 = vmatmul.mubr.bf16.gmra.mrb[0].mxu0 %v831
        %v1866 = vpop.f32.mrb[0].mxu0
        %v1867 = vadd.f32 %v1818, %v1866
        %v1868 = vpop.f32.mrb[0].mxu0
        %v1869 = vpop.f32.mrb[0].mxu0
        %v1870 = vadd.f32 %v1818, %v1869
        %v1871 = vpop.f32.mrb[0].mxu0
        %1872 = vdwg.mxu0
        %s1873 = scalar_lea.vmem %s745, 32
        %v1874 = vld [vmem:[%s1873] sm:$0xf]
        %v1875 = vld [vmem:[%s1873 + $0x4] sm:$0xf]
        %v1876 = vld [vmem:[%s1873 + $0x8] sm:$0xf]
        %v1877 = vld [vmem:[%s1873 + $0xc] sm:$0xf]
        %s1878 = scalar_lea.vmem %s749, 2
        %v1879 = vld [vmem:[%s1878] sm:$0x1]
        %v1881 = vlaneseq
        %v1882 = vshrl.u32 %v1881, 7
        %v1883 = vsub.s32 0, %v1882
        %v1884 = vrot.slane %v1879, %v1883
        %v1890 = vunpack.c.l.b16 %v1874
        %v1891 = vunpack.c.l.b16 %v1875
        %v1892 = vunpack.c.l.b16 %v1876
        %v1893 = vunpack.c.l.b16 %v1877
        %v1894 = vpack.c.b16 %v1891, %v1890
        %v1895 = vpack.c.b16 %v1893, %v1892
        %1898 = vmatprep.subr.bf16.mxu0 0
        %1899 = vmatpush1.bf16.msra.mxu0 %v1894
        %1900 = vmatprep.subr.bf16.mxu0 0
        %1901 = vmatpush1.bf16.msra.mxu0 %v1895
        %1902 = vmatprep.subr.bf16.mxu0 0
        %1903 = vmatpush1.bf16.msra.mxu0 0
        %1904 = vmatprep.subr.bf16.mxu0 0
        %1905 = vmatpush1.bf16.msra.mxu0 0
        %1906 = vmatprep.subr.bf16.mxu0 0
        %1907 = vmatpush1.bf16.msra.mxu0 0
        %1908 = vmatprep.subr.bf16.mxu0 0
        %1909 = vmatpush1.bf16.msra.mxu0 0
        %1910 = vmatprep.subr.bf16.mxu0 0
        %1911 = vmatpush1.bf16.msra.mxu0 0
        %1912 = vmatprep.subr.bf16.mxu0 0
        %1913 = vmatpush1.bf16.msra.mxu0 0
        %1914 = vmatprep.subr.bf16.mxu0 0
        %1915 = vmatpush1.bf16.msra.mxu0 0
        %1916 = vmatprep.subr.bf16.mxu0 0
        %1917 = vmatpush1.bf16.msra.mxu0 0
        %1918 = vmatprep.subr.bf16.mxu0 0
        %1919 = vmatpush1.bf16.msra.mxu0 0
        %1920 = vmatprep.subr.bf16.mxu0 0
        %1921 = vmatpush1.bf16.msra.mxu0 0
        %1922 = vmatprep.subr.bf16.mxu0 0
        %1923 = vmatpush1.bf16.msra.mxu0 0
        %1924 = vmatprep.subr.bf16.mxu0 0
        %1925 = vmatpush1.bf16.msra.mxu0 0
        %1926 = vmatprep.subr.bf16.mxu0 0
        %1927 = vmatpush1.bf16.msra.mxu0 0
        %1928 = vmatprep.subr.bf16.mxu0 0
        %1929 = vmatpush1.bf16.msra.mxu0 0
        %1930 = vmatprep.mubr.bf16.mxu0 0
        %1931 = vmatmul.mubr.bf16.gmra.mrb[0].mxu0 %v831
        %v1932 = vpop.f32.mrb[0].mxu0
        %v1933 = vadd.f32 %v1884, %v1932
        %v1934 = vpop.f32.mrb[0].mxu0
        %v1935 = vpop.f32.mrb[0].mxu0
        %v1936 = vadd.f32 %v1884, %v1935
        %v1937 = vpop.f32.mrb[0].mxu0
        %1938 = vdwg.mxu0
        %v1939 = vpack.c.bf16 %v1801, %v1801
        %v1940 = vpack.c.bf16 %v1804, %v1804
        %v1941 = vpack.c.bf16 %v1867, %v1867
        %v1942 = vpack.c.bf16 %v1870, %v1870
        %v1943 = vpack.c.bf16 %v1933, %v1933
        %v1944 = vpack.c.bf16 %v1936, %v1936
        %v1946 = vsel %vm1008, %v1939, 0
        %v1949 = vsel %vm1008, %v1941, 0
        %1951 = vmatprep.subr.bf16.mxu0 0
        %1952 = vmatpush1.bf16.xpose.msra.mxu0 %v1949
        %1953 = vmatprep.subr.bf16.mxu0 0
        %1954 = vmatpush1.bf16.xpose.msra.mxu0 0
        %1955 = vmatprep.subr.bf16.mxu0 0
        %1956 = vmatpush1.bf16.xpose.msra.mxu0 0
        %1957 = vmatprep.subr.bf16.mxu0 0
        %1958 = vmatpush1.bf16.xpose.msra.mxu0 0
        %1959 = vmatprep.subr.bf16.mxu0 0
        %1960 = vmatpush1.bf16.xpose.msra.mxu0 0
        %1961 = vmatprep.subr.bf16.mxu0 0
        %1962 = vmatpush1.bf16.xpose.msra.mxu0 0
        %1963 = vmatprep.subr.bf16.mxu0 0
        %1964 = vmatpush1.bf16.xpose.msra.mxu0 0
        %1965 = vmatprep.subr.bf16.mxu0 0
        %1966 = vmatpush1.bf16.xpose.msra.mxu0 0
        %1967 = vmatprep.subr.bf16.mxu0 0
        %1968 = vmatpush1.bf16.xpose.msra.mxu0 0
        %1969 = vmatprep.subr.bf16.mxu0 0
        %1970 = vmatpush1.bf16.xpose.msra.mxu0 0
        %1971 = vmatprep.subr.bf16.mxu0 0
        %1972 = vmatpush1.bf16.xpose.msra.mxu0 0
        %1973 = vmatprep.subr.bf16.mxu0 0
        %1974 = vmatpush1.bf16.xpose.msra.mxu0 0
        %1975 = vmatprep.subr.bf16.mxu0 0
        %1976 = vmatpush1.bf16.xpose.msra.mxu0 0
        %1977 = vmatprep.subr.bf16.mxu0 0
        %1978 = vmatpush1.bf16.xpose.msra.mxu0 0
        %1979 = vmatprep.subr.bf16.mxu0 0
        %1980 = vmatpush1.bf16.xpose.msra.mxu0 0
        %1981 = vmatprep.subr.bf16.mxu0 0
        %1982 = vmatpush1.bf16.xpose.msra.mxu0 0
        %1983 = vmatprep.mubr.bf16.mxu0 0
        %1984 = vmatmul.mubr.bf16.gmra.mrb[0].mxu0 %v1946
        %v1985 = vpop.f32.mrb[0].mxu0
        %v1986 = vadd.f32 0.0, %v1985
        %v1987 = vpop.f32.mrb[0].mxu0
        %v1988 = vpop.f32.mrb[0].mxu0
        %v1989 = vpop.f32.mrb[0].mxu0
        %1990 = vdwg.mxu0
        %v1992 = vsel %vm1008, %v1940, 0
        %v1995 = vsel %vm1008, %v1942, 0
        %1997 = vmatprep.subr.bf16.mxu0 0
        %1998 = vmatpush1.bf16.xpose.msra.mxu0 %v1995
        %1999 = vmatprep.subr.bf16.mxu0 0
        %2000 = vmatpush1.bf16.xpose.msra.mxu0 0
        %2001 = vmatprep.subr.bf16.mxu0 0
        %2002 = vmatpush1.bf16.xpose.msra.mxu0 0
        %2003 = vmatprep.subr.bf16.mxu0 0
        %2004 = vmatpush1.bf16.xpose.msra.mxu0 0
        %2005 = vmatprep.subr.bf16.mxu0 0
        %2006 = vmatpush1.bf16.xpose.msra.mxu0 0
        %2007 = vmatprep.subr.bf16.mxu0 0
        %2008 = vmatpush1.bf16.xpose.msra.mxu0 0
        %2009 = vmatprep.subr.bf16.mxu0 0
        %2010 = vmatpush1.bf16.xpose.msra.mxu0 0
        %2011 = vmatprep.subr.bf16.mxu0 0
        %2012 = vmatpush1.bf16.xpose.msra.mxu0 0
        %2013 = vmatprep.subr.bf16.mxu0 0
        %2014 = vmatpush1.bf16.xpose.msra.mxu0 0
        %2015 = vmatprep.subr.bf16.mxu0 0
        %2016 = vmatpush1.bf16.xpose.msra.mxu0 0
        %2017 = vmatprep.subr.bf16.mxu0 0
        %2018 = vmatpush1.bf16.xpose.msra.mxu0 0
        %2019 = vmatprep.subr.bf16.mxu0 0
        %2020 = vmatpush1.bf16.xpose.msra.mxu0 0
        %2021 = vmatprep.subr.bf16.mxu0 0
        %2022 = vmatpush1.bf16.xpose.msra.mxu0 0
        %2023 = vmatprep.subr.bf16.mxu0 0
        %2024 = vmatpush1.bf16.xpose.msra.mxu0 0
        %2025 = vmatprep.subr.bf16.mxu0 0
        %2026 = vmatpush1.bf16.xpose.msra.mxu0 0
        %2027 = vmatprep.subr.bf16.mxu0 0
        %2028 = vmatpush1.bf16.xpose.msra.mxu0 0
        %2029 = vmatprep.mubr.bf16.mxu0 0
        %2030 = vmatmul.mubr.bf16.gmra.mrb[0].mxu0 %v1992
        %v2031 = vpop.f32.mrb[0].mxu0
        %v2032 = vadd.f32 0.0, %v2031
        %v2033 = vpop.f32.mrb[0].mxu0
        %v2034 = vpop.f32.mrb[0].mxu0
        %v2035 = vpop.f32.mrb[0].mxu0
        %2036 = vdwg.mxu0
        %v2037 = vsel %vm1008, %v1986, -inf
        %2038 = vmax.xlane.f32.xlu0 %v2037
        %v2039 = vpop.xlane.xlu0 %2038
        %v2040 = vsel %vm1008, %v2032, -inf
        %2041 = vmax.xlane.f32.xlu0 %v2040
        %v2042 = vpop.xlane.xlu0 %2041
        %v2043 = vsub.f32 %v1986, %v2039
        %v2044 = vsub.f32 %v2032, %v2042
        %v2045 = vmul.f32 %v2043, 1.442695
        %v2046 = vpow.pop %v2045
        %v2047 = vmul.f32 %v2044, 1.442695
        %v2048 = vpow.pop %v2047
        %v2049 = vsel %vm1008, %v2046, 0.0
        %2050 = vadd.xlane.f32.xlu0 %v2049
        %v2051 = vpop.xlane.xlu0 %2050
        %v2052 = vsel %vm1008, %v2048, 0.0
        %2053 = vadd.xlane.f32.xlu0 %v2052
        %v2054 = vpop.xlane.xlu0 %2053
        %v2055 = vrcp.pop %v2051
        %v2056 = vrcp.pop %v2054
        %v2057 = vmul.f32 %v2046, %v2055
        %v2058 = vmul.f32 %v2048, %v2056
        %v2059 = vpack.c.bf16 %v2057, %v2057
        %v2060 = vpack.c.bf16 %v2058, %v2058
        %v2062 = vsel %vm1008, %v2059, 0
        %v2065 = vsel %vm1128, %v1943, 0
        %2067 = vmatprep.subr.bf16.mxu0 0
        %2068 = vmatpush1.bf16.msra.mxu0 %v2065
        %2069 = vmatprep.subr.bf16.mxu0 0
        %2070 = vmatpush1.bf16.msra.mxu0 0
        %2071 = vmatprep.subr.bf16.mxu0 0
        %2072 = vmatpush1.bf16.msra.mxu0 0
        %2073 = vmatprep.subr.bf16.mxu0 0
        %2074 = vmatpush1.bf16.msra.mxu0 0
        %2075 = vmatprep.subr.bf16.mxu0 0
        %2076 = vmatpush1.bf16.msra.mxu0 0
        %2077 = vmatprep.subr.bf16.mxu0 0
        %2078 = vmatpush1.bf16.msra.mxu0 0
        %2079 = vmatprep.subr.bf16.mxu0 0
        %2080 = vmatpush1.bf16.msra.mxu0 0
        %2081 = vmatprep.subr.bf16.mxu0 0
        %2082 = vmatpush1.bf16.msra.mxu0 0
        %2083 = vmatprep.subr.bf16.mxu0 0
        %2084 = vmatpush1.bf16.msra.mxu0 0
        %2085 = vmatprep.subr.bf16.mxu0 0
        %2086 = vmatpush1.bf16.msra.mxu0 0
        %2087 = vmatprep.subr.bf16.mxu0 0
        %2088 = vmatpush1.bf16.msra.mxu0 0
        %2089 = vmatprep.subr.bf16.mxu0 0
        %2090 = vmatpush1.bf16.msra.mxu0 0
        %2091 = vmatprep.subr.bf16.mxu0 0
        %2092 = vmatpush1.bf16.msra.mxu0 0
        %2093 = vmatprep.subr.bf16.mxu0 0
        %2094 = vmatpush1.bf16.msra.mxu0 0
        %2095 = vmatprep.subr.bf16.mxu0 0
        %2096 = vmatpush1.bf16.msra.mxu0 0
        %2097 = vmatprep.subr.bf16.mxu0 0
        %2098 = vmatpush1.bf16.msra.mxu0 0
        %2099 = vmatprep.mubr.bf16.mxu0 0
        %2100 = vmatmul.mubr.bf16.gmra.mrb[0].mxu0 %v2062
        %v2101 = vpop.f32.mrb[0].mxu0
        %v2102 = vadd.f32 0.0, %v2101
        %v2103 = vpop.f32.mrb[0].mxu0
        %v2104 = vpop.f32.mrb[0].mxu0
        %v2105 = vpop.f32.mrb[0].mxu0
        %2106 = vdwg.mxu0
        %v2108 = vsel %vm1008, %v2060, 0
        %v2111 = vsel %vm1128, %v1944, 0
        %2113 = vmatprep.subr.bf16.mxu0 0
        %2114 = vmatpush1.bf16.msra.mxu0 %v2111
        %2115 = vmatprep.subr.bf16.mxu0 0
        %2116 = vmatpush1.bf16.msra.mxu0 0
        %2117 = vmatprep.subr.bf16.mxu0 0
        %2118 = vmatpush1.bf16.msra.mxu0 0
        %2119 = vmatprep.subr.bf16.mxu0 0
        %2120 = vmatpush1.bf16.msra.mxu0 0
        %2121 = vmatprep.subr.bf16.mxu0 0
        %2122 = vmatpush1.bf16.msra.mxu0 0
        %2123 = vmatprep.subr.bf16.mxu0 0
        %2124 = vmatpush1.bf16.msra.mxu0 0
        %2125 = vmatprep.subr.bf16.mxu0 0
        %2126 = vmatpush1.bf16.msra.mxu0 0
        %2127 = vmatprep.subr.bf16.mxu0 0
        %2128 = vmatpush1.bf16.msra.mxu0 0
        %2129 = vmatprep.subr.bf16.mxu0 0
        %2130 = vmatpush1.bf16.msra.mxu0 0
        %2131 = vmatprep.subr.bf16.mxu0 0
        %2132 = vmatpush1.bf16.msra.mxu0 0
        %2133 = vmatprep.subr.bf16.mxu0 0
        %2134 = vmatpush1.bf16.msra.mxu0 0
        %2135 = vmatprep.subr.bf16.mxu0 0
        %2136 = vmatpush1.bf16.msra.mxu0 0
        %2137 = vmatprep.subr.bf16.mxu0 0
        %2138 = vmatpush1.bf16.msra.mxu0 0
        %2139 = vmatprep.subr.bf16.mxu0 0
        %2140 = vmatpush1.bf16.msra.mxu0 0
        %2141 = vmatprep.subr.bf16.mxu0 0
        %2142 = vmatpush1.bf16.msra.mxu0 0
        %2143 = vmatprep.subr.bf16.mxu0 0
        %2144 = vmatpush1.bf16.msra.mxu0 0
        %2145 = vmatprep.mubr.bf16.mxu0 0
        %2146 = vmatmul.mubr.bf16.gmra.mrb[0].mxu0 %v2108
        %v2147 = vpop.f32.mrb[0].mxu0
        %v2148 = vadd.f32 0.0, %v2147
        %v2149 = vpop.f32.mrb[0].mxu0
        %v2150 = vpop.f32.mrb[0].mxu0
        %v2151 = vpop.f32.mrb[0].mxu0
        %2152 = vdwg.mxu0
        %v2153 = vpack.c.bf16 %v2102, %v2102
        %v2154 = vpack.c.bf16 %v2148, %v2148
        %s2155 = scalar_lea.vmem %s754, 8
        %v2156 = vld [vmem:[%s2155] sm:$0xf]
        %v2159 = vunpack.c.l.b16 %v2153
        %v2160 = vunpack.c.l.b16 %v2154
        %v2161 = vpack.c.b16 %v2160, %v2159
        %v2163 = vsel %vm1008, %v2161, 0
        %v2166 = vsel %vm1128, %v2156, 0
        %2168 = vmatprep.subr.bf16.mxu0 0
        %2169 = vmatpush1.bf16.msra.mxu0 %v2166
        %2170 = vmatprep.subr.bf16.mxu0 0
        %2171 = vmatpush1.bf16.msra.mxu0 0
        %2172 = vmatprep.subr.bf16.mxu0 0
        %2173 = vmatpush1.bf16.msra.mxu0 0
        %2174 = vmatprep.subr.bf16.mxu0 0
        %2175 = vmatpush1.bf16.msra.mxu0 0
        %2176 = vmatprep.subr.bf16.mxu0 0
        %2177 = vmatpush1.bf16.msra.mxu0 0
        %2178 = vmatprep.subr.bf16.mxu0 0
        %2179 = vmatpush1.bf16.msra.mxu0 0
        %2180 = vmatprep.subr.bf16.mxu0 0
        %2181 = vmatpush1.bf16.msra.mxu0 0
        %2182 = vmatprep.subr.bf16.mxu0 0
        %2183 = vmatpush1.bf16.msra.mxu0 0
        %2184 = vmatprep.subr.bf16.mxu0 0
        %2185 = vmatpush1.bf16.msra.mxu0 0
        %2186 = vmatprep.subr.bf16.mxu0 0
        %2187 = vmatpush1.bf16.msra.mxu0 0
        %2188 = vmatprep.subr.bf16.mxu0 0
        %2189 = vmatpush1.bf16.msra.mxu0 0
        %2190 = vmatprep.subr.bf16.mxu0 0
        %2191 = vmatpush1.bf16.msra.mxu0 0
        %2192 = vmatprep.subr.bf16.mxu0 0
        %2193 = vmatpush1.bf16.msra.mxu0 0
        %2194 = vmatprep.subr.bf16.mxu0 0
        %2195 = vmatpush1.bf16.msra.mxu0 0
        %2196 = vmatprep.subr.bf16.mxu0 0
        %2197 = vmatpush1.bf16.msra.mxu0 0
        %2198 = vmatprep.subr.bf16.mxu0 0
        %2199 = vmatpush1.bf16.msra.mxu0 0
        %2200 = vmatprep.mubr.bf16.mxu0 0
        %2201 = vmatmul.mubr.bf16.gmra.mrb[0].mxu0 %v2163
        %v2202 = vpop.f32.mrb[0].mxu0
        %v2203 = vadd.f32 0.0, %v2202
        %v2204 = vpop.f32.mrb[0].mxu0
        %v2205 = vpop.f32.mrb[0].mxu0
        %v2206 = vadd.f32 0.0, %v2205
        %v2207 = vpop.f32.mrb[0].mxu0
        %2208 = vdwg.mxu0
        %v2209 = vadd.f32 %v1735, %v2203
        %v2210 = vadd.f32 %v1738, %v2206
        %s2211 = scalar_lea.vmem %s727, 48
        %v2212 = vld [vmem:[%s2211] sm:$0xf]
        %v2213 = vld [vmem:[%s2211 + $0x4] sm:$0xf]
        %v2214 = vld [vmem:[%s2211 + $0x8] sm:$0xf]
        %v2215 = vld [vmem:[%s2211 + $0xc] sm:$0xf]
        %s2216 = scalar_lea.vmem %s731, 3
        %v2217 = vld [vmem:[%s2216] sm:$0x1]
        %v2219 = vlaneseq
        %v2220 = vshrl.u32 %v2219, 7
        %v2221 = vsub.s32 0, %v2220
        %v2222 = vrot.slane %v2217, %v2221
        %v2228 = vunpack.c.l.b16 %v2212
        %v2229 = vunpack.c.l.b16 %v2213
        %v2230 = vunpack.c.l.b16 %v2214
        %v2231 = vunpack.c.l.b16 %v2215
        %v2232 = vpack.c.b16 %v2229, %v2228
        %v2233 = vpack.c.b16 %v2231, %v2230
        %2236 = vmatprep.subr.bf16.mxu0 0
        %2237 = vmatpush1.bf16.msra.mxu0 %v2232
        %2238 = vmatprep.subr.bf16.mxu0 0
        %2239 = vmatpush1.bf16.msra.mxu0 %v2233
        %2240 = vmatprep.subr.bf16.mxu0 0
        %2241 = vmatpush1.bf16.msra.mxu0 0
        %2242 = vmatprep.subr.bf16.mxu0 0
        %2243 = vmatpush1.bf16.msra.mxu0 0
        %2244 = vmatprep.subr.bf16.mxu0 0
        %2245 = vmatpush1.bf16.msra.mxu0 0
        %2246 = vmatprep.subr.bf16.mxu0 0
        %2247 = vmatpush1.bf16.msra.mxu0 0
        %2248 = vmatprep.subr.bf16.mxu0 0
        %2249 = vmatpush1.bf16.msra.mxu0 0
        %2250 = vmatprep.subr.bf16.mxu0 0
        %2251 = vmatpush1.bf16.msra.mxu0 0
        %2252 = vmatprep.subr.bf16.mxu0 0
        %2253 = vmatpush1.bf16.msra.mxu0 0
        %2254 = vmatprep.subr.bf16.mxu0 0
        %2255 = vmatpush1.bf16.msra.mxu0 0
        %2256 = vmatprep.subr.bf16.mxu0 0
        %2257 = vmatpush1.bf16.msra.mxu0 0
        %2258 = vmatprep.subr.bf16.mxu0 0
        %2259 = vmatpush1.bf16.msra.mxu0 0
        %2260 = vmatprep.subr.bf16.mxu0 0
        %2261 = vmatpush1.bf16.msra.mxu0 0
        %2262 = vmatprep.subr.bf16.mxu0 0
        %2263 = vmatpush1.bf16.msra.mxu0 0
        %2264 = vmatprep.subr.bf16.mxu0 0
        %2265 = vmatpush1.bf16.msra.mxu0 0
        %2266 = vmatprep.subr.bf16.mxu0 0
        %2267 = vmatpush1.bf16.msra.mxu0 0
        %2268 = vmatprep.mubr.bf16.mxu0 0
        %2269 = vmatmul.mubr.bf16.gmra.mrb[0].mxu0 %v831
        %v2270 = vpop.f32.mrb[0].mxu0
        %v2271 = vadd.f32 %v2222, %v2270
        %v2272 = vpop.f32.mrb[0].mxu0
        %v2273 = vpop.f32.mrb[0].mxu0
        %v2274 = vadd.f32 %v2222, %v2273
        %v2275 = vpop.f32.mrb[0].mxu0
        %2276 = vdwg.mxu0
        %s2277 = scalar_lea.vmem %s736, 48
        %v2278 = vld [vmem:[%s2277] sm:$0xf]
        %v2279 = vld [vmem:[%s2277 + $0x4] sm:$0xf]
        %v2280 = vld [vmem:[%s2277 + $0x8] sm:$0xf]
        %v2281 = vld [vmem:[%s2277 + $0xc] sm:$0xf]
        %s2282 = scalar_lea.vmem %s740, 3
        %v2283 = vld [vmem:[%s2282] sm:$0x1]
        %v2285 = vlaneseq
        %v2286 = vshrl.u32 %v2285, 7
        %v2287 = vsub.s32 0, %v2286
        %v2288 = vrot.slane %v2283, %v2287
        %v2294 = vunpack.c.l.b16 %v2278
        %v2295 = vunpack.c.l.b16 %v2279
        %v2296 = vunpack.c.l.b16 %v2280
        %v2297 = vunpack.c.l.b16 %v2281
        %v2298 = vpack.c.b16 %v2295, %v2294
        %v2299 = vpack.c.b16 %v2297, %v2296
        %2302 = vmatprep.subr.bf16.mxu0 0
        %2303 = vmatpush1.bf16.msra.mxu0 %v2298
        %2304 = vmatprep.subr.bf16.mxu0 0
        %2305 = vmatpush1.bf16.msra.mxu0 %v2299
        %2306 = vmatprep.subr.bf16.mxu0 0
        %2307 = vmatpush1.bf16.msra.mxu0 0
        %2308 = vmatprep.subr.bf16.mxu0 0
        %2309 = vmatpush1.bf16.msra.mxu0 0
        %2310 = vmatprep.subr.bf16.mxu0 0
        %2311 = vmatpush1.bf16.msra.mxu0 0
        %2312 = vmatprep.subr.bf16.mxu0 0
        %2313 = vmatpush1.bf16.msra.mxu0 0
        %2314 = vmatprep.subr.bf16.mxu0 0
        %2315 = vmatpush1.bf16.msra.mxu0 0
        %2316 = vmatprep.subr.bf16.mxu0 0
        %2317 = vmatpush1.bf16.msra.mxu0 0
        %2318 = vmatprep.subr.bf16.mxu0 0
        %2319 = vmatpush1.bf16.msra.mxu0 0
        %2320 = vmatprep.subr.bf16.mxu0 0
        %2321 = vmatpush1.bf16.msra.mxu0 0
        %2322 = vmatprep.subr.bf16.mxu0 0
        %2323 = vmatpush1.bf16.msra.mxu0 0
        %2324 = vmatprep.subr.bf16.mxu0 0
        %2325 = vmatpush1.bf16.msra.mxu0 0
        %2326 = vmatprep.subr.bf16.mxu0 0
        %2327 = vmatpush1.bf16.msra.mxu0 0
        %2328 = vmatprep.subr.bf16.mxu0 0
        %2329 = vmatpush1.bf16.msra.mxu0 0
        %2330 = vmatprep.subr.bf16.mxu0 0
        %2331 = vmatpush1.bf16.msra.mxu0 0
        %2332 = vmatprep.subr.bf16.mxu0 0
        %2333 = vmatpush1.bf16.msra.mxu0 0
        %2334 = vmatprep.mubr.bf16.mxu0 0
        %2335 = vmatmul.mubr.bf16.gmra.mrb[0].mxu0 %v831
        %v2336 = vpop.f32.mrb[0].mxu0
        %v2337 = vadd.f32 %v2288, %v2336
        %v2338 = vpop.f32.mrb[0].mxu0
        %v2339 = vpop.f32.mrb[0].mxu0
        %v2340 = vadd.f32 %v2288, %v2339
        %v2341 = vpop.f32.mrb[0].mxu0
        %2342 = vdwg.mxu0
        %s2343 = scalar_lea.vmem %s745, 48
        %v2344 = vld [vmem:[%s2343] sm:$0xf]
        %v2345 = vld [vmem:[%s2343 + $0x4] sm:$0xf]
        %v2346 = vld [vmem:[%s2343 + $0x8] sm:$0xf]
        %v2347 = vld [vmem:[%s2343 + $0xc] sm:$0xf]
        %s2348 = scalar_lea.vmem %s749, 3
        %v2349 = vld [vmem:[%s2348] sm:$0x1]
        %v2351 = vlaneseq
        %v2352 = vshrl.u32 %v2351, 7
        %v2353 = vsub.s32 0, %v2352
        %v2354 = vrot.slane %v2349, %v2353
        %v2360 = vunpack.c.l.b16 %v2344
        %v2361 = vunpack.c.l.b16 %v2345
        %v2362 = vunpack.c.l.b16 %v2346
        %v2363 = vunpack.c.l.b16 %v2347
        %v2364 = vpack.c.b16 %v2361, %v2360
        %v2365 = vpack.c.b16 %v2363, %v2362
        %2368 = vmatprep.subr.bf16.mxu0 0
        %2369 = vmatpush1.bf16.msra.mxu0 %v2364
        %2370 = vmatprep.subr.bf16.mxu0 0
        %2371 = vmatpush1.bf16.msra.mxu0 %v2365
        %2372 = vmatprep.subr.bf16.mxu0 0
        %2373 = vmatpush1.bf16.msra.mxu0 0
        %2374 = vmatprep.subr.bf16.mxu0 0
        %2375 = vmatpush1.bf16.msra.mxu0 0
        %2376 = vmatprep.subr.bf16.mxu0 0
        %2377 = vmatpush1.bf16.msra.mxu0 0
        %2378 = vmatprep.subr.bf16.mxu0 0
        %2379 = vmatpush1.bf16.msra.mxu0 0
        %2380 = vmatprep.subr.bf16.mxu0 0
        %2381 = vmatpush1.bf16.msra.mxu0 0
        %2382 = vmatprep.subr.bf16.mxu0 0
        %2383 = vmatpush1.bf16.msra.mxu0 0
        %2384 = vmatprep.subr.bf16.mxu0 0
        %2385 = vmatpush1.bf16.msra.mxu0 0
        %2386 = vmatprep.subr.bf16.mxu0 0
        %2387 = vmatpush1.bf16.msra.mxu0 0
        %2388 = vmatprep.subr.bf16.mxu0 0
        %2389 = vmatpush1.bf16.msra.mxu0 0
        %2390 = vmatprep.subr.bf16.mxu0 0
        %2391 = vmatpush1.bf16.msra.mxu0 0
        %2392 = vmatprep.subr.bf16.mxu0 0
        %2393 = vmatpush1.bf16.msra.mxu0 0
        %2394 = vmatprep.subr.bf16.mxu0 0
        %2395 = vmatpush1.bf16.msra.mxu0 0
        %2396 = vmatprep.subr.bf16.mxu0 0
        %2397 = vmatpush1.bf16.msra.mxu0 0
        %2398 = vmatprep.subr.bf16.mxu0 0
        %2399 = vmatpush1.bf16.msra.mxu0 0
        %2400 = vmatprep.mubr.bf16.mxu0 0
        %2401 = vmatmul.mubr.bf16.gmra.mrb[0].mxu0 %v831
        %v2402 = vpop.f32.mrb[0].mxu0
        %v2403 = vadd.f32 %v2354, %v2402
        %v2404 = vpop.f32.mrb[0].mxu0
        %v2405 = vpop.f32.mrb[0].mxu0
        %v2406 = vadd.f32 %v2354, %v2405
        %v2407 = vpop.f32.mrb[0].mxu0
        %2408 = vdwg.mxu0
        %v2409 = vpack.c.bf16 %v2271, %v2271
        %v2410 = vpack.c.bf16 %v2274, %v2274
        %v2411 = vpack.c.bf16 %v2337, %v2337
        %v2412 = vpack.c.bf16 %v2340, %v2340
        %v2413 = vpack.c.bf16 %v2403, %v2403
        %v2414 = vpack.c.bf16 %v2406, %v2406
        %v2416 = vsel %vm1008, %v2409, 0
        %v2419 = vsel %vm1008, %v2411, 0
        %2421 = vmatprep.subr.bf16.mxu0 0
        %2422 = vmatpush1.bf16.xpose.msra.mxu0 %v2419
        %2423 = vmatprep.subr.bf16.mxu0 0
        %2424 = vmatpush1.bf16.xpose.msra.mxu0 0
        %2425 = vmatprep.subr.bf16.mxu0 0
        %2426 = vmatpush1.bf16.xpose.msra.mxu0 0
        %2427 = vmatprep.subr.bf16.mxu0 0
        %2428 = vmatpush1.bf16.xpose.msra.mxu0 0
        %2429 = vmatprep.subr.bf16.mxu0 0
        %2430 = vmatpush1.bf16.xpose.msra.mxu0 0
        %2431 = vmatprep.subr.bf16.mxu0 0
        %2432 = vmatpush1.bf16.xpose.msra.mxu0 0
        %2433 = vmatprep.subr.bf16.mxu0 0
        %2434 = vmatpush1.bf16.xpose.msra.mxu0 0
        %2435 = vmatprep.subr.bf16.mxu0 0
        %2436 = vmatpush1.bf16.xpose.msra.mxu0 0
        %2437 = vmatprep.subr.bf16.mxu0 0
        %2438 = vmatpush1.bf16.xpose.msra.mxu0 0
        %2439 = vmatprep.subr.bf16.mxu0 0
        %2440 = vmatpush1.bf16.xpose.msra.mxu0 0
        %2441 = vmatprep.subr.bf16.mxu0 0
        %2442 = vmatpush1.bf16.xpose.msra.mxu0 0
        %2443 = vmatprep.subr.bf16.mxu0 0
        %2444 = vmatpush1.bf16.xpose.msra.mxu0 0
        %2445 = vmatprep.subr.bf16.mxu0 0
        %2446 = vmatpush1.bf16.xpose.msra.mxu0 0
        %2447 = vmatprep.subr.bf16.mxu0 0
        %2448 = vmatpush1.bf16.xpose.msra.mxu0 0
        %2449 = vmatprep.subr.bf16.mxu0 0
        %2450 = vmatpush1.bf16.xpose.msra.mxu0 0
        %2451 = vmatprep.subr.bf16.mxu0 0
        %2452 = vmatpush1.bf16.xpose.msra.mxu0 0
        %2453 = vmatprep.mubr.bf16.mxu0 0
        %2454 = vmatmul.mubr.bf16.gmra.mrb[0].mxu0 %v2416
        %v2455 = vpop.f32.mrb[0].mxu0
        %v2456 = vadd.f32 0.0, %v2455
        %v2457 = vpop.f32.mrb[0].mxu0
        %v2458 = vpop.f32.mrb[0].mxu0
        %v2459 = vpop.f32.mrb[0].mxu0
        %2460 = vdwg.mxu0
        %v2462 = vsel %vm1008, %v2410, 0
        %v2465 = vsel %vm1008, %v2412, 0
        %2467 = vmatprep.subr.bf16.mxu0 0
        %2468 = vmatpush1.bf16.xpose.msra.mxu0 %v2465
        %2469 = vmatprep.subr.bf16.mxu0 0
        %2470 = vmatpush1.bf16.xpose.msra.mxu0 0
        %2471 = vmatprep.subr.bf16.mxu0 0
        %2472 = vmatpush1.bf16.xpose.msra.mxu0 0
        %2473 = vmatprep.subr.bf16.mxu0 0
        %2474 = vmatpush1.bf16.xpose.msra.mxu0 0
        %2475 = vmatprep.subr.bf16.mxu0 0
        %2476 = vmatpush1.bf16.xpose.msra.mxu0 0
        %2477 = vmatprep.subr.bf16.mxu0 0
        %2478 = vmatpush1.bf16.xpose.msra.mxu0 0
        %2479 = vmatprep.subr.bf16.mxu0 0
        %2480 = vmatpush1.bf16.xpose.msra.mxu0 0
        %2481 = vmatprep.subr.bf16.mxu0 0
        %2482 = vmatpush1.bf16.xpose.msra.mxu0 0
        %2483 = vmatprep.subr.bf16.mxu0 0
        %2484 = vmatpush1.bf16.xpose.msra.mxu0 0
        %2485 = vmatprep.subr.bf16.mxu0 0
        %2486 = vmatpush1.bf16.xpose.msra.mxu0 0
        %2487 = vmatprep.subr.bf16.mxu0 0
        %2488 = vmatpush1.bf16.xpose.msra.mxu0 0
        %2489 = vmatprep.subr.bf16.mxu0 0
        %2490 = vmatpush1.bf16.xpose.msra.mxu0 0
        %2491 = vmatprep.subr.bf16.mxu0 0
        %2492 = vmatpush1.bf16.xpose.msra.mxu0 0
        %2493 = vmatprep.subr.bf16.mxu0 0
        %2494 = vmatpush1.bf16.xpose.msra.mxu0 0
        %2495 = vmatprep.subr.bf16.mxu0 0
        %2496 = vmatpush1.bf16.xpose.msra.mxu0 0
        %2497 = vmatprep.subr.bf16.mxu0 0
        %2498 = vmatpush1.bf16.xpose.msra.mxu0 0
        %2499 = vmatprep.mubr.bf16.mxu0 0
        %2500 = vmatmul.mubr.bf16.gmra.mrb[0].mxu0 %v2462
        %v2501 = vpop.f32.mrb[0].mxu0
        %v2502 = vadd.f32 0.0, %v2501
        %v2503 = vpop.f32.mrb[0].mxu0
        %v2504 = vpop.f32.mrb[0].mxu0
        %v2505 = vpop.f32.mrb[0].mxu0
        %2506 = vdwg.mxu0
        %v2507 = vsel %vm1008, %v2456, -inf
        %2508 = vmax.xlane.f32.xlu0 %v2507
        %v2509 = vpop.xlane.xlu0 %2508
        %v2510 = vsel %vm1008, %v2502, -inf
        %2511 = vmax.xlane.f32.xlu0 %v2510
        %v2512 = vpop.xlane.xlu0 %2511
        %v2513 = vsub.f32 %v2456, %v2509
        %v2514 = vsub.f32 %v2502, %v2512
        %v2515 = vmul.f32 %v2513, 1.442695
        %v2516 = vpow.pop %v2515
        %v2517 = vmul.f32 %v2514, 1.442695
        %v2518 = vpow.pop %v2517
        %v2519 = vsel %vm1008, %v2516, 0.0
        %2520 = vadd.xlane.f32.xlu0 %v2519
        %v2521 = vpop.xlane.xlu0 %2520
        %v2522 = vsel %vm1008, %v2518, 0.0
        %2523 = vadd.xlane.f32.xlu0 %v2522
        %v2524 = vpop.xlane.xlu0 %2523
        %v2525 = vrcp.pop %v2521
        %v2526 = vrcp.pop %v2524
        %v2527 = vmul.f32 %v2516, %v2525
        %v2528 = vmul.f32 %v2518, %v2526
        %v2529 = vpack.c.bf16 %v2527, %v2527
        %v2530 = vpack.c.bf16 %v2528, %v2528
        %v2532 = vsel %vm1008, %v2529, 0
        %v2535 = vsel %vm1128, %v2413, 0
        %2537 = vmatprep.subr.bf16.mxu0 0
        %2538 = vmatpush1.bf16.msra.mxu0 %v2535
        %2539 = vmatprep.subr.bf16.mxu0 0
        %2540 = vmatpush1.bf16.msra.mxu0 0
        %2541 = vmatprep.subr.bf16.mxu0 0
        %2542 = vmatpush1.bf16.msra.mxu0 0
        %2543 = vmatprep.subr.bf16.mxu0 0
        %2544 = vmatpush1.bf16.msra.mxu0 0
        %2545 = vmatprep.subr.bf16.mxu0 0
        %2546 = vmatpush1.bf16.msra.mxu0 0
        %2547 = vmatprep.subr.bf16.mxu0 0
        %2548 = vmatpush1.bf16.msra.mxu0 0
        %2549 = vmatprep.subr.bf16.mxu0 0
        %2550 = vmatpush1.bf16.msra.mxu0 0
        %2551 = vmatprep.subr.bf16.mxu0 0
        %2552 = vmatpush1.bf16.msra.mxu0 0
        %2553 = vmatprep.subr.bf16.mxu0 0
        %2554 = vmatpush1.bf16.msra.mxu0 0
        %2555 = vmatprep.subr.bf16.mxu0 0
        %2556 = vmatpush1.bf16.msra.mxu0 0
        %2557 = vmatprep.subr.bf16.mxu0 0
        %2558 = vmatpush1.bf16.msra.mxu0 0
        %2559 = vmatprep.subr.bf16.mxu0 0
        %2560 = vmatpush1.bf16.msra.mxu0 0
        %2561 = vmatprep.subr.bf16.mxu0 0
        %2562 = vmatpush1.bf16.msra.mxu0 0
        %2563 = vmatprep.subr.bf16.mxu0 0
        %2564 = vmatpush1.bf16.msra.mxu0 0
        %2565 = vmatprep.subr.bf16.mxu0 0
        %2566 = vmatpush1.bf16.msra.mxu0 0
        %2567 = vmatprep.subr.bf16.mxu0 0
        %2568 = vmatpush1.bf16.msra.mxu0 0
        %2569 = vmatprep.mubr.bf16.mxu0 0
        %2570 = vmatmul.mubr.bf16.gmra.mrb[0].mxu0 %v2532
        %v2571 = vpop.f32.mrb[0].mxu0
        %v2572 = vadd.f32 0.0, %v2571
        %v2573 = vpop.f32.mrb[0].mxu0
        %v2574 = vpop.f32.mrb[0].mxu0
        %v2575 = vpop.f32.mrb[0].mxu0
        %2576 = vdwg.mxu0
        %v2578 = vsel %vm1008, %v2530, 0
        %v2581 = vsel %vm1128, %v2414, 0
        %2583 = vmatprep.subr.bf16.mxu0 0
        %2584 = vmatpush1.bf16.msra.mxu0 %v2581
        %2585 = vmatprep.subr.bf16.mxu0 0
        %2586 = vmatpush1.bf16.msra.mxu0 0
        %2587 = vmatprep.subr.bf16.mxu0 0
        %2588 = vmatpush1.bf16.msra.mxu0 0
        %2589 = vmatprep.subr.bf16.mxu0 0
        %2590 = vmatpush1.bf16.msra.mxu0 0
        %2591 = vmatprep.subr.bf16.mxu0 0
        %2592 = vmatpush1.bf16.msra.mxu0 0
        %2593 = vmatprep.subr.bf16.mxu0 0
        %2594 = vmatpush1.bf16.msra.mxu0 0
        %2595 = vmatprep.subr.bf16.mxu0 0
        %2596 = vmatpush1.bf16.msra.mxu0 0
        %2597 = vmatprep.subr.bf16.mxu0 0
        %2598 = vmatpush1.bf16.msra.mxu0 0
        %2599 = vmatprep.subr.bf16.mxu0 0
        %2600 = vmatpush1.bf16.msra.mxu0 0
        %2601 = vmatprep.subr.bf16.mxu0 0
        %2602 = vmatpush1.bf16.msra.mxu0 0
        %2603 = vmatprep.subr.bf16.mxu0 0
        %2604 = vmatpush1.bf16.msra.mxu0 0
        %2605 = vmatprep.subr.bf16.mxu0 0
        %2606 = vmatpush1.bf16.msra.mxu0 0
        %2607 = vmatprep.subr.bf16.mxu0 0
        %2608 = vmatpush1.bf16.msra.mxu0 0
        %2609 = vmatprep.subr.bf16.mxu0 0
        %2610 = vmatpush1.bf16.msra.mxu0 0
        %2611 = vmatprep.subr.bf16.mxu0 0
        %2612 = vmatpush1.bf16.msra.mxu0 0
        %2613 = vmatprep.subr.bf16.mxu0 0
        %2614 = vmatpush1.bf16.msra.mxu0 0
        %2615 = vmatprep.mubr.bf16.mxu0 0
        %2616 = vmatmul.mubr.bf16.gmra.mrb[0].mxu0 %v2578
        %v2617 = vpop.f32.mrb[0].mxu0
        %v2618 = vadd.f32 0.0, %v2617
        %v2619 = vpop.f32.mrb[0].mxu0
        %v2620 = vpop.f32.mrb[0].mxu0
        %v2621 = vpop.f32.mrb[0].mxu0
        %2622 = vdwg.mxu0
        %v2623 = vpack.c.bf16 %v2572, %v2572
        %v2624 = vpack.c.bf16 %v2618, %v2618
        %s2625 = scalar_lea.vmem %s754, 12
        %v2626 = vld [vmem:[%s2625] sm:$0xf]
        %v2629 = vunpack.c.l.b16 %v2623
        %v2630 = vunpack.c.l.b16 %v2624
        %v2631 = vpack.c.b16 %v2630, %v2629
        %v2633 = vsel %vm1008, %v2631, 0
        %v2636 = vsel %vm1128, %v2626, 0
        %2638 = vmatprep.subr.bf16.mxu0 0
        %2639 = vmatpush1.bf16.msra.mxu0 %v2636
        %2640 = vmatprep.subr.bf16.mxu0 0
        %2641 = vmatpush1.bf16.msra.mxu0 0
        %2642 = vmatprep.subr.bf16.mxu0 0
        %2643 = vmatpush1.bf16.msra.mxu0 0
        %2644 = vmatprep.subr.bf16.mxu0 0
        %2645 = vmatpush1.bf16.msra.mxu0 0
        %2646 = vmatprep.subr.bf16.mxu0 0
        %2647 = vmatpush1.bf16.msra.mxu0 0
        %2648 = vmatprep.subr.bf16.mxu0 0
        %2649 = vmatpush1.bf16.msra.mxu0 0
        %2650 = vmatprep.subr.bf16.mxu0 0
        %2651 = vmatpush1.bf16.msra.mxu0 0
        %2652 = vmatprep.subr.bf16.mxu0 0
        %2653 = vmatpush1.bf16.msra.mxu0 0
        %2654 = vmatprep.subr.bf16.mxu0 0
        %2655 = vmatpush1.bf16.msra.mxu0 0
        %2656 = vmatprep.subr.bf16.mxu0 0
        %2657 = vmatpush1.bf16.msra.mxu0 0
        %2658 = vmatprep.subr.bf16.mxu0 0
        %2659 = vmatpush1.bf16.msra.mxu0 0
        %2660 = vmatprep.subr.bf16.mxu0 0
        %2661 = vmatpush1.bf16.msra.mxu0 0
        %2662 = vmatprep.subr.bf16.mxu0 0
        %2663 = vmatpush1.bf16.msra.mxu0 0
        %2664 = vmatprep.subr.bf16.mxu0 0
        %2665 = vmatpush1.bf16.msra.mxu0 0
        %2666 = vmatprep.subr.bf16.mxu0 0
        %2667 = vmatpush1.bf16.msra.mxu0 0
        %2668 = vmatprep.subr.bf16.mxu0 0
        %2669 = vmatpush1.bf16.msra.mxu0 0
        %2670 = vmatprep.mubr.bf16.mxu0 0
        %2671 = vmatmul.mubr.bf16.gmra.mrb[0].mxu0 %v2633
        %v2672 = vpop.f32.mrb[0].mxu0
        %v2673 = vadd.f32 0.0, %v2672
        %v2674 = vpop.f32.mrb[0].mxu0
        %v2675 = vpop.f32.mrb[0].mxu0
        %v2676 = vadd.f32 0.0, %v2675
        %v2677 = vpop.f32.mrb[0].mxu0
        %2678 = vdwg.mxu0
        %v2679 = vadd.f32 %v2209, %v2673
        %v2680 = vadd.f32 %v2210, %v2676
        %v2681 = vld [vmem:[%s757] sm:$0x1]
        %v2683 = vlaneseq
        %v2684 = vshrl.u32 %v2683, 7
        %v2685 = vsub.s32 0, %v2684
        %v2686 = vrot.slane %v2681, %v2685
        %v2688 = vadd.f32 %v2679, %v2686
        %v2689 = vadd.f32 %v2680, %v2686
        %v2690 = vadd.f32 %v797, %v2688
        %v2691 = vadd.f32 %v798, %v2689
        %v2692 = vsel %vm829, %v2690, 0.0
        %2693 = vadd.xlane.f32.xlu0 %v2692
        %v2694 = vpop.xlane.xlu0 %2693
        %v2695 = vsel %vm829, %v2691, 0.0
        %2696 = vadd.xlane.f32.xlu0 %v2695
        %v2697 = vpop.xlane.xlu0 %2696
        %v2698 = vrcp.pop 32.0
        %v2699 = vmul.f32 %v2694, %v2698
        %v2700 = vmul.f32 %v2697, %v2698
        %v2701 = vsub.f32 %v2690, %v2699
        %v2702 = vsub.f32 %v2691, %v2700
        %v2703 = vmul.f32 %v2701, %v2701
        %v2704 = vmul.f32 %v2702, %v2702
        %v2705 = vsel %vm829, %v2703, 0.0
        %2706 = vadd.xlane.f32.xlu0 %v2705
        %v2707 = vpop.xlane.xlu0 %2706
        %v2708 = vsel %vm829, %v2704, 0.0
        %2709 = vadd.xlane.f32.xlu0 %v2708
        %v2710 = vpop.xlane.xlu0 %2709
        %v2711 = vmul.f32 %v2707, %v2698
        %v2712 = vmul.f32 %v2710, %v2698
        %v2713 = vadd.f32 %v2711, 1e-05
        %v2714 = vadd.f32 %v2712, 1e-05
        %v2715 = vrsqrt.pop %v2713
        %v2716 = vrsqrt.pop %v2714
        %v2717 = vmul.f32 %v2701, %v2715
        %v2718 = vmul.f32 %v2702, %v2716
        %v2719 = vld [vmem:[%s777] sm:$0x1]
        %v2721 = vlaneseq
        %v2722 = vshrl.u32 %v2721, 7
        %v2723 = vsub.s32 0, %v2722
        %v2724 = vrot.slane %v2719, %v2723
        %v2726 = vmul.f32 %v2717, %v2724
        %v2727 = vmul.f32 %v2718, %v2724
        %v2728 = vld [vmem:[%s780] sm:$0x1]
        %v2730 = vlaneseq
        %v2731 = vshrl.u32 %v2730, 7
        %v2732 = vsub.s32 0, %v2731
        %v2733 = vrot.slane %v2728, %v2732
        %v2735 = vadd.f32 %v2726, %v2733
        %v2736 = vadd.f32 %v2727, %v2733
        %v2737 = vpack.c.bf16 %v2735, %v2735
        %v2738 = vpack.c.bf16 %v2736, %v2736
        %v2739 = vld [vmem:[%s762] sm:$0xff]
        %v2740 = vld [vmem:[%s762 + $0x8] sm:$0xff]
        %v2741 = vld [vmem:[%s762 + $0x10] sm:$0xff]
        %v2742 = vld [vmem:[%s762 + $0x18] sm:$0xff]
        %v2743 = vld [vmem:[%s762 + $0x20] sm:$0xff]
        %v2744 = vld [vmem:[%s762 + $0x28] sm:$0xff]
        %v2745 = vld [vmem:[%s762 + $0x30] sm:$0xff]
        %v2746 = vld [vmem:[%s762 + $0x38] sm:$0xff]
        %v2747 = vld [vmem:[%s762 + $0x40] sm:$0xff]
        %v2748 = vld [vmem:[%s762 + $0x48] sm:$0xff]
        %v2749 = vld [vmem:[%s762 + $0x50] sm:$0xff]
        %v2750 = vld [vmem:[%s762 + $0x58] sm:$0xff]
        %v2751 = vld [vmem:[%s762 + $0x60] sm:$0xff]
        %v2752 = vld [vmem:[%s762 + $0x68] sm:$0xff]
        %v2753 = vld [vmem:[%s762 + $0x70] sm:$0xff]
        %v2754 = vld [vmem:[%s762 + $0x78] sm:$0xff]
        %v2755 = vld [vmem:[%s762 + $0x80] sm:$0xff]
        %v2756 = vld [vmem:[%s762 + $0x88] sm:$0xff]
        %v2757 = vld [vmem:[%s762 + $0x90] sm:$0xff]
        %v2758 = vld [vmem:[%s762 + $0x98] sm:$0xff]
        %v2759 = vld [vmem:[%s762 + $0xa0] sm:$0xff]
        %v2760 = vld [vmem:[%s762 + $0xa8] sm:$0xff]
        %v2761 = vld [vmem:[%s762 + $0xb0] sm:$0xff]
        %v2762 = vld [vmem:[%s762 + $0xb8] sm:$0xff]
        %v2763 = vld [vmem:[%s762 + $0xc0] sm:$0xff]
        %v2764 = vld [vmem:[%s762 + $0xc8] sm:$0xff]
        %v2765 = vld [vmem:[%s762 + $0xd0] sm:$0xff]
        %v2766 = vld [vmem:[%s762 + $0xd8] sm:$0xff]
        %v2767 = vld [vmem:[%s762 + $0xe0] sm:$0xff]
        %v2768 = vld [vmem:[%s762 + $0xe8] sm:$0xff]
        %v2769 = vld [vmem:[%s762 + $0xf0] sm:$0xff]
        %v2770 = vld [vmem:[%s762 + $0xf8] sm:$0xff]
        %v2771 = vld [vmem:[%s766] sm:$0xff]
        %v2772 = vld [vmem:[%s766 + $0x8] sm:$0xff]
        %v2775 = vlaneseq
        %v2776 = vshrl.u32 %v2775, 7
        %v2777 = vsub.s32 0, %v2776
        %v2778 = vrot.slane %v2771, %v2777
        %v2779 = vlaneseq
        %v2780 = vshrl.u32 %v2779, 7
        %v2781 = vsub.s32 1, %v2780
        %v2782 = vrot.slane %v2771, %v2781
        %v2783 = vlaneseq
        %v2784 = vshrl.u32 %v2783, 7
        %v2785 = vsub.s32 2, %v2784
        %v2786 = vrot.slane %v2771, %v2785
        %v2787 = vlaneseq
        %v2788 = vshrl.u32 %v2787, 7
        %v2789 = vsub.s32 3, %v2788
        %v2790 = vrot.slane %v2771, %v2789
        %v2791 = vlaneseq
        %v2792 = vshrl.u32 %v2791, 7
        %v2793 = vsub.s32 4, %v2792
        %v2794 = vrot.slane %v2771, %v2793
        %v2795 = vlaneseq
        %v2796 = vshrl.u32 %v2795, 7
        %v2797 = vsub.s32 5, %v2796
        %v2798 = vrot.slane %v2771, %v2797
        %v2799 = vlaneseq
        %v2800 = vshrl.u32 %v2799, 7
        %v2801 = vsub.s32 6, %v2800
        %v2802 = vrot.slane %v2771, %v2801
        %v2803 = vlaneseq
        %v2804 = vshrl.u32 %v2803, 7
        %v2805 = vsub.s32 7, %v2804
        %v2806 = vrot.slane %v2771, %v2805
        %v2807 = vlaneseq
        %v2808 = vshrl.u32 %v2807, 7
        %v2809 = vsub.s32 0, %v2808
        %v2810 = vrot.slane %v2772, %v2809
        %v2811 = vlaneseq
        %v2812 = vshrl.u32 %v2811, 7
        %v2813 = vsub.s32 1, %v2812
        %v2814 = vrot.slane %v2772, %v2813
        %v2815 = vlaneseq
        %v2816 = vshrl.u32 %v2815, 7
        %v2817 = vsub.s32 2, %v2816
        %v2818 = vrot.slane %v2772, %v2817
        %v2819 = vlaneseq
        %v2820 = vshrl.u32 %v2819, 7
        %v2821 = vsub.s32 3, %v2820
        %v2822 = vrot.slane %v2772, %v2821
        %v2823 = vlaneseq
        %v2824 = vshrl.u32 %v2823, 7
        %v2825 = vsub.s32 4, %v2824
        %v2826 = vrot.slane %v2772, %v2825
        %v2827 = vlaneseq
        %v2828 = vshrl.u32 %v2827, 7
        %v2829 = vsub.s32 5, %v2828
        %v2830 = vrot.slane %v2772, %v2829
        %v2831 = vlaneseq
        %v2832 = vshrl.u32 %v2831, 7
        %v2833 = vsub.s32 6, %v2832
        %v2834 = vrot.slane %v2772, %v2833
        %v2835 = vlaneseq
        %v2836 = vshrl.u32 %v2835, 7
        %v2837 = vsub.s32 7, %v2836
        %v2838 = vrot.slane %v2772, %v2837
        %v2857 = vunpack.c.l.b16 %v2737
        %v2858 = vunpack.c.l.b16 %v2738
        %v2859 = vpack.c.b16 %v2858, %v2857
        %v2892 = vunpack.c.l.b16 %v2739
        %v2893 = vunpack.c.h.b16 %v2739
        %v2894 = vunpack.c.l.b16 %v2740
        %v2895 = vunpack.c.h.b16 %v2740
        %v2896 = vunpack.c.l.b16 %v2741
        %v2897 = vunpack.c.h.b16 %v2741
        %v2898 = vunpack.c.l.b16 %v2742
        %v2899 = vunpack.c.h.b16 %v2742
        %v2900 = vunpack.c.l.b16 %v2743
        %v2901 = vunpack.c.h.b16 %v2743
        %v2902 = vunpack.c.l.b16 %v2744
        %v2903 = vunpack.c.h.b16 %v2744
        %v2904 = vunpack.c.l.b16 %v2745
        %v2905 = vunpack.c.h.b16 %v2745
        %v2906 = vunpack.c.l.b16 %v2746
        %v2907 = vunpack.c.h.b16 %v2746
        %v2908 = vunpack.c.l.b16 %v2747
        %v2909 = vunpack.c.h.b16 %v2747
        %v2910 = vunpack.c.l.b16 %v2748
        %v2911 = vunpack.c.h.b16 %v2748
        %v2912 = vunpack.c.l.b16 %v2749
        %v2913 = vunpack.c.h.b16 %v2749
        %v2914 = vunpack.c.l.b16 %v2750
        %v2915 = vunpack.c.h.b16 %v2750
        %v2916 = vunpack.c.l.b16 %v2751
        %v2917 = vunpack.c.h.b16 %v2751
        %v2918 = vunpack.c.l.b16 %v2752
        %v2919 = vunpack.c.h.b16 %v2752
        %v2920 = vunpack.c.l.b16 %v2753
        %v2921 = vunpack.c.h.b16 %v2753
        %v2922 = vunpack.c.l.b16 %v2754
        %v2923 = vunpack.c.h.b16 %v2754
        %v2924 = vunpack.c.l.b16 %v2755
        %v2925 = vunpack.c.h.b16 %v2755
        %v2926 = vunpack.c.l.b16 %v2756
        %v2927 = vunpack.c.h.b16 %v2756
        %v2928 = vunpack.c.l.b16 %v2757
        %v2929 = vunpack.c.h.b16 %v2757
        %v2930 = vunpack.c.l.b16 %v2758
        %v2931 = vunpack.c.h.b16 %v2758
        %v2932 = vunpack.c.l.b16 %v2759
        %v2933 = vunpack.c.h.b16 %v2759
        %v2934 = vunpack.c.l.b16 %v2760
        %v2935 = vunpack.c.h.b16 %v2760
        %v2936 = vunpack.c.l.b16 %v2761
        %v2937 = vunpack.c.h.b16 %v2761
        %v2938 = vunpack.c.l.b16 %v2762
        %v2939 = vunpack.c.h.b16 %v2762
        %v2940 = vunpack.c.l.b16 %v2763
        %v2941 = vunpack.c.h.b16 %v2763
        %v2942 = vunpack.c.l.b16 %v2764
        %v2943 = vunpack.c.h.b16 %v2764
        %v2944 = vunpack.c.l.b16 %v2765
        %v2945 = vunpack.c.h.b16 %v2765
        %v2946 = vunpack.c.l.b16 %v2766
        %v2947 = vunpack.c.h.b16 %v2766
        %v2948 = vunpack.c.l.b16 %v2767
        %v2949 = vunpack.c.h.b16 %v2767
        %v2950 = vunpack.c.l.b16 %v2768
        %v2951 = vunpack.c.h.b16 %v2768
        %v2952 = vunpack.c.l.b16 %v2769
        %v2953 = vunpack.c.h.b16 %v2769
        %v2954 = vunpack.c.l.b16 %v2770
        %v2955 = vunpack.c.h.b16 %v2770
        %v2956 = vpack.c.b16 %v2908, %v2892
        %v2957 = vpack.c.b16 %v2909, %v2893
        %v2958 = vpack.c.b16 %v2910, %v2894
        %v2959 = vpack.c.b16 %v2911, %v2895
        %v2960 = vpack.c.b16 %v2912, %v2896
        %v2961 = vpack.c.b16 %v2913, %v2897
        %v2962 = vpack.c.b16 %v2914, %v2898
        %v2963 = vpack.c.b16 %v2915, %v2899
        %v2964 = vpack.c.b16 %v2916, %v2900
        %v2965 = vpack.c.b16 %v2917, %v2901
        %v2966 = vpack.c.b16 %v2918, %v2902
        %v2967 = vpack.c.b16 %v2919, %v2903
        %v2968 = vpack.c.b16 %v2920, %v2904
        %v2969 = vpack.c.b16 %v2921, %v2905
        %v2970 = vpack.c.b16 %v2922, %v2906
        %v2971 = vpack.c.b16 %v2923, %v2907
        %v2972 = vpack.c.b16 %v2940, %v2924
        %v2973 = vpack.c.b16 %v2941, %v2925
        %v2974 = vpack.c.b16 %v2942, %v2926
        %v2975 = vpack.c.b16 %v2943, %v2927
        %v2976 = vpack.c.b16 %v2944, %v2928
        %v2977 = vpack.c.b16 %v2945, %v2929
        %v2978 = vpack.c.b16 %v2946, %v2930
        %v2979 = vpack.c.b16 %v2947, %v2931
        %v2980 = vpack.c.b16 %v2948, %v2932
        %v2981 = vpack.c.b16 %v2949, %v2933
        %v2982 = vpack.c.b16 %v2950, %v2934
        %v2983 = vpack.c.b16 %v2951, %v2935
        %v2984 = vpack.c.b16 %v2952, %v2936
        %v2985 = vpack.c.b16 %v2953, %v2937
        %v2986 = vpack.c.b16 %v2954, %v2938
        %v2987 = vpack.c.b16 %v2955, %v2939
        %v3021 = vsel %vm829, %v2859, 0
        %3023 = vmatprep.subr.bf16.mxu0 %v2957
        %3024 = vmatpush1.bf16.msra.mxu0 %v2956
        %3025 = vmatprep.subr.bf16.mxu0 %v2973
        %3026 = vmatpush1.bf16.msra.mxu0 %v2972
        %3027 = vmatprep.subr.bf16.mxu0 0
        %3028 = vmatpush1.bf16.msra.mxu0 0
        %3029 = vmatprep.subr.bf16.mxu0 0
        %3030 = vmatpush1.bf16.msra.mxu0 0
        %3031 = vmatprep.subr.bf16.mxu0 0
        %3032 = vmatpush1.bf16.msra.mxu0 0
        %3033 = vmatprep.subr.bf16.mxu0 0
        %3034 = vmatpush1.bf16.msra.mxu0 0
        %3035 = vmatprep.subr.bf16.mxu0 0
        %3036 = vmatpush1.bf16.msra.mxu0 0
        %3037 = vmatprep.subr.bf16.mxu0 0
        %3038 = vmatpush1.bf16.msra.mxu0 0
        %3039 = vmatprep.subr.bf16.mxu0 0
        %3040 = vmatpush1.bf16.msra.mxu0 0
        %3041 = vmatprep.subr.bf16.mxu0 0
        %3042 = vmatpush1.bf16.msra.mxu0 0
        %3043 = vmatprep.subr.bf16.mxu0 0
        %3044 = vmatpush1.bf16.msra.mxu0 0
        %3045 = vmatprep.subr.bf16.mxu0 0
        %3046 = vmatpush1.bf16.msra.mxu0 0
        %3047 = vmatprep.subr.bf16.mxu0 0
        %3048 = vmatpush1.bf16.msra.mxu0 0
        %3049 = vmatprep.subr.bf16.mxu0 0
        %3050 = vmatpush1.bf16.msra.mxu0 0
        %3051 = vmatprep.subr.bf16.mxu0 0
        %3052 = vmatpush1.bf16.msra.mxu0 0
        %3053 = vmatprep.subr.bf16.mxu0 0
        %3054 = vmatpush1.bf16.msra.mxu0 0
        %3055 = vmatprep.mubr.bf16.mxu0 0
        %3056 = vmatmul.mubr.bf16.gmra.mrb[0].mxu0 %v3021
        %v3057 = vpop.f32.mrb[0].mxu0
        %v3058 = vadd.f32 %v2778, %v3057
        %v3059 = vpop.f32.mrb[0].mxu0
        %v3060 = vadd.f32 %v2782, %v3059
        %v3061 = vpop.f32.mrb[0].mxu0
        %v3062 = vadd.f32 %v2778, %v3061
        %v3063 = vpop.f32.mrb[0].mxu0
        %v3064 = vadd.f32 %v2782, %v3063
        %3065 = vdwg.mxu0
        %3066 = vmatprep.subr.bf16.mxu0 %v2959
        %3067 = vmatpush1.bf16.msra.mxu0 %v2958
        %3068 = vmatprep.subr.bf16.mxu0 %v2975
        %3069 = vmatpush1.bf16.msra.mxu0 %v2974
        %3070 = vmatprep.subr.bf16.mxu0 0
        %3071 = vmatpush1.bf16.msra.mxu0 0
        %3072 = vmatprep.subr.bf16.mxu0 0
        %3073 = vmatpush1.bf16.msra.mxu0 0
        %3074 = vmatprep.subr.bf16.mxu0 0
        %3075 = vmatpush1.bf16.msra.mxu0 0
        %3076 = vmatprep.subr.bf16.mxu0 0
        %3077 = vmatpush1.bf16.msra.mxu0 0
        %3078 = vmatprep.subr.bf16.mxu0 0
        %3079 = vmatpush1.bf16.msra.mxu0 0
        %3080 = vmatprep.subr.bf16.mxu0 0
        %3081 = vmatpush1.bf16.msra.mxu0 0
        %3082 = vmatprep.subr.bf16.mxu0 0
        %3083 = vmatpush1.bf16.msra.mxu0 0
        %3084 = vmatprep.subr.bf16.mxu0 0
        %3085 = vmatpush1.bf16.msra.mxu0 0
        %3086 = vmatprep.subr.bf16.mxu0 0
        %3087 = vmatpush1.bf16.msra.mxu0 0
        %3088 = vmatprep.subr.bf16.mxu0 0
        %3089 = vmatpush1.bf16.msra.mxu0 0
        %3090 = vmatprep.subr.bf16.mxu0 0
        %3091 = vmatpush1.bf16.msra.mxu0 0
        %3092 = vmatprep.subr.bf16.mxu0 0
        %3093 = vmatpush1.bf16.msra.mxu0 0
        %3094 = vmatprep.subr.bf16.mxu0 0
        %3095 = vmatpush1.bf16.msra.mxu0 0
        %3096 = vmatprep.subr.bf16.mxu0 0
        %3097 = vmatpush1.bf16.msra.mxu0 0
        %3098 = vmatprep.mubr.bf16.mxu0 0
        %3099 = vmatmul.mubr.bf16.gmra.mrb[0].mxu0 %v3021
        %v3100 = vpop.f32.mrb[0].mxu0
        %v3101 = vadd.f32 %v2786, %v3100
        %v3102 = vpop.f32.mrb[0].mxu0
        %v3103 = vadd.f32 %v2790, %v3102
        %v3104 = vpop.f32.mrb[0].mxu0
        %v3105 = vadd.f32 %v2786, %v3104
        %v3106 = vpop.f32.mrb[0].mxu0
        %v3107 = vadd.f32 %v2790, %v3106
        %3108 = vdwg.mxu0
        %3109 = vmatprep.subr.bf16.mxu0 %v2961
        %3110 = vmatpush1.bf16.msra.mxu0 %v2960
        %3111 = vmatprep.subr.bf16.mxu0 %v2977
        %3112 = vmatpush1.bf16.msra.mxu0 %v2976
        %3113 = vmatprep.subr.bf16.mxu0 0
        %3114 = vmatpush1.bf16.msra.mxu0 0
        %3115 = vmatprep.subr.bf16.mxu0 0
        %3116 = vmatpush1.bf16.msra.mxu0 0
        %3117 = vmatprep.subr.bf16.mxu0 0
        %3118 = vmatpush1.bf16.msra.mxu0 0
        %3119 = vmatprep.subr.bf16.mxu0 0
        %3120 = vmatpush1.bf16.msra.mxu0 0
        %3121 = vmatprep.subr.bf16.mxu0 0
        %3122 = vmatpush1.bf16.msra.mxu0 0
        %3123 = vmatprep.subr.bf16.mxu0 0
        %3124 = vmatpush1.bf16.msra.mxu0 0
        %3125 = vmatprep.subr.bf16.mxu0 0
        %3126 = vmatpush1.bf16.msra.mxu0 0
        %3127 = vmatprep.subr.bf16.mxu0 0
        %3128 = vmatpush1.bf16.msra.mxu0 0
        %3129 = vmatprep.subr.bf16.mxu0 0
        %3130 = vmatpush1.bf16.msra.mxu0 0
        %3131 = vmatprep.subr.bf16.mxu0 0
        %3132 = vmatpush1.bf16.msra.mxu0 0
        %3133 = vmatprep.subr.bf16.mxu0 0
        %3134 = vmatpush1.bf16.msra.mxu0 0
        %3135 = vmatprep.subr.bf16.mxu0 0
        %3136 = vmatpush1.bf16.msra.mxu0 0
        %3137 = vmatprep.subr.bf16.mxu0 0
        %3138 = vmatpush1.bf16.msra.mxu0 0
        %3139 = vmatprep.subr.bf16.mxu0 0
        %3140 = vmatpush1.bf16.msra.mxu0 0
        %3141 = vmatprep.mubr.bf16.mxu0 0
        %3142 = vmatmul.mubr.bf16.gmra.mrb[0].mxu0 %v3021
        %v3143 = vpop.f32.mrb[0].mxu0
        %v3144 = vadd.f32 %v2794, %v3143
        %v3145 = vpop.f32.mrb[0].mxu0
        %v3146 = vadd.f32 %v2798, %v3145
        %v3147 = vpop.f32.mrb[0].mxu0
        %v3148 = vadd.f32 %v2794, %v3147
        %v3149 = vpop.f32.mrb[0].mxu0
        %v3150 = vadd.f32 %v2798, %v3149
        %3151 = vdwg.mxu0
        %3152 = vmatprep.subr.bf16.mxu0 %v2963
        %3153 = vmatpush1.bf16.msra.mxu0 %v2962
        %3154 = vmatprep.subr.bf16.mxu0 %v2979
        %3155 = vmatpush1.bf16.msra.mxu0 %v2978
        %3156 = vmatprep.subr.bf16.mxu0 0
        %3157 = vmatpush1.bf16.msra.mxu0 0
        %3158 = vmatprep.subr.bf16.mxu0 0
        %3159 = vmatpush1.bf16.msra.mxu0 0
        %3160 = vmatprep.subr.bf16.mxu0 0
        %3161 = vmatpush1.bf16.msra.mxu0 0
        %3162 = vmatprep.subr.bf16.mxu0 0
        %3163 = vmatpush1.bf16.msra.mxu0 0
        %3164 = vmatprep.subr.bf16.mxu0 0
        %3165 = vmatpush1.bf16.msra.mxu0 0
        %3166 = vmatprep.subr.bf16.mxu0 0
        %3167 = vmatpush1.bf16.msra.mxu0 0
        %3168 = vmatprep.subr.bf16.mxu0 0
        %3169 = vmatpush1.bf16.msra.mxu0 0
        %3170 = vmatprep.subr.bf16.mxu0 0
        %3171 = vmatpush1.bf16.msra.mxu0 0
        %3172 = vmatprep.subr.bf16.mxu0 0
        %3173 = vmatpush1.bf16.msra.mxu0 0
        %3174 = vmatprep.subr.bf16.mxu0 0
        %3175 = vmatpush1.bf16.msra.mxu0 0
        %3176 = vmatprep.subr.bf16.mxu0 0
        %3177 = vmatpush1.bf16.msra.mxu0 0
        %3178 = vmatprep.subr.bf16.mxu0 0
        %3179 = vmatpush1.bf16.msra.mxu0 0
        %3180 = vmatprep.subr.bf16.mxu0 0
        %3181 = vmatpush1.bf16.msra.mxu0 0
        %3182 = vmatprep.subr.bf16.mxu0 0
        %3183 = vmatpush1.bf16.msra.mxu0 0
        %3184 = vmatprep.mubr.bf16.mxu0 0
        %3185 = vmatmul.mubr.bf16.gmra.mrb[0].mxu0 %v3021
        %v3186 = vpop.f32.mrb[0].mxu0
        %v3187 = vadd.f32 %v2802, %v3186
        %v3188 = vpop.f32.mrb[0].mxu0
        %v3189 = vadd.f32 %v2806, %v3188
        %v3190 = vpop.f32.mrb[0].mxu0
        %v3191 = vadd.f32 %v2802, %v3190
        %v3192 = vpop.f32.mrb[0].mxu0
        %v3193 = vadd.f32 %v2806, %v3192
        %3194 = vdwg.mxu0
        %3195 = vmatprep.subr.bf16.mxu0 %v2965
        %3196 = vmatpush1.bf16.msra.mxu0 %v2964
        %3197 = vmatprep.subr.bf16.mxu0 %v2981
        %3198 = vmatpush1.bf16.msra.mxu0 %v2980
        %3199 = vmatprep.subr.bf16.mxu0 0
        %3200 = vmatpush1.bf16.msra.mxu0 0
        %3201 = vmatprep.subr.bf16.mxu0 0
        %3202 = vmatpush1.bf16.msra.mxu0 0
        %3203 = vmatprep.subr.bf16.mxu0 0
        %3204 = vmatpush1.bf16.msra.mxu0 0
        %3205 = vmatprep.subr.bf16.mxu0 0
        %3206 = vmatpush1.bf16.msra.mxu0 0
        %3207 = vmatprep.subr.bf16.mxu0 0
        %3208 = vmatpush1.bf16.msra.mxu0 0
        %3209 = vmatprep.subr.bf16.mxu0 0
        %3210 = vmatpush1.bf16.msra.mxu0 0
        %3211 = vmatprep.subr.bf16.mxu0 0
        %3212 = vmatpush1.bf16.msra.mxu0 0
        %3213 = vmatprep.subr.bf16.mxu0 0
        %3214 = vmatpush1.bf16.msra.mxu0 0
        %3215 = vmatprep.subr.bf16.mxu0 0
        %3216 = vmatpush1.bf16.msra.mxu0 0
        %3217 = vmatprep.subr.bf16.mxu0 0
        %3218 = vmatpush1.bf16.msra.mxu0 0
        %3219 = vmatprep.subr.bf16.mxu0 0
        %3220 = vmatpush1.bf16.msra.mxu0 0
        %3221 = vmatprep.subr.bf16.mxu0 0
        %3222 = vmatpush1.bf16.msra.mxu0 0
        %3223 = vmatprep.subr.bf16.mxu0 0
        %3224 = vmatpush1.bf16.msra.mxu0 0
        %3225 = vmatprep.subr.bf16.mxu0 0
        %3226 = vmatpush1.bf16.msra.mxu0 0
        %3227 = vmatprep.mubr.bf16.mxu0 0
        %3228 = vmatmul.mubr.bf16.gmra.mrb[0].mxu0 %v3021
        %v3229 = vpop.f32.mrb[0].mxu0
        %v3230 = vadd.f32 %v2810, %v3229
        %v3231 = vpop.f32.mrb[0].mxu0
        %v3232 = vadd.f32 %v2814, %v3231
        %v3233 = vpop.f32.mrb[0].mxu0
        %v3234 = vadd.f32 %v2810, %v3233
        %v3235 = vpop.f32.mrb[0].mxu0
        %v3236 = vadd.f32 %v2814, %v3235
        %3237 = vdwg.mxu0
        %3238 = vmatprep.subr.bf16.mxu0 %v2967
        %3239 = vmatpush1.bf16.msra.mxu0 %v2966
        %3240 = vmatprep.subr.bf16.mxu0 %v2983
        %3241 = vmatpush1.bf16.msra.mxu0 %v2982
        %3242 = vmatprep.subr.bf16.mxu0 0
        %3243 = vmatpush1.bf16.msra.mxu0 0
        %3244 = vmatprep.subr.bf16.mxu0 0
        %3245 = vmatpush1.bf16.msra.mxu0 0
        %3246 = vmatprep.subr.bf16.mxu0 0
        %3247 = vmatpush1.bf16.msra.mxu0 0
        %3248 = vmatprep.subr.bf16.mxu0 0
        %3249 = vmatpush1.bf16.msra.mxu0 0
        %3250 = vmatprep.subr.bf16.mxu0 0
        %3251 = vmatpush1.bf16.msra.mxu0 0
        %3252 = vmatprep.subr.bf16.mxu0 0
        %3253 = vmatpush1.bf16.msra.mxu0 0
        %3254 = vmatprep.subr.bf16.mxu0 0
        %3255 = vmatpush1.bf16.msra.mxu0 0
        %3256 = vmatprep.subr.bf16.mxu0 0
        %3257 = vmatpush1.bf16.msra.mxu0 0
        %3258 = vmatprep.subr.bf16.mxu0 0
        %3259 = vmatpush1.bf16.msra.mxu0 0
        %3260 = vmatprep.subr.bf16.mxu0 0
        %3261 = vmatpush1.bf16.msra.mxu0 0
        %3262 = vmatprep.subr.bf16.mxu0 0
        %3263 = vmatpush1.bf16.msra.mxu0 0
        %3264 = vmatprep.subr.bf16.mxu0 0
        %3265 = vmatpush1.bf16.msra.mxu0 0
        %3266 = vmatprep.subr.bf16.mxu0 0
        %3267 = vmatpush1.bf16.msra.mxu0 0
        %3268 = vmatprep.subr.bf16.mxu0 0
        %3269 = vmatpush1.bf16.msra.mxu0 0
        %3270 = vmatprep.mubr.bf16.mxu0 0
        %3271 = vmatmul.mubr.bf16.gmra.mrb[0].mxu0 %v3021
        %v3272 = vpop.f32.mrb[0].mxu0
        %v3273 = vadd.f32 %v2818, %v3272
        %v3274 = vpop.f32.mrb[0].mxu0
        %v3275 = vadd.f32 %v2822, %v3274
        %v3276 = vpop.f32.mrb[0].mxu0
        %v3277 = vadd.f32 %v2818, %v3276
        %v3278 = vpop.f32.mrb[0].mxu0
        %v3279 = vadd.f32 %v2822, %v3278
        %3280 = vdwg.mxu0
        %3281 = vmatprep.subr.bf16.mxu0 %v2969
        %3282 = vmatpush1.bf16.msra.mxu0 %v2968
        %3283 = vmatprep.subr.bf16.mxu0 %v2985
        %3284 = vmatpush1.bf16.msra.mxu0 %v2984
        %3285 = vmatprep.subr.bf16.mxu0 0
        %3286 = vmatpush1.bf16.msra.mxu0 0
        %3287 = vmatprep.subr.bf16.mxu0 0
        %3288 = vmatpush1.bf16.msra.mxu0 0
        %3289 = vmatprep.subr.bf16.mxu0 0
        %3290 = vmatpush1.bf16.msra.mxu0 0
        %3291 = vmatprep.subr.bf16.mxu0 0
        %3292 = vmatpush1.bf16.msra.mxu0 0
        %3293 = vmatprep.subr.bf16.mxu0 0
        %3294 = vmatpush1.bf16.msra.mxu0 0
        %3295 = vmatprep.subr.bf16.mxu0 0
        %3296 = vmatpush1.bf16.msra.mxu0 0
        %3297 = vmatprep.subr.bf16.mxu0 0
        %3298 = vmatpush1.bf16.msra.mxu0 0
        %3299 = vmatprep.subr.bf16.mxu0 0
        %3300 = vmatpush1.bf16.msra.mxu0 0
        %3301 = vmatprep.subr.bf16.mxu0 0
        %3302 = vmatpush1.bf16.msra.mxu0 0
        %3303 = vmatprep.subr.bf16.mxu0 0
        %3304 = vmatpush1.bf16.msra.mxu0 0
        %3305 = vmatprep.subr.bf16.mxu0 0
        %3306 = vmatpush1.bf16.msra.mxu0 0
        %3307 = vmatprep.subr.bf16.mxu0 0
        %3308 = vmatpush1.bf16.msra.mxu0 0
        %3309 = vmatprep.subr.bf16.mxu0 0
        %3310 = vmatpush1.bf16.msra.mxu0 0
        %3311 = vmatprep.subr.bf16.mxu0 0
        %3312 = vmatpush1.bf16.msra.mxu0 0
        %3313 = vmatprep.mubr.bf16.mxu0 0
        %3314 = vmatmul.mubr.bf16.gmra.mrb[0].mxu0 %v3021
        %v3315 = vpop.f32.mrb[0].mxu0
        %v3316 = vadd.f32 %v2826, %v3315
        %v3317 = vpop.f32.mrb[0].mxu0
        %v3318 = vadd.f32 %v2830, %v3317
        %v3319 = vpop.f32.mrb[0].mxu0
        %v3320 = vadd.f32 %v2826, %v3319
        %v3321 = vpop.f32.mrb[0].mxu0
        %v3322 = vadd.f32 %v2830, %v3321
        %3323 = vdwg.mxu0
        %3324 = vmatprep.subr.bf16.mxu0 %v2971
        %3325 = vmatpush1.bf16.msra.mxu0 %v2970
        %3326 = vmatprep.subr.bf16.mxu0 %v2987
        %3327 = vmatpush1.bf16.msra.mxu0 %v2986
        %3328 = vmatprep.subr.bf16.mxu0 0
        %3329 = vmatpush1.bf16.msra.mxu0 0
        %3330 = vmatprep.subr.bf16.mxu0 0
        %3331 = vmatpush1.bf16.msra.mxu0 0
        %3332 = vmatprep.subr.bf16.mxu0 0
        %3333 = vmatpush1.bf16.msra.mxu0 0
        %3334 = vmatprep.subr.bf16.mxu0 0
        %3335 = vmatpush1.bf16.msra.mxu0 0
        %3336 = vmatprep.subr.bf16.mxu0 0
        %3337 = vmatpush1.bf16.msra.mxu0 0
        %3338 = vmatprep.subr.bf16.mxu0 0
        %3339 = vmatpush1.bf16.msra.mxu0 0
        %3340 = vmatprep.subr.bf16.mxu0 0
        %3341 = vmatpush1.bf16.msra.mxu0 0
        %3342 = vmatprep.subr.bf16.mxu0 0
        %3343 = vmatpush1.bf16.msra.mxu0 0
        %3344 = vmatprep.subr.bf16.mxu0 0
        %3345 = vmatpush1.bf16.msra.mxu0 0
        %3346 = vmatprep.subr.bf16.mxu0 0
        %3347 = vmatpush1.bf16.msra.mxu0 0
        %3348 = vmatprep.subr.bf16.mxu0 0
        %3349 = vmatpush1.bf16.msra.mxu0 0
        %3350 = vmatprep.subr.bf16.mxu0 0
        %3351 = vmatpush1.bf16.msra.mxu0 0
        %3352 = vmatprep.subr.bf16.mxu0 0
        %3353 = vmatpush1.bf16.msra.mxu0 0
        %3354 = vmatprep.subr.bf16.mxu0 0
        %3355 = vmatpush1.bf16.msra.mxu0 0
        %3356 = vmatprep.mubr.bf16.mxu0 0
        %3357 = vmatmul.mubr.bf16.gmra.mrb[0].mxu0 %v3021
        %v3358 = vpop.f32.mrb[0].mxu0
        %v3359 = vadd.f32 %v2834, %v3358
        %v3360 = vpop.f32.mrb[0].mxu0
        %v3361 = vadd.f32 %v2838, %v3360
        %v3362 = vpop.f32.mrb[0].mxu0
        %v3363 = vadd.f32 %v2834, %v3362
        %v3364 = vpop.f32.mrb[0].mxu0
        %v3365 = vadd.f32 %v2838, %v3364
        %3366 = vdwg.mxu0
        %v3367 = vmax.f32 %v3058, 0.0
        %v3368 = vmax.f32 %v3060, 0.0
        %v3369 = vmax.f32 %v3101, 0.0
        %v3370 = vmax.f32 %v3103, 0.0
        %v3371 = vmax.f32 %v3144, 0.0
        %v3372 = vmax.f32 %v3146, 0.0
        %v3373 = vmax.f32 %v3187, 0.0
        %v3374 = vmax.f32 %v3189, 0.0
        %v3375 = vmax.f32 %v3230, 0.0
        %v3376 = vmax.f32 %v3232, 0.0
        %v3377 = vmax.f32 %v3273, 0.0
        %v3378 = vmax.f32 %v3275, 0.0
        %v3379 = vmax.f32 %v3316, 0.0
        %v3380 = vmax.f32 %v3318, 0.0
        %v3381 = vmax.f32 %v3359, 0.0
        %v3382 = vmax.f32 %v3361, 0.0
        %v3383 = vmax.f32 %v3062, 0.0
        %v3384 = vmax.f32 %v3064, 0.0
        %v3385 = vmax.f32 %v3105, 0.0
        %v3386 = vmax.f32 %v3107, 0.0
        %v3387 = vmax.f32 %v3148, 0.0
        %v3388 = vmax.f32 %v3150, 0.0
        %v3389 = vmax.f32 %v3191, 0.0
        %v3390 = vmax.f32 %v3193, 0.0
        %v3391 = vmax.f32 %v3234, 0.0
        %v3392 = vmax.f32 %v3236, 0.0
        %v3393 = vmax.f32 %v3277, 0.0
        %v3394 = vmax.f32 %v3279, 0.0
        %v3395 = vmax.f32 %v3320, 0.0
        %v3396 = vmax.f32 %v3322, 0.0
        %v3397 = vmax.f32 %v3363, 0.0
        %v3398 = vmax.f32 %v3365, 0.0
        %v3399 = vpack.c.bf16 %v3367, %v3367
        %v3400 = vpack.c.bf16 %v3368, %v3368
        %v3401 = vpack.c.bf16 %v3369, %v3369
        %v3402 = vpack.c.bf16 %v3370, %v3370
        %v3403 = vpack.c.bf16 %v3371, %v3371
        %v3404 = vpack.c.bf16 %v3372, %v3372
        %v3405 = vpack.c.bf16 %v3373, %v3373
        %v3406 = vpack.c.bf16 %v3374, %v3374
        %v3407 = vpack.c.bf16 %v3375, %v3375
        %v3408 = vpack.c.bf16 %v3376, %v3376
        %v3409 = vpack.c.bf16 %v3377, %v3377
        %v3410 = vpack.c.bf16 %v3378, %v3378
        %v3411 = vpack.c.bf16 %v3379, %v3379
        %v3412 = vpack.c.bf16 %v3380, %v3380
        %v3413 = vpack.c.bf16 %v3381, %v3381
        %v3414 = vpack.c.bf16 %v3382, %v3382
        %v3415 = vpack.c.bf16 %v3383, %v3383
        %v3416 = vpack.c.bf16 %v3384, %v3384
        %v3417 = vpack.c.bf16 %v3385, %v3385
        %v3418 = vpack.c.bf16 %v3386, %v3386
        %v3419 = vpack.c.bf16 %v3387, %v3387
        %v3420 = vpack.c.bf16 %v3388, %v3388
        %v3421 = vpack.c.bf16 %v3389, %v3389
        %v3422 = vpack.c.bf16 %v3390, %v3390
        %v3423 = vpack.c.bf16 %v3391, %v3391
        %v3424 = vpack.c.bf16 %v3392, %v3392
        %v3425 = vpack.c.bf16 %v3393, %v3393
        %v3426 = vpack.c.bf16 %v3394, %v3394
        %v3427 = vpack.c.bf16 %v3395, %v3395
        %v3428 = vpack.c.bf16 %v3396, %v3396
        %v3429 = vpack.c.bf16 %v3397, %v3397
        %v3430 = vpack.c.bf16 %v3398, %v3398
        %v3431 = vld [vmem:[%s771] sm:$0xf]
        %v3432 = vld [vmem:[%s771 + $0x4] sm:$0xf]
        %v3433 = vld [vmem:[%s771 + $0x8] sm:$0xf]
        %v3434 = vld [vmem:[%s771 + $0xc] sm:$0xf]
        %v3435 = vld [vmem:[%s771 + $0x10] sm:$0xf]
        %v3436 = vld [vmem:[%s771 + $0x14] sm:$0xf]
        %v3437 = vld [vmem:[%s771 + $0x18] sm:$0xf]
        %v3438 = vld [vmem:[%s771 + $0x1c] sm:$0xf]
        %v3439 = vld [vmem:[%s771 + $0x20] sm:$0xf]
        %v3440 = vld [vmem:[%s771 + $0x24] sm:$0xf]
        %v3441 = vld [vmem:[%s771 + $0x28] sm:$0xf]
        %v3442 = vld [vmem:[%s771 + $0x2c] sm:$0xf]
        %v3443 = vld [vmem:[%s771 + $0x30] sm:$0xf]
        %v3444 = vld [vmem:[%s771 + $0x34] sm:$0xf]
        %v3445 = vld [vmem:[%s771 + $0x38] sm:$0xf]
        %v3446 = vld [vmem:[%s771 + $0x3c] sm:$0xf]
        %v3447 = vld [vmem:[%s771 + $0x40] sm:$0xf]
        %v3448 = vld [vmem:[%s771 + $0x44] sm:$0xf]
        %v3449 = vld [vmem:[%s771 + $0x48] sm:$0xf]
        %v3450 = vld [vmem:[%s771 + $0x4c] sm:$0xf]
        %v3451 = vld [vmem:[%s771 + $0x50] sm:$0xf]
        %v3452 = vld [vmem:[%s771 + $0x54] sm:$0xf]
        %v3453 = vld [vmem:[%s771 + $0x58] sm:$0xf]
        %v3454 = vld [vmem:[%s771 + $0x5c] sm:$0xf]
        %v3455 = vld [vmem:[%s771 + $0x60] sm:$0xf]
        %v3456 = vld [vmem:[%s771 + $0x64] sm:$0xf]
        %v3457 = vld [vmem:[%s771 + $0x68] sm:$0xf]
        %v3458 = vld [vmem:[%s771 + $0x6c] sm:$0xf]
        %v3459 = vld [vmem:[%s771 + $0x70] sm:$0xf]
        %v3460 = vld [vmem:[%s771 + $0x74] sm:$0xf]
        %v3461 = vld [vmem:[%s771 + $0x78] sm:$0xf]
        %v3462 = vld [vmem:[%s771 + $0x7c] sm:$0xf]
        %v3463 = vld [vmem:[%s771 + $0x80] sm:$0xf]
        %v3464 = vld [vmem:[%s771 + $0x84] sm:$0xf]
        %v3465 = vld [vmem:[%s771 + $0x88] sm:$0xf]
        %v3466 = vld [vmem:[%s771 + $0x8c] sm:$0xf]
        %v3467 = vld [vmem:[%s771 + $0x90] sm:$0xf]
        %v3468 = vld [vmem:[%s771 + $0x94] sm:$0xf]
        %v3469 = vld [vmem:[%s771 + $0x98] sm:$0xf]
        %v3470 = vld [vmem:[%s771 + $0x9c] sm:$0xf]
        %v3471 = vld [vmem:[%s771 + $0xa0] sm:$0xf]
        %v3472 = vld [vmem:[%s771 + $0xa4] sm:$0xf]
        %v3473 = vld [vmem:[%s771 + $0xa8] sm:$0xf]
        %v3474 = vld [vmem:[%s771 + $0xac] sm:$0xf]
        %v3475 = vld [vmem:[%s771 + $0xb0] sm:$0xf]
        %v3476 = vld [vmem:[%s771 + $0xb4] sm:$0xf]
        %v3477 = vld [vmem:[%s771 + $0xb8] sm:$0xf]
        %v3478 = vld [vmem:[%s771 + $0xbc] sm:$0xf]
        %v3479 = vld [vmem:[%s771 + $0xc0] sm:$0xf]
        %v3480 = vld [vmem:[%s771 + $0xc4] sm:$0xf]
        %v3481 = vld [vmem:[%s771 + $0xc8] sm:$0xf]
        %v3482 = vld [vmem:[%s771 + $0xcc] sm:$0xf]
        %v3483 = vld [vmem:[%s771 + $0xd0] sm:$0xf]
        %v3484 = vld [vmem:[%s771 + $0xd4] sm:$0xf]
        %v3485 = vld [vmem:[%s771 + $0xd8] sm:$0xf]
        %v3486 = vld [vmem:[%s771 + $0xdc] sm:$0xf]
        %v3487 = vld [vmem:[%s771 + $0xe0] sm:$0xf]
        %v3488 = vld [vmem:[%s771 + $0xe4] sm:$0xf]
        %v3489 = vld [vmem:[%s771 + $0xe8] sm:$0xf]
        %v3490 = vld [vmem:[%s771 + $0xec] sm:$0xf]
        %v3491 = vld [vmem:[%s771 + $0xf0] sm:$0xf]
        %v3492 = vld [vmem:[%s771 + $0xf4] sm:$0xf]
        %v3493 = vld [vmem:[%s771 + $0xf8] sm:$0xf]
        %v3494 = vld [vmem:[%s771 + $0xfc] sm:$0xf]
        %v3495 = vld [vmem:[%s771 + $0x100] sm:$0xf]
        %v3496 = vld [vmem:[%s771 + $0x104] sm:$0xf]
        %v3497 = vld [vmem:[%s771 + $0x108] sm:$0xf]
        %v3498 = vld [vmem:[%s771 + $0x10c] sm:$0xf]
        %v3499 = vld [vmem:[%s771 + $0x110] sm:$0xf]
        %v3500 = vld [vmem:[%s771 + $0x114] sm:$0xf]
        %v3501 = vld [vmem:[%s771 + $0x118] sm:$0xf]
        %v3502 = vld [vmem:[%s771 + $0x11c] sm:$0xf]
        %v3503 = vld [vmem:[%s771 + $0x120] sm:$0xf]
        %v3504 = vld [vmem:[%s771 + $0x124] sm:$0xf]
        %v3505 = vld [vmem:[%s771 + $0x128] sm:$0xf]
        %v3506 = vld [vmem:[%s771 + $0x12c] sm:$0xf]
        %v3507 = vld [vmem:[%s771 + $0x130] sm:$0xf]
        %v3508 = vld [vmem:[%s771 + $0x134] sm:$0xf]
        %v3509 = vld [vmem:[%s771 + $0x138] sm:$0xf]
        %v3510 = vld [vmem:[%s771 + $0x13c] sm:$0xf]
        %v3511 = vld [vmem:[%s771 + $0x140] sm:$0xf]
        %v3512 = vld [vmem:[%s771 + $0x144] sm:$0xf]
        %v3513 = vld [vmem:[%s771 + $0x148] sm:$0xf]
        %v3514 = vld [vmem:[%s771 + $0x14c] sm:$0xf]
        %v3515 = vld [vmem:[%s771 + $0x150] sm:$0xf]
        %v3516 = vld [vmem:[%s771 + $0x154] sm:$0xf]
        %v3517 = vld [vmem:[%s771 + $0x158] sm:$0xf]
        %v3518 = vld [vmem:[%s771 + $0x15c] sm:$0xf]
        %v3519 = vld [vmem:[%s771 + $0x160] sm:$0xf]
        %v3520 = vld [vmem:[%s771 + $0x164] sm:$0xf]
        %v3521 = vld [vmem:[%s771 + $0x168] sm:$0xf]
        %v3522 = vld [vmem:[%s771 + $0x16c] sm:$0xf]
        %v3523 = vld [vmem:[%s771 + $0x170] sm:$0xf]
        %v3524 = vld [vmem:[%s771 + $0x174] sm:$0xf]
        %v3525 = vld [vmem:[%s771 + $0x178] sm:$0xf]
        %v3526 = vld [vmem:[%s771 + $0x17c] sm:$0xf]
        %v3527 = vld [vmem:[%s771 + $0x180] sm:$0xf]
        %v3528 = vld [vmem:[%s771 + $0x184] sm:$0xf]
        %v3529 = vld [vmem:[%s771 + $0x188] sm:$0xf]
        %v3530 = vld [vmem:[%s771 + $0x18c] sm:$0xf]
        %v3531 = vld [vmem:[%s771 + $0x190] sm:$0xf]
        %v3532 = vld [vmem:[%s771 + $0x194] sm:$0xf]
        %v3533 = vld [vmem:[%s771 + $0x198] sm:$0xf]
        %v3534 = vld [vmem:[%s771 + $0x19c] sm:$0xf]
        %v3535 = vld [vmem:[%s771 + $0x1a0] sm:$0xf]
        %v3536 = vld [vmem:[%s771 + $0x1a4] sm:$0xf]
        %v3537 = vld [vmem:[%s771 + $0x1a8] sm:$0xf]
        %v3538 = vld [vmem:[%s771 + $0x1ac] sm:$0xf]
        %v3539 = vld [vmem:[%s771 + $0x1b0] sm:$0xf]
        %v3540 = vld [vmem:[%s771 + $0x1b4] sm:$0xf]
        %v3541 = vld [vmem:[%s771 + $0x1b8] sm:$0xf]
        %v3542 = vld [vmem:[%s771 + $0x1bc] sm:$0xf]
        %v3543 = vld [vmem:[%s771 + $0x1c0] sm:$0xf]
        %v3544 = vld [vmem:[%s771 + $0x1c4] sm:$0xf]
        %v3545 = vld [vmem:[%s771 + $0x1c8] sm:$0xf]
        %v3546 = vld [vmem:[%s771 + $0x1cc] sm:$0xf]
        %v3547 = vld [vmem:[%s771 + $0x1d0] sm:$0xf]
        %v3548 = vld [vmem:[%s771 + $0x1d4] sm:$0xf]
        %v3549 = vld [vmem:[%s771 + $0x1d8] sm:$0xf]
        %v3550 = vld [vmem:[%s771 + $0x1dc] sm:$0xf]
        %v3551 = vld [vmem:[%s771 + $0x1e0] sm:$0xf]
        %v3552 = vld [vmem:[%s771 + $0x1e4] sm:$0xf]
        %v3553 = vld [vmem:[%s771 + $0x1e8] sm:$0xf]
        %v3554 = vld [vmem:[%s771 + $0x1ec] sm:$0xf]
        %v3555 = vld [vmem:[%s771 + $0x1f0] sm:$0xf]
        %v3556 = vld [vmem:[%s771 + $0x1f4] sm:$0xf]
        %v3557 = vld [vmem:[%s771 + $0x1f8] sm:$0xf]
        %v3558 = vld [vmem:[%s771 + $0x1fc] sm:$0xf]
        %v3559 = vld [vmem:[%s771 + $0x200] sm:$0xf]
        %v3560 = vld [vmem:[%s771 + $0x204] sm:$0xf]
        %v3561 = vld [vmem:[%s771 + $0x208] sm:$0xf]
        %v3562 = vld [vmem:[%s771 + $0x20c] sm:$0xf]
        %v3563 = vld [vmem:[%s771 + $0x210] sm:$0xf]
        %v3564 = vld [vmem:[%s771 + $0x214] sm:$0xf]
        %v3565 = vld [vmem:[%s771 + $0x218] sm:$0xf]
        %v3566 = vld [vmem:[%s771 + $0x21c] sm:$0xf]
        %v3567 = vld [vmem:[%s771 + $0x220] sm:$0xf]
        %v3568 = vld [vmem:[%s771 + $0x224] sm:$0xf]
        %v3569 = vld [vmem:[%s771 + $0x228] sm:$0xf]
        %v3570 = vld [vmem:[%s771 + $0x22c] sm:$0xf]
        %v3571 = vld [vmem:[%s771 + $0x230] sm:$0xf]
        %v3572 = vld [vmem:[%s771 + $0x234] sm:$0xf]
        %v3573 = vld [vmem:[%s771 + $0x238] sm:$0xf]
        %v3574 = vld [vmem:[%s771 + $0x23c] sm:$0xf]
        %v3575 = vld [vmem:[%s771 + $0x240] sm:$0xf]
        %v3576 = vld [vmem:[%s771 + $0x244] sm:$0xf]
        %v3577 = vld [vmem:[%s771 + $0x248] sm:$0xf]
        %v3578 = vld [vmem:[%s771 + $0x24c] sm:$0xf]
        %v3579 = vld [vmem:[%s771 + $0x250] sm:$0xf]
        %v3580 = vld [vmem:[%s771 + $0x254] sm:$0xf]
        %v3581 = vld [vmem:[%s771 + $0x258] sm:$0xf]
        %v3582 = vld [vmem:[%s771 + $0x25c] sm:$0xf]
        %v3583 = vld [vmem:[%s771 + $0x260] sm:$0xf]
        %v3584 = vld [vmem:[%s771 + $0x264] sm:$0xf]
        %v3585 = vld [vmem:[%s771 + $0x268] sm:$0xf]
        %v3586 = vld [vmem:[%s771 + $0x26c] sm:$0xf]
        %v3587 = vld [vmem:[%s771 + $0x270] sm:$0xf]
        %v3588 = vld [vmem:[%s771 + $0x274] sm:$0xf]
        %v3589 = vld [vmem:[%s771 + $0x278] sm:$0xf]
        %v3590 = vld [vmem:[%s771 + $0x27c] sm:$0xf]
        %v3591 = vld [vmem:[%s771 + $0x280] sm:$0xf]
        %v3592 = vld [vmem:[%s771 + $0x284] sm:$0xf]
        %v3593 = vld [vmem:[%s771 + $0x288] sm:$0xf]
        %v3594 = vld [vmem:[%s771 + $0x28c] sm:$0xf]
        %v3595 = vld [vmem:[%s771 + $0x290] sm:$0xf]
        %v3596 = vld [vmem:[%s771 + $0x294] sm:$0xf]
        %v3597 = vld [vmem:[%s771 + $0x298] sm:$0xf]
        %v3598 = vld [vmem:[%s771 + $0x29c] sm:$0xf]
        %v3599 = vld [vmem:[%s771 + $0x2a0] sm:$0xf]
        %v3600 = vld [vmem:[%s771 + $0x2a4] sm:$0xf]
        %v3601 = vld [vmem:[%s771 + $0x2a8] sm:$0xf]
        %v3602 = vld [vmem:[%s771 + $0x2ac] sm:$0xf]
        %v3603 = vld [vmem:[%s771 + $0x2b0] sm:$0xf]
        %v3604 = vld [vmem:[%s771 + $0x2b4] sm:$0xf]
        %v3605 = vld [vmem:[%s771 + $0x2b8] sm:$0xf]
        %v3606 = vld [vmem:[%s771 + $0x2bc] sm:$0xf]
        %v3607 = vld [vmem:[%s771 + $0x2c0] sm:$0xf]
        %v3608 = vld [vmem:[%s771 + $0x2c4] sm:$0xf]
        %v3609 = vld [vmem:[%s771 + $0x2c8] sm:$0xf]
        %v3610 = vld [vmem:[%s771 + $0x2cc] sm:$0xf]
        %v3611 = vld [vmem:[%s771 + $0x2d0] sm:$0xf]
        %v3612 = vld [vmem:[%s771 + $0x2d4] sm:$0xf]
        %v3613 = vld [vmem:[%s771 + $0x2d8] sm:$0xf]
        %v3614 = vld [vmem:[%s771 + $0x2dc] sm:$0xf]
        %v3615 = vld [vmem:[%s771 + $0x2e0] sm:$0xf]
        %v3616 = vld [vmem:[%s771 + $0x2e4] sm:$0xf]
        %v3617 = vld [vmem:[%s771 + $0x2e8] sm:$0xf]
        %v3618 = vld [vmem:[%s771 + $0x2ec] sm:$0xf]
        %v3619 = vld [vmem:[%s771 + $0x2f0] sm:$0xf]
        %v3620 = vld [vmem:[%s771 + $0x2f4] sm:$0xf]
        %v3621 = vld [vmem:[%s771 + $0x2f8] sm:$0xf]
        %v3622 = vld [vmem:[%s771 + $0x2fc] sm:$0xf]
        %v3623 = vld [vmem:[%s771 + $0x300] sm:$0xf]
        %v3624 = vld [vmem:[%s771 + $0x304] sm:$0xf]
        %v3625 = vld [vmem:[%s771 + $0x308] sm:$0xf]
        %v3626 = vld [vmem:[%s771 + $0x30c] sm:$0xf]
        %v3627 = vld [vmem:[%s771 + $0x310] sm:$0xf]
        %v3628 = vld [vmem:[%s771 + $0x314] sm:$0xf]
        %v3629 = vld [vmem:[%s771 + $0x318] sm:$0xf]
        %v3630 = vld [vmem:[%s771 + $0x31c] sm:$0xf]
        %v3631 = vld [vmem:[%s771 + $0x320] sm:$0xf]
        %v3632 = vld [vmem:[%s771 + $0x324] sm:$0xf]
        %v3633 = vld [vmem:[%s771 + $0x328] sm:$0xf]
        %v3634 = vld [vmem:[%s771 + $0x32c] sm:$0xf]
        %v3635 = vld [vmem:[%s771 + $0x330] sm:$0xf]
        %v3636 = vld [vmem:[%s771 + $0x334] sm:$0xf]
        %v3637 = vld [vmem:[%s771 + $0x338] sm:$0xf]
        %v3638 = vld [vmem:[%s771 + $0x33c] sm:$0xf]
        %v3639 = vld [vmem:[%s771 + $0x340] sm:$0xf]
        %v3640 = vld [vmem:[%s771 + $0x344] sm:$0xf]
        %v3641 = vld [vmem:[%s771 + $0x348] sm:$0xf]
        %v3642 = vld [vmem:[%s771 + $0x34c] sm:$0xf]
        %v3643 = vld [vmem:[%s771 + $0x350] sm:$0xf]
        %v3644 = vld [vmem:[%s771 + $0x354] sm:$0xf]
        %v3645 = vld [vmem:[%s771 + $0x358] sm:$0xf]
        %v3646 = vld [vmem:[%s771 + $0x35c] sm:$0xf]
        %v3647 = vld [vmem:[%s771 + $0x360] sm:$0xf]
        %v3648 = vld [vmem:[%s771 + $0x364] sm:$0xf]
        %v3649 = vld [vmem:[%s771 + $0x368] sm:$0xf]
        %v3650 = vld [vmem:[%s771 + $0x36c] sm:$0xf]
        %v3651 = vld [vmem:[%s771 + $0x370] sm:$0xf]
        %v3652 = vld [vmem:[%s771 + $0x374] sm:$0xf]
        %v3653 = vld [vmem:[%s771 + $0x378] sm:$0xf]
        %v3654 = vld [vmem:[%s771 + $0x37c] sm:$0xf]
        %v3655 = vld [vmem:[%s771 + $0x380] sm:$0xf]
        %v3656 = vld [vmem:[%s771 + $0x384] sm:$0xf]
        %v3657 = vld [vmem:[%s771 + $0x388] sm:$0xf]
        %v3658 = vld [vmem:[%s771 + $0x38c] sm:$0xf]
        %v3659 = vld [vmem:[%s771 + $0x390] sm:$0xf]
        %v3660 = vld [vmem:[%s771 + $0x394] sm:$0xf]
        %v3661 = vld [vmem:[%s771 + $0x398] sm:$0xf]
        %v3662 = vld [vmem:[%s771 + $0x39c] sm:$0xf]
        %v3663 = vld [vmem:[%s771 + $0x3a0] sm:$0xf]
        %v3664 = vld [vmem:[%s771 + $0x3a4] sm:$0xf]
        %v3665 = vld [vmem:[%s771 + $0x3a8] sm:$0xf]
        %v3666 = vld [vmem:[%s771 + $0x3ac] sm:$0xf]
        %v3667 = vld [vmem:[%s771 + $0x3b0] sm:$0xf]
        %v3668 = vld [vmem:[%s771 + $0x3b4] sm:$0xf]
        %v3669 = vld [vmem:[%s771 + $0x3b8] sm:$0xf]
        %v3670 = vld [vmem:[%s771 + $0x3bc] sm:$0xf]
        %v3671 = vld [vmem:[%s771 + $0x3c0] sm:$0xf]
        %v3672 = vld [vmem:[%s771 + $0x3c4] sm:$0xf]
        %v3673 = vld [vmem:[%s771 + $0x3c8] sm:$0xf]
        %v3674 = vld [vmem:[%s771 + $0x3cc] sm:$0xf]
        %v3675 = vld [vmem:[%s771 + $0x3d0] sm:$0xf]
        %v3676 = vld [vmem:[%s771 + $0x3d4] sm:$0xf]
        %v3677 = vld [vmem:[%s771 + $0x3d8] sm:$0xf]
        %v3678 = vld [vmem:[%s771 + $0x3dc] sm:$0xf]
        %v3679 = vld [vmem:[%s771 + $0x3e0] sm:$0xf]
        %v3680 = vld [vmem:[%s771 + $0x3e4] sm:$0xf]
        %v3681 = vld [vmem:[%s771 + $0x3e8] sm:$0xf]
        %v3682 = vld [vmem:[%s771 + $0x3ec] sm:$0xf]
        %v3683 = vld [vmem:[%s771 + $0x3f0] sm:$0xf]
        %v3684 = vld [vmem:[%s771 + $0x3f4] sm:$0xf]
        %v3685 = vld [vmem:[%s771 + $0x3f8] sm:$0xf]
        %v3686 = vld [vmem:[%s771 + $0x3fc] sm:$0xf]
        %v3687 = vld [vmem:[%s774] sm:$0x1]
        %v3689 = vlaneseq
        %v3690 = vshrl.u32 %v3689, 7
        %v3691 = vsub.s32 0, %v3690
        %v3692 = vrot.slane %v3687, %v3691
        %v3726 = vunpack.c.l.b16 %v3399
        %v3727 = vunpack.c.l.b16 %v3400
        %v3728 = vunpack.c.l.b16 %v3401
        %v3729 = vunpack.c.l.b16 %v3402
        %v3730 = vunpack.c.l.b16 %v3403
        %v3731 = vunpack.c.l.b16 %v3404
        %v3732 = vunpack.c.l.b16 %v3405
        %v3733 = vunpack.c.l.b16 %v3406
        %v3734 = vunpack.c.l.b16 %v3407
        %v3735 = vunpack.c.l.b16 %v3408
        %v3736 = vunpack.c.l.b16 %v3409
        %v3737 = vunpack.c.l.b16 %v3410
        %v3738 = vunpack.c.l.b16 %v3411
        %v3739 = vunpack.c.l.b16 %v3412
        %v3740 = vunpack.c.l.b16 %v3413
        %v3741 = vunpack.c.l.b16 %v3414
        %v3742 = vunpack.c.l.b16 %v3415
        %v3743 = vunpack.c.l.b16 %v3416
        %v3744 = vunpack.c.l.b16 %v3417
        %v3745 = vunpack.c.l.b16 %v3418
        %v3746 = vunpack.c.l.b16 %v3419
        %v3747 = vunpack.c.l.b16 %v3420
        %v3748 = vunpack.c.l.b16 %v3421
        %v3749 = vunpack.c.l.b16 %v3422
        %v3750 = vunpack.c.l.b16 %v3423
        %v3751 = vunpack.c.l.b16 %v3424
        %v3752 = vunpack.c.l.b16 %v3425
        %v3753 = vunpack.c.l.b16 %v3426
        %v3754 = vunpack.c.l.b16 %v3427
        %v3755 = vunpack.c.l.b16 %v3428
        %v3756 = vunpack.c.l.b16 %v3429
        %v3757 = vunpack.c.l.b16 %v3430
        %v3758 = vpack.c.b16 %v3742, %v3726
        %v3759 = vpack.c.b16 %v3743, %v3727
        %v3760 = vpack.c.b16 %v3744, %v3728
        %v3761 = vpack.c.b16 %v3745, %v3729
        %v3762 = vpack.c.b16 %v3746, %v3730
        %v3763 = vpack.c.b16 %v3747, %v3731
        %v3764 = vpack.c.b16 %v3748, %v3732
        %v3765 = vpack.c.b16 %v3749, %v3733
        %v3766 = vpack.c.b16 %v3750, %v3734
        %v3767 = vpack.c.b16 %v3751, %v3735
        %v3768 = vpack.c.b16 %v3752, %v3736
        %v3769 = vpack.c.b16 %v3753, %v3737
        %v3770 = vpack.c.b16 %v3754, %v3738
        %v3771 = vpack.c.b16 %v3755, %v3739
        %v3772 = vpack.c.b16 %v3756, %v3740
        %v3773 = vpack.c.b16 %v3757, %v3741
        %v4046 = vunpack.c.l.b16 %v3431
        %v4047 = vunpack.c.l.b16 %v3432
        %v4048 = vunpack.c.l.b16 %v3433
        %v4049 = vunpack.c.l.b16 %v3434
        %v4050 = vunpack.c.l.b16 %v3435
        %v4051 = vunpack.c.l.b16 %v3436
        %v4052 = vunpack.c.l.b16 %v3437
        %v4053 = vunpack.c.l.b16 %v3438
        %v4054 = vunpack.c.l.b16 %v3439
        %v4055 = vunpack.c.l.b16 %v3440
        %v4056 = vunpack.c.l.b16 %v3441
        %v4057 = vunpack.c.l.b16 %v3442
        %v4058 = vunpack.c.l.b16 %v3443
        %v4059 = vunpack.c.l.b16 %v3444
        %v4060 = vunpack.c.l.b16 %v3445
        %v4061 = vunpack.c.l.b16 %v3446
        %v4062 = vunpack.c.l.b16 %v3447
        %v4063 = vunpack.c.l.b16 %v3448
        %v4064 = vunpack.c.l.b16 %v3449
        %v4065 = vunpack.c.l.b16 %v3450
        %v4066 = vunpack.c.l.b16 %v3451
        %v4067 = vunpack.c.l.b16 %v3452
        %v4068 = vunpack.c.l.b16 %v3453
        %v4069 = vunpack.c.l.b16 %v3454
        %v4070 = vunpack.c.l.b16 %v3455
        %v4071 = vunpack.c.l.b16 %v3456
        %v4072 = vunpack.c.l.b16 %v3457
        %v4073 = vunpack.c.l.b16 %v3458
        %v4074 = vunpack.c.l.b16 %v3459
        %v4075 = vunpack.c.l.b16 %v3460
        %v4076 = vunpack.c.l.b16 %v3461
        %v4077 = vunpack.c.l.b16 %v3462
        %v4078 = vunpack.c.l.b16 %v3463
        %v4079 = vunpack.c.l.b16 %v3464
        %v4080 = vunpack.c.l.b16 %v3465
        %v4081 = vunpack.c.l.b16 %v3466
        %v4082 = vunpack.c.l.b16 %v3467
        %v4083 = vunpack.c.l.b16 %v3468
        %v4084 = vunpack.c.l.b16 %v3469
        %v4085 = vunpack.c.l.b16 %v3470
        %v4086 = vunpack.c.l.b16 %v3471
        %v4087 = vunpack.c.l.b16 %v3472
        %v4088 = vunpack.c.l.b16 %v3473
        %v4089 = vunpack.c.l.b16 %v3474
        %v4090 = vunpack.c.l.b16 %v3475
        %v4091 = vunpack.c.l.b16 %v3476
        %v4092 = vunpack.c.l.b16 %v3477
        %v4093 = vunpack.c.l.b16 %v3478
        %v4094 = vunpack.c.l.b16 %v3479
        %v4095 = vunpack.c.l.b16 %v3480
        %v4096 = vunpack.c.l.b16 %v3481
        %v4097 = vunpack.c.l.b16 %v3482
        %v4098 = vunpack.c.l.b16 %v3483
        %v4099 = vunpack.c.l.b16 %v3484
        %v4100 = vunpack.c.l.b16 %v3485
        %v4101 = vunpack.c.l.b16 %v3486
        %v4102 = vunpack.c.l.b16 %v3487
        %v4103 = vunpack.c.l.b16 %v3488
        %v4104 = vunpack.c.l.b16 %v3489
        %v4105 = vunpack.c.l.b16 %v3490
        %v4106 = vunpack.c.l.b16 %v3491
        %v4107 = vunpack.c.l.b16 %v3492
        %v4108 = vunpack.c.l.b16 %v3493
        %v4109 = vunpack.c.l.b16 %v3494
        %v4110 = vunpack.c.l.b16 %v3495
        %v4111 = vunpack.c.l.b16 %v3496
        %v4112 = vunpack.c.l.b16 %v3497
        %v4113 = vunpack.c.l.b16 %v3498
        %v4114 = vunpack.c.l.b16 %v3499
        %v4115 = vunpack.c.l.b16 %v3500
        %v4116 = vunpack.c.l.b16 %v3501
        %v4117 = vunpack.c.l.b16 %v3502
        %v4118 = vunpack.c.l.b16 %v3503
        %v4119 = vunpack.c.l.b16 %v3504
        %v4120 = vunpack.c.l.b16 %v3505
        %v4121 = vunpack.c.l.b16 %v3506
        %v4122 = vunpack.c.l.b16 %v3507
        %v4123 = vunpack.c.l.b16 %v3508
        %v4124 = vunpack.c.l.b16 %v3509
        %v4125 = vunpack.c.l.b16 %v3510
        %v4126 = vunpack.c.l.b16 %v3511
        %v4127 = vunpack.c.l.b16 %v3512
        %v4128 = vunpack.c.l.b16 %v3513
        %v4129 = vunpack.c.l.b16 %v3514
        %v4130 = vunpack.c.l.b16 %v3515
        %v4131 = vunpack.c.l.b16 %v3516
        %v4132 = vunpack.c.l.b16 %v3517
        %v4133 = vunpack.c.l.b16 %v3518
        %v4134 = vunpack.c.l.b16 %v3519
        %v4135 = vunpack.c.l.b16 %v3520
        %v4136 = vunpack.c.l.b16 %v3521
        %v4137 = vunpack.c.l.b16 %v3522
        %v4138 = vunpack.c.l.b16 %v3523
        %v4139 = vunpack.c.l.b16 %v3524
        %v4140 = vunpack.c.l.b16 %v3525
        %v4141 = vunpack.c.l.b16 %v3526
        %v4142 = vunpack.c.l.b16 %v3527
        %v4143 = vunpack.c.l.b16 %v3528
        %v4144 = vunpack.c.l.b16 %v3529
        %v4145 = vunpack.c.l.b16 %v3530
        %v4146 = vunpack.c.l.b16 %v3531
        %v4147 = vunpack.c.l.b16 %v3532
        %v4148 = vunpack.c.l.b16 %v3533
        %v4149 = vunpack.c.l.b16 %v3534
        %v4150 = vunpack.c.l.b16 %v3535
        %v4151 = vunpack.c.l.b16 %v3536
        %v4152 = vunpack.c.l.b16 %v3537
        %v4153 = vunpack.c.l.b16 %v3538
        %v4154 = vunpack.c.l.b16 %v3539
        %v4155 = vunpack.c.l.b16 %v3540
        %v4156 = vunpack.c.l.b16 %v3541
        %v4157 = vunpack.c.l.b16 %v3542
        %v4158 = vunpack.c.l.b16 %v3543
        %v4159 = vunpack.c.l.b16 %v3544
        %v4160 = vunpack.c.l.b16 %v3545
        %v4161 = vunpack.c.l.b16 %v3546
        %v4162 = vunpack.c.l.b16 %v3547
        %v4163 = vunpack.c.l.b16 %v3548
        %v4164 = vunpack.c.l.b16 %v3549
        %v4165 = vunpack.c.l.b16 %v3550
        %v4166 = vunpack.c.l.b16 %v3551
        %v4167 = vunpack.c.l.b16 %v3552
        %v4168 = vunpack.c.l.b16 %v3553
        %v4169 = vunpack.c.l.b16 %v3554
        %v4170 = vunpack.c.l.b16 %v3555
        %v4171 = vunpack.c.l.b16 %v3556
        %v4172 = vunpack.c.l.b16 %v3557
        %v4173 = vunpack.c.l.b16 %v3558
        %v4174 = vunpack.c.l.b16 %v3559
        %v4175 = vunpack.c.l.b16 %v3560
        %v4176 = vunpack.c.l.b16 %v3561
        %v4177 = vunpack.c.l.b16 %v3562
        %v4178 = vunpack.c.l.b16 %v3563
        %v4179 = vunpack.c.l.b16 %v3564
        %v4180 = vunpack.c.l.b16 %v3565
        %v4181 = vunpack.c.l.b16 %v3566
        %v4182 = vunpack.c.l.b16 %v3567
        %v4183 = vunpack.c.l.b16 %v3568
        %v4184 = vunpack.c.l.b16 %v3569
        %v4185 = vunpack.c.l.b16 %v3570
        %v4186 = vunpack.c.l.b16 %v3571
        %v4187 = vunpack.c.l.b16 %v3572
        %v4188 = vunpack.c.l.b16 %v3573
        %v4189 = vunpack.c.l.b16 %v3574
        %v4190 = vunpack.c.l.b16 %v3575
        %v4191 = vunpack.c.l.b16 %v3576
        %v4192 = vunpack.c.l.b16 %v3577
        %v4193 = vunpack.c.l.b16 %v3578
        %v4194 = vunpack.c.l.b16 %v3579
        %v4195 = vunpack.c.l.b16 %v3580
        %v4196 = vunpack.c.l.b16 %v3581
        %v4197 = vunpack.c.l.b16 %v3582
        %v4198 = vunpack.c.l.b16 %v3583
        %v4199 = vunpack.c.l.b16 %v3584
        %v4200 = vunpack.c.l.b16 %v3585
        %v4201 = vunpack.c.l.b16 %v3586
        %v4202 = vunpack.c.l.b16 %v3587
        %v4203 = vunpack.c.l.b16 %v3588
        %v4204 = vunpack.c.l.b16 %v3589
        %v4205 = vunpack.c.l.b16 %v3590
        %v4206 = vunpack.c.l.b16 %v3591
        %v4207 = vunpack.c.l.b16 %v3592
        %v4208 = vunpack.c.l.b16 %v3593
        %v4209 = vunpack.c.l.b16 %v3594
        %v4210 = vunpack.c.l.b16 %v3595
        %v4211 = vunpack.c.l.b16 %v3596
        %v4212 = vunpack.c.l.b16 %v3597
        %v4213 = vunpack.c.l.b16 %v3598
        %v4214 = vunpack.c.l.b16 %v3599
        %v4215 = vunpack.c.l.b16 %v3600
        %v4216 = vunpack.c.l.b16 %v3601
        %v4217 = vunpack.c.l.b16 %v3602
        %v4218 = vunpack.c.l.b16 %v3603
        %v4219 = vunpack.c.l.b16 %v3604
        %v4220 = vunpack.c.l.b16 %v3605
        %v4221 = vunpack.c.l.b16 %v3606
        %v4222 = vunpack.c.l.b16 %v3607
        %v4223 = vunpack.c.l.b16 %v3608
        %v4224 = vunpack.c.l.b16 %v3609
        %v4225 = vunpack.c.l.b16 %v3610
        %v4226 = vunpack.c.l.b16 %v3611
        %v4227 = vunpack.c.l.b16 %v3612
        %v4228 = vunpack.c.l.b16 %v3613
        %v4229 = vunpack.c.l.b16 %v3614
        %v4230 = vunpack.c.l.b16 %v3615
        %v4231 = vunpack.c.l.b16 %v3616
        %v4232 = vunpack.c.l.b16 %v3617
        %v4233 = vunpack.c.l.b16 %v3618
        %v4234 = vunpack.c.l.b16 %v3619
        %v4235 = vunpack.c.l.b16 %v3620
        %v4236 = vunpack.c.l.b16 %v3621
        %v4237 = vunpack.c.l.b16 %v3622
        %v4238 = vunpack.c.l.b16 %v3623
        %v4239 = vunpack.c.l.b16 %v3624
        %v4240 = vunpack.c.l.b16 %v3625
        %v4241 = vunpack.c.l.b16 %v3626
        %v4242 = vunpack.c.l.b16 %v3627
        %v4243 = vunpack.c.l.b16 %v3628
        %v4244 = vunpack.c.l.b16 %v3629
        %v4245 = vunpack.c.l.b16 %v3630
        %v4246 = vunpack.c.l.b16 %v3631
        %v4247 = vunpack.c.l.b16 %v3632
        %v4248 = vunpack.c.l.b16 %v3633
        %v4249 = vunpack.c.l.b16 %v3634
        %v4250 = vunpack.c.l.b16 %v3635
        %v4251 = vunpack.c.l.b16 %v3636
        %v4252 = vunpack.c.l.b16 %v3637
        %v4253 = vunpack.c.l.b16 %v3638
        %v4254 = vunpack.c.l.b16 %v3639
        %v4255 = vunpack.c.l.b16 %v3640
        %v4256 = vunpack.c.l.b16 %v3641
        %v4257 = vunpack.c.l.b16 %v3642
        %v4258 = vunpack.c.l.b16 %v3643
        %v4259 = vunpack.c.l.b16 %v3644
        %v4260 = vunpack.c.l.b16 %v3645
        %v4261 = vunpack.c.l.b16 %v3646
        %v4262 = vunpack.c.l.b16 %v3647
        %v4263 = vunpack.c.l.b16 %v3648
        %v4264 = vunpack.c.l.b16 %v3649
        %v4265 = vunpack.c.l.b16 %v3650
        %v4266 = vunpack.c.l.b16 %v3651
        %v4267 = vunpack.c.l.b16 %v3652
        %v4268 = vunpack.c.l.b16 %v3653
        %v4269 = vunpack.c.l.b16 %v3654
        %v4270 = vunpack.c.l.b16 %v3655
        %v4271 = vunpack.c.l.b16 %v3656
        %v4272 = vunpack.c.l.b16 %v3657
        %v4273 = vunpack.c.l.b16 %v3658
        %v4274 = vunpack.c.l.b16 %v3659
        %v4275 = vunpack.c.l.b16 %v3660
        %v4276 = vunpack.c.l.b16 %v3661
        %v4277 = vunpack.c.l.b16 %v3662
        %v4278 = vunpack.c.l.b16 %v3663
        %v4279 = vunpack.c.l.b16 %v3664
        %v4280 = vunpack.c.l.b16 %v3665
        %v4281 = vunpack.c.l.b16 %v3666
        %v4282 = vunpack.c.l.b16 %v3667
        %v4283 = vunpack.c.l.b16 %v3668
        %v4284 = vunpack.c.l.b16 %v3669
        %v4285 = vunpack.c.l.b16 %v3670
        %v4286 = vunpack.c.l.b16 %v3671
        %v4287 = vunpack.c.l.b16 %v3672
        %v4288 = vunpack.c.l.b16 %v3673
        %v4289 = vunpack.c.l.b16 %v3674
        %v4290 = vunpack.c.l.b16 %v3675
        %v4291 = vunpack.c.l.b16 %v3676
        %v4292 = vunpack.c.l.b16 %v3677
        %v4293 = vunpack.c.l.b16 %v3678
        %v4294 = vunpack.c.l.b16 %v3679
        %v4295 = vunpack.c.l.b16 %v3680
        %v4296 = vunpack.c.l.b16 %v3681
        %v4297 = vunpack.c.l.b16 %v3682
        %v4298 = vunpack.c.l.b16 %v3683
        %v4299 = vunpack.c.l.b16 %v3684
        %v4300 = vunpack.c.l.b16 %v3685
        %v4301 = vunpack.c.l.b16 %v3686
        %v4302 = vpack.c.b16 %v4047, %v4046
        %v4303 = vpack.c.b16 %v4049, %v4048
        %v4304 = vpack.c.b16 %v4051, %v4050
        %v4305 = vpack.c.b16 %v4053, %v4052
        %v4306 = vpack.c.b16 %v4055, %v4054
        %v4307 = vpack.c.b16 %v4057, %v4056
        %v4308 = vpack.c.b16 %v4059, %v4058
        %v4309 = vpack.c.b16 %v4061, %v4060
        %v4310 = vpack.c.b16 %v4063, %v4062
        %v4311 = vpack.c.b16 %v4065, %v4064
        %v4312 = vpack.c.b16 %v4067, %v4066
        %v4313 = vpack.c.b16 %v4069, %v4068
        %v4314 = vpack.c.b16 %v4071, %v4070
        %v4315 = vpack.c.b16 %v4073, %v4072
        %v4316 = vpack.c.b16 %v4075, %v4074
        %v4317 = vpack.c.b16 %v4077, %v4076
        %v4318 = vpack.c.b16 %v4079, %v4078
        %v4319 = vpack.c.b16 %v4081, %v4080
        %v4320 = vpack.c.b16 %v4083, %v4082
        %v4321 = vpack.c.b16 %v4085, %v4084
        %v4322 = vpack.c.b16 %v4087, %v4086
        %v4323 = vpack.c.b16 %v4089, %v4088
        %v4324 = vpack.c.b16 %v4091, %v4090
        %v4325 = vpack.c.b16 %v4093, %v4092
        %v4326 = vpack.c.b16 %v4095, %v4094
        %v4327 = vpack.c.b16 %v4097, %v4096
        %v4328 = vpack.c.b16 %v4099, %v4098
        %v4329 = vpack.c.b16 %v4101, %v4100
        %v4330 = vpack.c.b16 %v4103, %v4102
        %v4331 = vpack.c.b16 %v4105, %v4104
        %v4332 = vpack.c.b16 %v4107, %v4106
        %v4333 = vpack.c.b16 %v4109, %v4108
        %v4334 = vpack.c.b16 %v4111, %v4110
        %v4335 = vpack.c.b16 %v4113, %v4112
        %v4336 = vpack.c.b16 %v4115, %v4114
        %v4337 = vpack.c.b16 %v4117, %v4116
        %v4338 = vpack.c.b16 %v4119, %v4118
        %v4339 = vpack.c.b16 %v4121, %v4120
        %v4340 = vpack.c.b16 %v4123, %v4122
        %v4341 = vpack.c.b16 %v4125, %v4124
        %v4342 = vpack.c.b16 %v4127, %v4126
        %v4343 = vpack.c.b16 %v4129, %v4128
        %v4344 = vpack.c.b16 %v4131, %v4130
        %v4345 = vpack.c.b16 %v4133, %v4132
        %v4346 = vpack.c.b16 %v4135, %v4134
        %v4347 = vpack.c.b16 %v4137, %v4136
        %v4348 = vpack.c.b16 %v4139, %v4138
        %v4349 = vpack.c.b16 %v4141, %v4140
        %v4350 = vpack.c.b16 %v4143, %v4142
        %v4351 = vpack.c.b16 %v4145, %v4144
        %v4352 = vpack.c.b16 %v4147, %v4146
        %v4353 = vpack.c.b16 %v4149, %v4148
        %v4354 = vpack.c.b16 %v4151, %v4150
        %v4355 = vpack.c.b16 %v4153, %v4152
        %v4356 = vpack.c.b16 %v4155, %v4154
        %v4357 = vpack.c.b16 %v4157, %v4156
        %v4358 = vpack.c.b16 %v4159, %v4158
        %v4359 = vpack.c.b16 %v4161, %v4160
        %v4360 = vpack.c.b16 %v4163, %v4162
        %v4361 = vpack.c.b16 %v4165, %v4164
        %v4362 = vpack.c.b16 %v4167, %v4166
        %v4363 = vpack.c.b16 %v4169, %v4168
        %v4364 = vpack.c.b16 %v4171, %v4170
        %v4365 = vpack.c.b16 %v4173, %v4172
        %v4366 = vpack.c.b16 %v4175, %v4174
        %v4367 = vpack.c.b16 %v4177, %v4176
        %v4368 = vpack.c.b16 %v4179, %v4178
        %v4369 = vpack.c.b16 %v4181, %v4180
        %v4370 = vpack.c.b16 %v4183, %v4182
        %v4371 = vpack.c.b16 %v4185, %v4184
        %v4372 = vpack.c.b16 %v4187, %v4186
        %v4373 = vpack.c.b16 %v4189, %v4188
        %v4374 = vpack.c.b16 %v4191, %v4190
        %v4375 = vpack.c.b16 %v4193, %v4192
        %v4376 = vpack.c.b16 %v4195, %v4194
        %v4377 = vpack.c.b16 %v4197, %v4196
        %v4378 = vpack.c.b16 %v4199, %v4198
        %v4379 = vpack.c.b16 %v4201, %v4200
        %v4380 = vpack.c.b16 %v4203, %v4202
        %v4381 = vpack.c.b16 %v4205, %v4204
        %v4382 = vpack.c.b16 %v4207, %v4206
        %v4383 = vpack.c.b16 %v4209, %v4208
        %v4384 = vpack.c.b16 %v4211, %v4210
        %v4385 = vpack.c.b16 %v4213, %v4212
        %v4386 = vpack.c.b16 %v4215, %v4214
        %v4387 = vpack.c.b16 %v4217, %v4216
        %v4388 = vpack.c.b16 %v4219, %v4218
        %v4389 = vpack.c.b16 %v4221, %v4220
        %v4390 = vpack.c.b16 %v4223, %v4222
        %v4391 = vpack.c.b16 %v4225, %v4224
        %v4392 = vpack.c.b16 %v4227, %v4226
        %v4393 = vpack.c.b16 %v4229, %v4228
        %v4394 = vpack.c.b16 %v4231, %v4230
        %v4395 = vpack.c.b16 %v4233, %v4232
        %v4396 = vpack.c.b16 %v4235, %v4234
        %v4397 = vpack.c.b16 %v4237, %v4236
        %v4398 = vpack.c.b16 %v4239, %v4238
        %v4399 = vpack.c.b16 %v4241, %v4240
        %v4400 = vpack.c.b16 %v4243, %v4242
        %v4401 = vpack.c.b16 %v4245, %v4244
        %v4402 = vpack.c.b16 %v4247, %v4246
        %v4403 = vpack.c.b16 %v4249, %v4248
        %v4404 = vpack.c.b16 %v4251, %v4250
        %v4405 = vpack.c.b16 %v4253, %v4252
        %v4406 = vpack.c.b16 %v4255, %v4254
        %v4407 = vpack.c.b16 %v4257, %v4256
        %v4408 = vpack.c.b16 %v4259, %v4258
        %v4409 = vpack.c.b16 %v4261, %v4260
        %v4410 = vpack.c.b16 %v4263, %v4262
        %v4411 = vpack.c.b16 %v4265, %v4264
        %v4412 = vpack.c.b16 %v4267, %v4266
        %v4413 = vpack.c.b16 %v4269, %v4268
        %v4414 = vpack.c.b16 %v4271, %v4270
        %v4415 = vpack.c.b16 %v4273, %v4272
        %v4416 = vpack.c.b16 %v4275, %v4274
        %v4417 = vpack.c.b16 %v4277, %v4276
        %v4418 = vpack.c.b16 %v4279, %v4278
        %v4419 = vpack.c.b16 %v4281, %v4280
        %v4420 = vpack.c.b16 %v4283, %v4282
        %v4421 = vpack.c.b16 %v4285, %v4284
        %v4422 = vpack.c.b16 %v4287, %v4286
        %v4423 = vpack.c.b16 %v4289, %v4288
        %v4424 = vpack.c.b16 %v4291, %v4290
        %v4425 = vpack.c.b16 %v4293, %v4292
        %v4426 = vpack.c.b16 %v4295, %v4294
        %v4427 = vpack.c.b16 %v4297, %v4296
        %v4428 = vpack.c.b16 %v4299, %v4298
        %v4429 = vpack.c.b16 %v4301, %v4300
        %4558 = vmatprep.subr.bf16.mxu0 0
        %4559 = vmatpush1.bf16.msra.mxu0 %v4302
        %4560 = vmatprep.subr.bf16.mxu0 0
        %4561 = vmatpush1.bf16.msra.mxu0 %v4303
        %4562 = vmatprep.subr.bf16.mxu0 0
        %4563 = vmatpush1.bf16.msra.mxu0 %v4304
        %4564 = vmatprep.subr.bf16.mxu0 0
        %4565 = vmatpush1.bf16.msra.mxu0 %v4305
        %4566 = vmatprep.subr.bf16.mxu0 0
        %4567 = vmatpush1.bf16.msra.mxu0 %v4306
        %4568 = vmatprep.subr.bf16.mxu0 0
        %4569 = vmatpush1.bf16.msra.mxu0 %v4307
        %4570 = vmatprep.subr.bf16.mxu0 0
        %4571 = vmatpush1.bf16.msra.mxu0 %v4308
        %4572 = vmatprep.subr.bf16.mxu0 0
        %4573 = vmatpush1.bf16.msra.mxu0 %v4309
        %4574 = vmatprep.subr.bf16.mxu0 0
        %4575 = vmatpush1.bf16.msra.mxu0 %v4310
        %4576 = vmatprep.subr.bf16.mxu0 0
        %4577 = vmatpush1.bf16.msra.mxu0 %v4311
        %4578 = vmatprep.subr.bf16.mxu0 0
        %4579 = vmatpush1.bf16.msra.mxu0 %v4312
        %4580 = vmatprep.subr.bf16.mxu0 0
        %4581 = vmatpush1.bf16.msra.mxu0 %v4313
        %4582 = vmatprep.subr.bf16.mxu0 0
        %4583 = vmatpush1.bf16.msra.mxu0 %v4314
        %4584 = vmatprep.subr.bf16.mxu0 0
        %4585 = vmatpush1.bf16.msra.mxu0 %v4315
        %4586 = vmatprep.subr.bf16.mxu0 0
        %4587 = vmatpush1.bf16.msra.mxu0 %v4316
        %4588 = vmatprep.subr.bf16.mxu0 0
        %4589 = vmatpush1.bf16.msra.mxu0 %v4317
        %4590 = vmatprep.mubr.bf16.mxu0 %v3759
        %4591 = vmatmul.mubr.bf16.gmra.mrb[0].mxu0 %v3758
        %v4592 = vpop.f32.mrb[0].mxu0
        %v4593 = vadd.f32 %v3692, %v4592
        %v4594 = vpop.f32.mrb[0].mxu0
        %v4595 = vpop.f32.mrb[0].mxu0
        %v4596 = vadd.f32 %v3692, %v4595
        %v4597 = vpop.f32.mrb[0].mxu0
        %4598 = vdwg.mxu0
        %4599 = vmatprep.subr.bf16.mxu0 0
        %4600 = vmatpush1.bf16.msra.mxu0 %v4318
        %4601 = vmatprep.subr.bf16.mxu0 0
        %4602 = vmatpush1.bf16.msra.mxu0 %v4319
        %4603 = vmatprep.subr.bf16.mxu0 0
        %4604 = vmatpush1.bf16.msra.mxu0 %v4320
        %4605 = vmatprep.subr.bf16.mxu0 0
        %4606 = vmatpush1.bf16.msra.mxu0 %v4321
        %4607 = vmatprep.subr.bf16.mxu0 0
        %4608 = vmatpush1.bf16.msra.mxu0 %v4322
        %4609 = vmatprep.subr.bf16.mxu0 0
        %4610 = vmatpush1.bf16.msra.mxu0 %v4323
        %4611 = vmatprep.subr.bf16.mxu0 0
        %4612 = vmatpush1.bf16.msra.mxu0 %v4324
        %4613 = vmatprep.subr.bf16.mxu0 0
        %4614 = vmatpush1.bf16.msra.mxu0 %v4325
        %4615 = vmatprep.subr.bf16.mxu0 0
        %4616 = vmatpush1.bf16.msra.mxu0 %v4326
        %4617 = vmatprep.subr.bf16.mxu0 0
        %4618 = vmatpush1.bf16.msra.mxu0 %v4327
        %4619 = vmatprep.subr.bf16.mxu0 0
        %4620 = vmatpush1.bf16.msra.mxu0 %v4328
        %4621 = vmatprep.subr.bf16.mxu0 0
        %4622 = vmatpush1.bf16.msra.mxu0 %v4329
        %4623 = vmatprep.subr.bf16.mxu0 0
        %4624 = vmatpush1.bf16.msra.mxu0 %v4330
        %4625 = vmatprep.subr.bf16.mxu0 0
        %4626 = vmatpush1.bf16.msra.mxu0 %v4331
        %4627 = vmatprep.subr.bf16.mxu0 0
        %4628 = vmatpush1.bf16.msra.mxu0 %v4332
        %4629 = vmatprep.subr.bf16.mxu0 0
        %4630 = vmatpush1.bf16.msra.mxu0 %v4333
        %4631 = vmatprep.mubr.bf16.mxu0 %v3761
        %4632 = vmatmul.mubr.bf16.gmra.mrb[0].mxu0 %v3760
        %v4633 = vpop.f32.mrb[0].mxu0
        %v4634 = vadd.f32 %v4593, %v4633
        %v4635 = vpop.f32.mrb[0].mxu0
        %v4636 = vpop.f32.mrb[0].mxu0
        %v4637 = vadd.f32 %v4596, %v4636
        %v4638 = vpop.f32.mrb[0].mxu0
        %4639 = vdwg.mxu0
        %4640 = vmatprep.subr.bf16.mxu0 0
        %4641 = vmatpush1.bf16.msra.mxu0 %v4334
        %4642 = vmatprep.subr.bf16.mxu0 0
        %4643 = vmatpush1.bf16.msra.mxu0 %v4335
        %4644 = vmatprep.subr.bf16.mxu0 0
        %4645 = vmatpush1.bf16.msra.mxu0 %v4336
        %4646 = vmatprep.subr.bf16.mxu0 0
        %4647 = vmatpush1.bf16.msra.mxu0 %v4337
        %4648 = vmatprep.subr.bf16.mxu0 0
        %4649 = vmatpush1.bf16.msra.mxu0 %v4338
        %4650 = vmatprep.subr.bf16.mxu0 0
        %4651 = vmatpush1.bf16.msra.mxu0 %v4339
        %4652 = vmatprep.subr.bf16.mxu0 0
        %4653 = vmatpush1.bf16.msra.mxu0 %v4340
        %4654 = vmatprep.subr.bf16.mxu0 0
        %4655 = vmatpush1.bf16.msra.mxu0 %v4341
        %4656 = vmatprep.subr.bf16.mxu0 0
        %4657 = vmatpush1.bf16.msra.mxu0 %v4342
        %4658 = vmatprep.subr.bf16.mxu0 0
        %4659 = vmatpush1.bf16.msra.mxu0 %v4343
        %4660 = vmatprep.subr.bf16.mxu0 0
        %4661 = vmatpush1.bf16.msra.mxu0 %v4344
        %4662 = vmatprep.subr.bf16.mxu0 0
        %4663 = vmatpush1.bf16.msra.mxu0 %v4345
        %4664 = vmatprep.subr.bf16.mxu0 0
        %4665 = vmatpush1.bf16.msra.mxu0 %v4346
        %4666 = vmatprep.subr.bf16.mxu0 0
        %4667 = vmatpush1.bf16.msra.mxu0 %v4347
        %4668 = vmatprep.subr.bf16.mxu0 0
        %4669 = vmatpush1.bf16.msra.mxu0 %v4348
        %4670 = vmatprep.subr.bf16.mxu0 0
        %4671 = vmatpush1.bf16.msra.mxu0 %v4349
        %4672 = vmatprep.mubr.bf16.mxu0 %v3763
        %4673 = vmatmul.mubr.bf16.gmra.mrb[0].mxu0 %v3762
        %v4674 = vpop.f32.mrb[0].mxu0
        %v4675 = vadd.f32 %v4634, %v4674
        %v4676 = vpop.f32.mrb[0].mxu0
        %v4677 = vpop.f32.mrb[0].mxu0
        %v4678 = vadd.f32 %v4637, %v4677
        %v4679 = vpop.f32.mrb[0].mxu0
        %4680 = vdwg.mxu0
        %4681 = vmatprep.subr.bf16.mxu0 0
        %4682 = vmatpush1.bf16.msra.mxu0 %v4350
        %4683 = vmatprep.subr.bf16.mxu0 0
        %4684 = vmatpush1.bf16.msra.mxu0 %v4351
        %4685 = vmatprep.subr.bf16.mxu0 0
        %4686 = vmatpush1.bf16.msra.mxu0 %v4352
        %4687 = vmatprep.subr.bf16.mxu0 0
        %4688 = vmatpush1.bf16.msra.mxu0 %v4353
        %4689 = vmatprep.subr.bf16.mxu0 0
        %4690 = vmatpush1.bf16.msra.mxu0 %v4354
        %4691 = vmatprep.subr.bf16.mxu0 0
        %4692 = vmatpush1.bf16.msra.mxu0 %v4355
        %4693 = vmatprep.subr.bf16.mxu0 0
        %4694 = vmatpush1.bf16.msra.mxu0 %v4356
        %4695 = vmatprep.subr.bf16.mxu0 0
        %4696 = vmatpush1.bf16.msra.mxu0 %v4357
        %4697 = vmatprep.subr.bf16.mxu0 0
        %4698 = vmatpush1.bf16.msra.mxu0 %v4358
        %4699 = vmatprep.subr.bf16.mxu0 0
        %4700 = vmatpush1.bf16.msra.mxu0 %v4359
        %4701 = vmatprep.subr.bf16.mxu0 0
        %4702 = vmatpush1.bf16.msra.mxu0 %v4360
        %4703 = vmatprep.subr.bf16.mxu0 0
        %4704 = vmatpush1.bf16.msra.mxu0 %v4361
        %4705 = vmatprep.subr.bf16.mxu0 0
        %4706 = vmatpush1.bf16.msra.mxu0 %v4362
        %4707 = vmatprep.subr.bf16.mxu0 0
        %4708 = vmatpush1.bf16.msra.mxu0 %v4363
        %4709 = vmatprep.subr.bf16.mxu0 0
        %4710 = vmatpush1.bf16.msra.mxu0 %v4364
        %4711 = vmatprep.subr.bf16.mxu0 0
        %4712 = vmatpush1.bf16.msra.mxu0 %v4365
        %4713 = vmatprep.mubr.bf16.mxu0 %v3765
        %4714 = vmatmul.mubr.bf16.gmra.mrb[0].mxu0 %v3764
        %v4715 = vpop.f32.mrb[0].mxu0
        %v4716 = vadd.f32 %v4675, %v4715
        %v4717 = vpop.f32.mrb[0].mxu0
        %v4718 = vpop.f32.mrb[0].mxu0
        %v4719 = vadd.f32 %v4678, %v4718
        %v4720 = vpop.f32.mrb[0].mxu0
        %4721 = vdwg.mxu0
        %4722 = vmatprep.subr.bf16.mxu0 0
        %4723 = vmatpush1.bf16.msra.mxu0 %v4366
        %4724 = vmatprep.subr.bf16.mxu0 0
        %4725 = vmatpush1.bf16.msra.mxu0 %v4367
        %4726 = vmatprep.subr.bf16.mxu0 0
        %4727 = vmatpush1.bf16.msra.mxu0 %v4368
        %4728 = vmatprep.subr.bf16.mxu0 0
        %4729 = vmatpush1.bf16.msra.mxu0 %v4369
        %4730 = vmatprep.subr.bf16.mxu0 0
        %4731 = vmatpush1.bf16.msra.mxu0 %v4370
        %4732 = vmatprep.subr.bf16.mxu0 0
        %4733 = vmatpush1.bf16.msra.mxu0 %v4371
        %4734 = vmatprep.subr.bf16.mxu0 0
        %4735 = vmatpush1.bf16.msra.mxu0 %v4372
        %4736 = vmatprep.subr.bf16.mxu0 0
        %4737 = vmatpush1.bf16.msra.mxu0 %v4373
        %4738 = vmatprep.subr.bf16.mxu0 0
        %4739 = vmatpush1.bf16.msra.mxu0 %v4374
        %4740 = vmatprep.subr.bf16.mxu0 0
        %4741 = vmatpush1.bf16.msra.mxu0 %v4375
        %4742 = vmatprep.subr.bf16.mxu0 0
        %4743 = vmatpush1.bf16.msra.mxu0 %v4376
        %4744 = vmatprep.subr.bf16.mxu0 0
        %4745 = vmatpush1.bf16.msra.mxu0 %v4377
        %4746 = vmatprep.subr.bf16.mxu0 0
        %4747 = vmatpush1.bf16.msra.mxu0 %v4378
        %4748 = vmatprep.subr.bf16.mxu0 0
        %4749 = vmatpush1.bf16.msra.mxu0 %v4379
        %4750 = vmatprep.subr.bf16.mxu0 0
        %4751 = vmatpush1.bf16.msra.mxu0 %v4380
        %4752 = vmatprep.subr.bf16.mxu0 0
        %4753 = vmatpush1.bf16.msra.mxu0 %v4381
        %4754 = vmatprep.mubr.bf16.mxu0 %v3767
        %4755 = vmatmul.mubr.bf16.gmra.mrb[0].mxu0 %v3766
        %v4756 = vpop.f32.mrb[0].mxu0
        %v4757 = vadd.f32 %v4716, %v4756
        %v4758 = vpop.f32.mrb[0].mxu0
        %v4759 = vpop.f32.mrb[0].mxu0
        %v4760 = vadd.f32 %v4719, %v4759
        %v4761 = vpop.f32.mrb[0].mxu0
        %4762 = vdwg.mxu0
        %4763 = vmatprep.subr.bf16.mxu0 0
        %4764 = vmatpush1.bf16.msra.mxu0 %v4382
        %4765 = vmatprep.subr.bf16.mxu0 0
        %4766 = vmatpush1.bf16.msra.mxu0 %v4383
        %4767 = vmatprep.subr.bf16.mxu0 0
        %4768 = vmatpush1.bf16.msra.mxu0 %v4384
        %4769 = vmatprep.subr.bf16.mxu0 0
        %4770 = vmatpush1.bf16.msra.mxu0 %v4385
        %4771 = vmatprep.subr.bf16.mxu0 0
        %4772 = vmatpush1.bf16.msra.mxu0 %v4386
        %4773 = vmatprep.subr.bf16.mxu0 0
        %4774 = vmatpush1.bf16.msra.mxu0 %v4387
        %4775 = vmatprep.subr.bf16.mxu0 0
        %4776 = vmatpush1.bf16.msra.mxu0 %v4388
        %4777 = vmatprep.subr.bf16.mxu0 0
        %4778 = vmatpush1.bf16.msra.mxu0 %v4389
        %4779 = vmatprep.subr.bf16.mxu0 0
        %4780 = vmatpush1.bf16.msra.mxu0 %v4390
        %4781 = vmatprep.subr.bf16.mxu0 0
        %4782 = vmatpush1.bf16.msra.mxu0 %v4391
        %4783 = vmatprep.subr.bf16.mxu0 0
        %4784 = vmatpush1.bf16.msra.mxu0 %v4392
        %4785 = vmatprep.subr.bf16.mxu0 0
        %4786 = vmatpush1.bf16.msra.mxu0 %v4393
        %4787 = vmatprep.subr.bf16.mxu0 0
        %4788 = vmatpush1.bf16.msra.mxu0 %v4394
        %4789 = vmatprep.subr.bf16.mxu0 0
        %4790 = vmatpush1.bf16.msra.mxu0 %v4395
        %4791 = vmatprep.subr.bf16.mxu0 0
        %4792 = vmatpush1.bf16.msra.mxu0 %v4396
        %4793 = vmatprep.subr.bf16.mxu0 0
        %4794 = vmatpush1.bf16.msra.mxu0 %v4397
        %4795 = vmatprep.mubr.bf16.mxu0 %v3769
        %4796 = vmatmul.mubr.bf16.gmra.mrb[0].mxu0 %v3768
        %v4797 = vpop.f32.mrb[0].mxu0
        %v4798 = vadd.f32 %v4757, %v4797
        %v4799 = vpop.f32.mrb[0].mxu0
        %v4800 = vpop.f32.mrb[0].mxu0
        %v4801 = vadd.f32 %v4760, %v4800
        %v4802 = vpop.f32.mrb[0].mxu0
        %4803 = vdwg.mxu0
        %4804 = vmatprep.subr.bf16.mxu0 0
        %4805 = vmatpush1.bf16.msra.mxu0 %v4398
        %4806 = vmatprep.subr.bf16.mxu0 0
        %4807 = vmatpush1.bf16.msra.mxu0 %v4399
        %4808 = vmatprep.subr.bf16.mxu0 0
        %4809 = vmatpush1.bf16.msra.mxu0 %v4400
        %4810 = vmatprep.subr.bf16.mxu0 0
        %4811 = vmatpush1.bf16.msra.mxu0 %v4401
        %4812 = vmatprep.subr.bf16.mxu0 0
        %4813 = vmatpush1.bf16.msra.mxu0 %v4402
        %4814 = vmatprep.subr.bf16.mxu0 0
        %4815 = vmatpush1.bf16.msra.mxu0 %v4403
        %4816 = vmatprep.subr.bf16.mxu0 0
        %4817 = vmatpush1.bf16.msra.mxu0 %v4404
        %4818 = vmatprep.subr.bf16.mxu0 0
        %4819 = vmatpush1.bf16.msra.mxu0 %v4405
        %4820 = vmatprep.subr.bf16.mxu0 0
        %4821 = vmatpush1.bf16.msra.mxu0 %v4406
        %4822 = vmatprep.subr.bf16.mxu0 0
        %4823 = vmatpush1.bf16.msra.mxu0 %v4407
        %4824 = vmatprep.subr.bf16.mxu0 0
        %4825 = vmatpush1.bf16.msra.mxu0 %v4408
        %4826 = vmatprep.subr.bf16.mxu0 0
        %4827 = vmatpush1.bf16.msra.mxu0 %v4409
        %4828 = vmatprep.subr.bf16.mxu0 0
        %4829 = vmatpush1.bf16.msra.mxu0 %v4410
        %4830 = vmatprep.subr.bf16.mxu0 0
        %4831 = vmatpush1.bf16.msra.mxu0 %v4411
        %4832 = vmatprep.subr.bf16.mxu0 0
        %4833 = vmatpush1.bf16.msra.mxu0 %v4412
        %4834 = vmatprep.subr.bf16.mxu0 0
        %4835 = vmatpush1.bf16.msra.mxu0 %v4413
        %4836 = vmatprep.mubr.bf16.mxu0 %v3771
        %4837 = vmatmul.mubr.bf16.gmra.mrb[0].mxu0 %v3770
        %v4838 = vpop.f32.mrb[0].mxu0
        %v4839 = vadd.f32 %v4798, %v4838
        %v4840 = vpop.f32.mrb[0].mxu0
        %v4841 = vpop.f32.mrb[0].mxu0
        %v4842 = vadd.f32 %v4801, %v4841
        %v4843 = vpop.f32.mrb[0].mxu0
        %4844 = vdwg.mxu0
        %4845 = vmatprep.subr.bf16.mxu0 0
        %4846 = vmatpush1.bf16.msra.mxu0 %v4414
        %4847 = vmatprep.subr.bf16.mxu0 0
        %4848 = vmatpush1.bf16.msra.mxu0 %v4415
        %4849 = vmatprep.subr.bf16.mxu0 0
        %4850 = vmatpush1.bf16.msra.mxu0 %v4416
        %4851 = vmatprep.subr.bf16.mxu0 0
        %4852 = vmatpush1.bf16.msra.mxu0 %v4417
        %4853 = vmatprep.subr.bf16.mxu0 0
        %4854 = vmatpush1.bf16.msra.mxu0 %v4418
        %4855 = vmatprep.subr.bf16.mxu0 0
        %4856 = vmatpush1.bf16.msra.mxu0 %v4419
        %4857 = vmatprep.subr.bf16.mxu0 0
        %4858 = vmatpush1.bf16.msra.mxu0 %v4420
        %4859 = vmatprep.subr.bf16.mxu0 0
        %4860 = vmatpush1.bf16.msra.mxu0 %v4421
        %4861 = vmatprep.subr.bf16.mxu0 0
        %4862 = vmatpush1.bf16.msra.mxu0 %v4422
        %4863 = vmatprep.subr.bf16.mxu0 0
        %4864 = vmatpush1.bf16.msra.mxu0 %v4423
        %4865 = vmatprep.subr.bf16.mxu0 0
        %4866 = vmatpush1.bf16.msra.mxu0 %v4424
        %4867 = vmatprep.subr.bf16.mxu0 0
        %4868 = vmatpush1.bf16.msra.mxu0 %v4425
        %4869 = vmatprep.subr.bf16.mxu0 0
        %4870 = vmatpush1.bf16.msra.mxu0 %v4426
        %4871 = vmatprep.subr.bf16.mxu0 0
        %4872 = vmatpush1.bf16.msra.mxu0 %v4427
        %4873 = vmatprep.subr.bf16.mxu0 0
        %4874 = vmatpush1.bf16.msra.mxu0 %v4428
        %4875 = vmatprep.subr.bf16.mxu0 0
        %4876 = vmatpush1.bf16.msra.mxu0 %v4429
        %4877 = vmatprep.mubr.bf16.mxu0 %v3773
        %4878 = vmatmul.mubr.bf16.gmra.mrb[0].mxu0 %v3772
        %v4879 = vpop.f32.mrb[0].mxu0
        %v4880 = vadd.f32 %v4839, %v4879
        %v4881 = vpop.f32.mrb[0].mxu0
        %v4882 = vpop.f32.mrb[0].mxu0
        %v4883 = vadd.f32 %v4842, %v4882
        %v4884 = vpop.f32.mrb[0].mxu0
        %4885 = vdwg.mxu0
        %v4886 = vadd.f32 %v2735, %v4880
        %v4887 = vadd.f32 %v2736, %v4883
        %v4888 = vsel %vm829, %v4886, 0.0
        %4889 = vadd.xlane.f32.xlu0 %v4888
        %v4890 = vpop.xlane.xlu0 %4889
        %v4891 = vsel %vm829, %v4887, 0.0
        %4892 = vadd.xlane.f32.xlu0 %v4891
        %v4893 = vpop.xlane.xlu0 %4892
        %v4894 = vmul.f32 %v4890, %v2698
        %v4895 = vmul.f32 %v4893, %v2698
        %v4896 = vsub.f32 %v4886, %v4894
        %v4897 = vsub.f32 %v4887, %v4895
        %v4898 = vmul.f32 %v4896, %v4896
        %v4899 = vmul.f32 %v4897, %v4897
        %v4900 = vsel %vm829, %v4898, 0.0
        %4901 = vadd.xlane.f32.xlu0 %v4900
        %v4902 = vpop.xlane.xlu0 %4901
        %v4903 = vsel %vm829, %v4899, 0.0
        %4904 = vadd.xlane.f32.xlu0 %v4903
        %v4905 = vpop.xlane.xlu0 %4904
        %v4906 = vmul.f32 %v4902, %v2698
        %v4907 = vmul.f32 %v4905, %v2698
        %v4908 = vadd.f32 %v4906, 1e-05
        %v4909 = vadd.f32 %v4907, 1e-05
        %v4910 = vrsqrt.pop %v4908
        %v4911 = vrsqrt.pop %v4909
        %v4912 = vmul.f32 %v4896, %v4910
        %v4913 = vmul.f32 %v4897, %v4911
        %v4914 = vld [vmem:[%s783] sm:$0x1]
        %v4916 = vlaneseq
        %v4917 = vshrl.u32 %v4916, 7
        %v4918 = vsub.s32 0, %v4917
        %v4919 = vrot.slane %v4914, %v4918
        %v4921 = vmul.f32 %v4912, %v4919
        %v4922 = vmul.f32 %v4913, %v4919
        %v4923 = vld [vmem:[%s786] sm:$0x1]
        %v4925 = vlaneseq
        %v4926 = vshrl.u32 %v4925, 7
        %v4927 = vsub.s32 0, %v4926
        %v4928 = vrot.slane %v4923, %v4927
        %v4930 = vadd.f32 %v4921, %v4928
        %v4931 = vadd.f32 %v4922, %v4928
        %4932 = vst.msk [vmem:[#allocation2] sm:$0xff] %vm829, %v4930
        %4933 = vst.msk [vmem:[#allocation2 + $0x8] sm:$0xff] %vm829, %v4931
        %p4934 = scmp.eq.s32.totalorder %s29, 1
        // Predicated region
        $region93: #{tpu_custom_call.1} parent=87 // pred_check
          %p4935 = pneg %p4934
        $region94: #{tpu_custom_call.1} parent=87 // pred_check_branch
          %4937 = sbr.rel (%p4935) target = $region96
        $region95: #{tpu_custom_call.1} parent=87 // pred_region
          %4938 = vst.msk [vmem:[#allocation3] sm:$0xff] %vm829, %v4930
          %4939 = vst.msk [vmem:[#allocation3 + $0x8] sm:$0xff] %vm829, %v4931
        $region96: #{tpu_custom_call.1} parent=87 // pred_fallthru
          _
        // Predicated region
        $region97: #{tpu_custom_call.1} parent=87 // pred_check
          %p4940 = pneg %p479
        $region98: #{tpu_custom_call.1} parent=87 // pred_check_branch
          %4942 = sbr.rel (%p4940) target = $region100
        $region99: #{tpu_custom_call.1} parent=87 // pred_region
          %s4944 = ssub.s32 256, 256
          %4945 = vsyncadd [#allocation4], %s4944
          %s4946 = sshll.u32 [#allocation3], 4
          %s4947 = int_to_ptr.vmem [resolvable:$true] %s4946
          %4952 = dma.vmem_to_hbm [thread:$0]  %s4947, 256, %s17, [#allocation4], 128, 128, 8
        $region100: #{tpu_custom_call.1} parent=87 // pred_fallthru
          _
        // Predicated region
        $region101: #{tpu_custom_call.1} parent=87 // pred_check
          %p4953 = pneg %p479
        $region102: #{tpu_custom_call.1} parent=87 // pred_check_branch
          %4955 = sbr.rel (%p4953) target = $region104
        $region103: #{tpu_custom_call.1} parent=87 // pred_region
          %4956 = dma.done [#allocation4], 256
        $region104: #{tpu_custom_call.1} parent=87 // pred_fallthru
          _
      $region88: #{tpu_custom_call.1} parent=5 // pred_fallthru
        _
      %p4957 = scmp.le.s32.totalorder 2, %s24
      // Predicated region
      $region105: #{tpu_custom_call.1} parent=5 // pred_check
        %p4958 = pneg %p4957
      $region106: #{tpu_custom_call.1} parent=5 // pred_check_branch
        %4960 = sbr.rel (%p4958) target = $region108
      $region107: #{tpu_custom_call.1} parent=5 // pred_region
        %s4961 = ssub.s32 %s24, 2
      $region108: #{tpu_custom_call.1} parent=5 // pred_fallthru
        _
    $region6: #{tpu_custom_call.1} parent=1 // loop_footer
      %s28 = sadd.s32 1, %s24
    $region7: #{tpu_custom_call.1} parent=1 // loop_footer_branch
      %23 = sbr.rel target = $region3
    $region8: #{tpu_custom_call.1} parent=1 // loop_exit
      _
    %4962 = vsyncpa [#allocation4], 1
    %s4963 = scalar_lea.sflag [#allocation4], 1
    %4964 = vsyncpa %s4963, 1

</llo_original>
